<compile_context>
chip_gen: v5e
topology: v5e:2x2
jax: 0.10.0
libtpu: 0.0.40
codegen_flags: <defaults>
</compile_context>

<pallas_src>
import jax
import jax.numpy as jnp
from jax.experimental import pallas as pl
from jax.experimental.pallas import tpu as pltpu

# ---------------- config (small, consistent with the module) ----------------
VOCAB = 32          # vocabulary_size
EMBED = 16          # embedding_size
N_CNN_FEAT = 64     # number_of_cnn_features
HIDDEN = 32         # hidden_state_size
NUM_LAYERS = 2      # num_rnn_layers (RNN.forward hardcodes cells[0], cells[1])
NNMAP = 512         # self.nnmapsize (hardcoded in the module)
SPATIAL = 10        # Conv1d spatial length; MaxPool1d(10) -> 1 -> squeeze
BATCH = 2
SEQLEN = 8          # truncated_backprop_length
ATT_OUT = 10        # attention layer output size
EPS_BN = 1e-5
NEG_SLOPE = 0.01


def _leaky_relu(x):
    return jnp.where(x > 0, x, NEG_SLOPE * x)


def _sigmoid(x):
    # numerically-stable sigmoid via tanh (same formulation XLA uses); keeps it on the EUP.
    return 0.5 * (jnp.tanh(0.5 * x) + 1.0)


# ======================= single fused kernel =======================
def caption_kernel(x_ref, tok_ref, state_ref,
                   conv_w_ref, conv_b_ref, bn_g_ref, bn_b_ref, bn_m_ref, bn_v_ref,
                   emb_ref,
                   w0_img_ref, w0_tok_ref, w0_h_ref, b0_ref,
                   w1_h0_ref, w1_att_ref, w1_h_ref, b1_ref,
                   wa1_h_ref, wa1_c_ref, ba1_ref, wa2_ref, ba2_ref,
                   wout_ref, bout_ref,
                   logits_ref, state_out_ref,
                   c1_scr):
    f32 = jnp.float32
    L, BP, _ = x_ref.shape           # spatial, padded batch, cnn channels
    TB = tok_ref.shape[0]            # T * BP
    T = TB // BP
    H = HIDDEN
    V = emb_ref.shape[0]

    # ---- input layer: Conv1d(k=1) with BN(eval) folded in, LeakyReLU, MaxPool1d(L)+squeeze ----
    scale = bn_g_ref[...] * jax.lax.rsqrt(bn_v_ref[...] + EPS_BN)        # [1, NNMAP]
    w_eff = conv_w_ref[...] * scale                                      # [Cin, NNMAP]
    b_eff = (conv_b_ref[...] - bn_m_ref[...]) * scale + bn_b_ref[...]    # [1, NNMAP]
    img = None
    for l in range(L):                                                   # running max == MaxPool1d(L)
        yl = _leaky_relu(jnp.dot(x_ref[l], w_eff, preferred_element_type=f32) + b_eff)
        img = yl if img is None else jnp.maximum(img, yl)                # [BP, NNMAP]

    # ---- loop-invariant projections (hoisted out of the recurrence) ----
    # image-feature rows of the cell-0 weights + bias, computed once:
    img_proj = (jnp.dot(img, w0_img_ref[...], preferred_element_type=f32)
                + jnp.broadcast_to(b0_ref[...], (BP, 4 * H)))            # [BP, 4H]
    # embedding lookup (one-hot matmul) + token rows of the cell-0 weights, all steps at once:
    vocab_iota = jax.lax.broadcasted_iota(jnp.int32, (TB, V), 1)
    onehot = (tok_ref[...] == vocab_iota).astype(f32)                    # [T*BP, V]
    tokw = jnp.dot(emb_ref[...], w0_tok_ref[...], preferred_element_type=f32)   # [V, 4H]
    tok_proj_all = jnp.dot(onehot, tokw, preferred_element_type=f32)     # [T*BP, 4H]

    # hoisted bias broadcasts / gate lane mask / weight loads
    b1b = jnp.broadcast_to(b1_ref[...], (BP, 4 * H))
    ba1b = jnp.broadcast_to(ba1_ref[...], (BP, ba1_ref.shape[1]))
    ba2b = jnp.broadcast_to(ba2_ref[...], (BP, ba2_ref.shape[1]))
    is_ctilde = jax.lax.broadcasted_iota(jnp.int32, (BP, 4 * H), 1) >= 3 * H
    w0_h = w0_h_ref[...]
    w1_h0 = w1_h0_ref[...]
    w1_att = w1_att_ref[...]
    w1_h = w1_h_ref[...]
    wa1_h = wa1_h_ref[...]
    wa1_c = wa1_c_ref[...]
    wa2 = wa2_ref[...]

    # ---- initial state ----
    st0 = state_ref[0]
    st1 = state_ref[1]
    h0, c0 = st0[:, :H], st0[:, H:]
    h1, c1 = st1[:, :H], st1[:, H:]

    # ---- fully-unrolled time loop (T is small & static) ----
    for kk in range(T):
        tok_proj = tok_proj_all[kk * BP:(kk + 1) * BP, :]                # [BP, 4H]

        # LSTM cell 0: x = cat(img, tok), state = cat(h0, c0); gates [i, f, o, c~]
        g0 = img_proj + tok_proj + jnp.dot(h0, w0_h, preferred_element_type=f32)
        a0 = jnp.where(is_ctilde, jnp.tanh(g0), _sigmoid(g0))
        i0, f0, o0, ct0 = a0[:, :H], a0[:, H:2 * H], a0[:, 2 * H:3 * H], a0[:, 3 * H:]
        c0 = f0 * c0 + i0 * ct0
        h0 = o0 * jnp.tanh(c0)

        # Attention on cat(h0, c0): Dropout(eval)=id -> Linear(2H,50) -> LeakyReLU
        #                           -> Linear(50,10) -> Softmax
        att = (jnp.dot(h0, wa1_h, preferred_element_type=f32)
               + jnp.dot(c0, wa1_c, preferred_element_type=f32) + ba1b)
        att = _leaky_relu(att)
        att = jnp.dot(att, wa2, preferred_element_type=f32) + ba2b
        att = att - jnp.max(att, axis=-1, keepdims=True)
        e = jnp.exp(att)
        att = e * pl.reciprocal(jnp.sum(e, axis=-1, keepdims=True), approx=True)  # [BP, 10]

        # LSTM cell 1: x = cat(h0_new, att), state = cat(h1, c1)
        g1 = (jnp.dot(h0, w1_h0, preferred_element_type=f32)
              + jnp.dot(att, w1_att, preferred_element_type=f32)
              + jnp.dot(h1, w1_h, preferred_element_type=f32) + b1b)
        a1 = jnp.where(is_ctilde, jnp.tanh(g1), _sigmoid(g1))
        i1, f1, o1, ct1 = a1[:, :H], a1[:, H:2 * H], a1[:, 2 * H:3 * H], a1[:, 3 * H:]
        c1 = f1 * c1 + i1 * ct1
        h1 = o1 * jnp.tanh(c1)

        # stash the layer-1 MEMORY CELL (reference projects state[:, H:]) for the
        # post-loop output projection
        c1_scr[pl.ds(kk * BP, BP), :] = c1

    # ---- output projection hoisted out of the recurrence: one matmul + one dense store ----
    logits_ref[...] = (jnp.dot(c1_scr[...], wout_ref[...], preferred_element_type=f32)
                       + bout_ref[...])                                  # [T*BP, vocab]

    state_out_ref[0] = jnp.concatenate([h0, c0], axis=-1)                # [BP, 2H]
    state_out_ref[1] = jnp.concatenate([h1, c1], axis=-1)


# ======================= wrapper =======================
def image_caption_forward(params, cnn_features, x_tokens, current_hidden_state):
    B, L, _ = cnn_features.shape
    T = x_tokens.shape[1]
    assert L == SPATIAL, "MaxPool1d(kernel=10, stride=1)+squeeze path requires spatial length == 10"
    BP = max(8, ((B + 7) // 8) * 8)            # sublane-padded batch

    # layout glue (tiny, fused by XLA under jit): spatial-major cnn features, step-major tokens
    x_lbc = jnp.pad(jnp.transpose(cnn_features, (1, 0, 2)).astype(jnp.float32),
                    ((0, 0), (0, BP - B), (0, 0)))                       # [L, BP, Cin]
    tok = jnp.pad(jnp.transpose(x_tokens).astype(jnp.int32),
                  ((0, 0), (0, BP - B))).reshape(T * BP, 1)              # [T*BP, 1]
    state0 = jnp.pad(current_hidden_state.astype(jnp.float32),
                     ((0, 0), (0, BP - B), (0, 0)))                      # [layers, BP, 2H]

    logits_flat, state_out = pl.pallas_call(
        caption_kernel,
        out_shape=(jax.ShapeDtypeStruct((T * BP, VOCAB), jnp.float32),
                   jax.ShapeDtypeStruct((NUM_LAYERS, BP, 2 * HIDDEN), jnp.float32)),
        in_specs=[pl.BlockSpec(memory_space=pltpu.MemorySpace.VMEM)] * 25,
        out_specs=(pl.BlockSpec(memory_space=pltpu.MemorySpace.VMEM),
                   pl.BlockSpec(memory_space=pltpu.MemorySpace.VMEM)),
        scratch_shapes=[pltpu.VMEM((T * BP, HIDDEN), jnp.float32)],
    )(x_lbc, tok, state0,
      params['conv_w'], params['conv_b'], params['bn_gamma'], params['bn_beta'],
      params['bn_mean'], params['bn_var'],
      params['emb'],
      params['w0_img'], params['w0_tok'], params['w0_h'], params['b0'],
      params['w1_h0'], params['w1_att'], params['w1_h'], params['b1'],
      params['wa1_h'], params['wa1_c'], params['ba1'], params['wa2'], params['ba2'],
      params['wout'], params['bout'])

    logits = logits_flat.reshape(T, BP, VOCAB)[:, :B, :].transpose(1, 0, 2)   # [B, T, V]
    final_state = state_out[:, :B, :]                                         # [layers, B, 2H]
    return logits, final_state


# ======================= parameter setup (deterministic, in-script) =======================
def init_params(key):
    ks = jax.random.split(key, 16)
    H = HIDDEN
    p = {}

    # Embedding [vocab, embed]
    p['emb'] = jax.random.normal(ks[0], (VOCAB, EMBED), jnp.float32)

    # input layer: Conv1d(k=1) weight stored as [C_in, NNMAP]; BN(eval) params
    p['conv_w'] = jax.random.normal(ks[1], (N_CNN_FEAT, NNMAP), jnp.float32) / jnp.sqrt(N_CNN_FEAT)
    p['conv_b'] = jnp.zeros((1, NNMAP), jnp.float32)
    p['bn_gamma'] = jnp.ones((1, NNMAP), jnp.float32)
    p['bn_beta'] = jnp.zeros((1, NNMAP), jnp.float32)
    p['bn_mean'] = jnp.zeros((1, NNMAP), jnp.float32)
    p['bn_var'] = jnp.ones((1, NNMAP), jnp.float32)

    # LSTM cell 0: per-gate weights [input0 + H, H], input0 = NNMAP + EMBED (variance scaled)
    in0 = NNMAP + EMBED + H
    w_i0, w_f0, w_o0, w_c0 = (jax.random.normal(k, (in0, H), jnp.float32) / jnp.sqrt(in0)
                              for k in jax.random.split(ks[2], 4))
    wg0 = jnp.concatenate([w_i0, w_f0, w_o0, w_c0], axis=1)      # [in0, 4H], gates [i,f,o,c~]
    p['w0_img'] = wg0[:NNMAP]                                    # rows for pooled image features
    p['w0_tok'] = wg0[NNMAP:NNMAP + EMBED]                       # rows for token embedding
    p['w0_h'] = wg0[NNMAP + EMBED:]                              # rows for h0
    p['b0'] = jnp.zeros((1, 4 * H), jnp.float32)

    # LSTM cell 1: input1 = last_layer_state_size = H + 10
    in1 = (H + ATT_OUT) + H
    w_i1, w_f1, w_o1, w_c1 = (jax.random.normal(k, (in1, H), jnp.float32) / jnp.sqrt(in1)
                              for k in jax.random.split(ks[3], 4))
    wg1 = jnp.concatenate([w_i1, w_f1, w_o1, w_c1], axis=1)      # [in1, 4H]
    p['w1_h0'] = wg1[:H]                                         # rows for h0_new
    p['w1_att'] = wg1[H:H + ATT_OUT]                             # rows for attention output
    p['w1_h'] = wg1[H + ATT_OUT:]                                # rows for h1
    p['b1'] = jnp.zeros((1, 4 * H), jnp.float32)

    # Attention layer: Linear(2H, 50), Linear(50, 10)
    wa1 = jax.random.normal(ks[4], (2 * H, 50), jnp.float32) / jnp.sqrt(2 * H)
    p['wa1_h'] = wa1[:H]
    p['wa1_c'] = wa1[H:]
    p['ba1'] = jnp.zeros((1, 50), jnp.float32)
    p['wa2'] = jax.random.normal(ks[5], (50, ATT_OUT), jnp.float32) / jnp.sqrt(50)
    p['ba2'] = jnp.zeros((1, ATT_OUT), jnp.float32)

    # Output layer: Linear(H, vocab)
    p['wout'] = jax.random.normal(ks[6], (H, VOCAB), jnp.float32) / jnp.sqrt(H)
    p['bout'] = jnp.zeros((1, VOCAB), jnp.float32)
    return p


if __name__ == "__main__":
    key = jax.random.PRNGKey(0)
    kp, kx, kt = jax.random.split(key, 3)
    params = init_params(kp)

    cnn_features = jax.random.normal(kx, (BATCH, SPATIAL, N_CNN_FEAT), jnp.float32)
    x_tokens = jax.random.randint(kt, (BATCH, SEQLEN), 0, VOCAB, dtype=jnp.int32)
    init_state = jnp.zeros((NUM_LAYERS, BATCH, 2 * HIDDEN), jnp.float32)

    fwd = jax.jit(image_caption_forward)
    logits, final_state = fwd(params, cnn_features, x_tokens, init_state)
    logits = jax.block_until_ready(logits)
    final_state = jax.block_until_ready(final_state)

    assert logits.shape == (BATCH, SEQLEN, VOCAB)
    assert final_state.shape == (NUM_LAYERS, BATCH, 2 * HIDDEN)
    assert bool(jnp.all(jnp.isfinite(logits))) and bool(jnp.all(jnp.isfinite(final_state)))
    print("KERNEL_OK")
</pallas_src>

<mosaic_0001>
module attributes {stable_mosaic.version = 11 : i64} {
  func.func @caption_kernel(%arg0: memref<10x8x64xf32, #tpu.memory_space<vmem>>, %arg1: memref<64x1xi32, #tpu.memory_space<vmem>>, %arg2: memref<2x8x64xf32, #tpu.memory_space<vmem>>, %arg3: memref<64x512xf32, #tpu.memory_space<vmem>>, %arg4: memref<1x512xf32, #tpu.memory_space<vmem>>, %arg5: memref<1x512xf32, #tpu.memory_space<vmem>>, %arg6: memref<1x512xf32, #tpu.memory_space<vmem>>, %arg7: memref<1x512xf32, #tpu.memory_space<vmem>>, %arg8: memref<1x512xf32, #tpu.memory_space<vmem>>, %arg9: memref<32x16xf32, #tpu.memory_space<vmem>>, %arg10: memref<512x128xf32, #tpu.memory_space<vmem>>, %arg11: memref<16x128xf32, #tpu.memory_space<vmem>>, %arg12: memref<32x128xf32, #tpu.memory_space<vmem>>, %arg13: memref<1x128xf32, #tpu.memory_space<vmem>>, %arg14: memref<32x128xf32, #tpu.memory_space<vmem>>, %arg15: memref<10x128xf32, #tpu.memory_space<vmem>>, %arg16: memref<32x128xf32, #tpu.memory_space<vmem>>, %arg17: memref<1x128xf32, #tpu.memory_space<vmem>>, %arg18: memref<32x50xf32, #tpu.memory_space<vmem>>, %arg19: memref<32x50xf32, #tpu.memory_space<vmem>>, %arg20: memref<1x50xf32, #tpu.memory_space<vmem>>, %arg21: memref<50x10xf32, #tpu.memory_space<vmem>>, %arg22: memref<1x10xf32, #tpu.memory_space<vmem>>, %arg23: memref<32x32xf32, #tpu.memory_space<vmem>>, %arg24: memref<1x32xf32, #tpu.memory_space<vmem>>, %arg25: memref<64x32xf32, #tpu.memory_space<vmem>>, %arg26: memref<2x8x64xf32, #tpu.memory_space<vmem>>, %arg27: memref<64x32xf32, #tpu.memory_space<vmem>>) attributes {dimension_semantics = [], scalar_prefetch = 0 : i64, scratch_operands = 1 : i64, tpu.core_type = #tpu.core_type<tc>} {
    %c0 = arith.constant 0 : index
    %c0_0 = arith.constant 0 : index
    %0 = vector.load %arg5[%c0, %c0_0] : memref<1x512xf32, #tpu.memory_space<vmem>>, vector<1x512xf32>
    %c0_1 = arith.constant 0 : index
    %c0_2 = arith.constant 0 : index
    %1 = vector.load %arg8[%c0_1, %c0_2] : memref<1x512xf32, #tpu.memory_space<vmem>>, vector<1x512xf32>
    %cst = arith.constant 9.99999974E-6 : f32
    %2 = vector.broadcast %cst : f32 to vector<1x512xf32>
    %3 = arith.addf %1, %2 : vector<1x512xf32>
    %4 = math.rsqrt %3 : vector<1x512xf32>
    %5 = arith.mulf %0, %4 : vector<1x512xf32>
    %c0_3 = arith.constant 0 : index
    %c0_4 = arith.constant 0 : index
    %6 = vector.load %arg3[%c0_3, %c0_4] : memref<64x512xf32, #tpu.memory_space<vmem>>, vector<64x512xf32>
    %7 = vector.broadcast %5 : vector<1x512xf32> to vector<64x512xf32>
    %8 = arith.mulf %6, %7 : vector<64x512xf32>
    %c0_5 = arith.constant 0 : index
    %c0_6 = arith.constant 0 : index
    %9 = vector.load %arg4[%c0_5, %c0_6] : memref<1x512xf32, #tpu.memory_space<vmem>>, vector<1x512xf32>
    %c0_7 = arith.constant 0 : index
    %c0_8 = arith.constant 0 : index
    %10 = vector.load %arg7[%c0_7, %c0_8] : memref<1x512xf32, #tpu.memory_space<vmem>>, vector<1x512xf32>
    %11 = arith.subf %9, %10 : vector<1x512xf32>
    %12 = arith.mulf %11, %5 : vector<1x512xf32>
    %c0_9 = arith.constant 0 : index
    %c0_10 = arith.constant 0 : index
    %13 = vector.load %arg6[%c0_9, %c0_10] : memref<1x512xf32, #tpu.memory_space<vmem>>, vector<1x512xf32>
    %14 = arith.addf %12, %13 : vector<1x512xf32>
    %c0_11 = arith.constant 0 : index
    %c0_12 = arith.constant 0 : index
    %c0_13 = arith.constant 0 : index
    %15 = vector.load %arg0[%c0_11, %c0_12, %c0_13] : memref<10x8x64xf32, #tpu.memory_space<vmem>>, vector<1x8x64xf32>
    %16 = vector.shape_cast %15 : vector<1x8x64xf32> to vector<8x64xf32>
    %cst_14 = arith.constant dense<0.000000e+00> : vector<8x512xf32>
    %17 = tpu.matmul %16, %8, %cst_14 {dimension_numbers = #tpu.dot_dimension_numbers<[1], [0], [0], [1], [0, 0, 1, 1], [], []>} : vector<8x64xf32>, vector<64x512xf32>, vector<8x512xf32> -> vector<8x512xf32>
    %18 = vector.broadcast %14 : vector<1x512xf32> to vector<8x512xf32>
    %19 = arith.addf %17, %18 : vector<8x512xf32>
    %cst_15 = arith.constant 0.000000e+00 : f32
    %20 = vector.broadcast %cst_15 : f32 to vector<8x512xf32>
    %21 = arith.cmpf ogt, %19, %20 : vector<8x512xf32>
    %cst_16 = arith.constant 0.00999999977 : f32
    %22 = vector.broadcast %cst_16 : f32 to vector<8x512xf32>
    %23 = arith.mulf %22, %19 : vector<8x512xf32>
    %24 = arith.select %21, %19, %23 : vector<8x512xi1>, vector<8x512xf32>
    %c1 = arith.constant 1 : index
    %c0_17 = arith.constant 0 : index
    %c0_18 = arith.constant 0 : index
    %25 = vector.load %arg0[%c1, %c0_17, %c0_18] : memref<10x8x64xf32, #tpu.memory_space<vmem>>, vector<1x8x64xf32>
    %26 = vector.shape_cast %25 : vector<1x8x64xf32> to vector<8x64xf32>
    %cst_19 = arith.constant dense<0.000000e+00> : vector<8x512xf32>
    %27 = tpu.matmul %26, %8, %cst_19 {dimension_numbers = #tpu.dot_dimension_numbers<[1], [0], [0], [1], [0, 0, 1, 1], [], []>} : vector<8x64xf32>, vector<64x512xf32>, vector<8x512xf32> -> vector<8x512xf32>
    %28 = vector.broadcast %14 : vector<1x512xf32> to vector<8x512xf32>
    %29 = arith.addf %27, %28 : vector<8x512xf32>
    %cst_20 = arith.constant 0.000000e+00 : f32
    %30 = vector.broadcast %cst_20 : f32 to vector<8x512xf32>
    %31 = arith.cmpf ogt, %29, %30 : vector<8x512xf32>
    %cst_21 = arith.constant 0.00999999977 : f32
    %32 = vector.broadcast %cst_21 : f32 to vector<8x512xf32>
    %33 = arith.mulf %32, %29 : vector<8x512xf32>
    %34 = arith.select %31, %29, %33 : vector<8x512xi1>, vector<8x512xf32>
    %35 = arith.maximumf %24, %34 : vector<8x512xf32>
    %c2 = arith.constant 2 : index
    %c0_22 = arith.constant 0 : index
    %c0_23 = arith.constant 0 : index
    %36 = vector.load %arg0[%c2, %c0_22, %c0_23] : memref<10x8x64xf32, #tpu.memory_space<vmem>>, vector<1x8x64xf32>
    %37 = vector.shape_cast %36 : vector<1x8x64xf32> to vector<8x64xf32>
    %cst_24 = arith.constant dense<0.000000e+00> : vector<8x512xf32>
    %38 = tpu.matmul %37, %8, %cst_24 {dimension_numbers = #tpu.dot_dimension_numbers<[1], [0], [0], [1], [0, 0, 1, 1], [], []>} : vector<8x64xf32>, vector<64x512xf32>, vector<8x512xf32> -> vector<8x512xf32>
    %39 = vector.broadcast %14 : vector<1x512xf32> to vector<8x512xf32>
    %40 = arith.addf %38, %39 : vector<8x512xf32>
    %cst_25 = arith.constant 0.000000e+00 : f32
    %41 = vector.broadcast %cst_25 : f32 to vector<8x512xf32>
    %42 = arith.cmpf ogt, %40, %41 : vector<8x512xf32>
    %cst_26 = arith.constant 0.00999999977 : f32
    %43 = vector.broadcast %cst_26 : f32 to vector<8x512xf32>
    %44 = arith.mulf %43, %40 : vector<8x512xf32>
    %45 = arith.select %42, %40, %44 : vector<8x512xi1>, vector<8x512xf32>
    %46 = arith.maximumf %35, %45 : vector<8x512xf32>
    %c3 = arith.constant 3 : index
    %c0_27 = arith.constant 0 : index
    %c0_28 = arith.constant 0 : index
    %47 = vector.load %arg0[%c3, %c0_27, %c0_28] : memref<10x8x64xf32, #tpu.memory_space<vmem>>, vector<1x8x64xf32>
    %48 = vector.shape_cast %47 : vector<1x8x64xf32> to vector<8x64xf32>
    %cst_29 = arith.constant dense<0.000000e+00> : vector<8x512xf32>
    %49 = tpu.matmul %48, %8, %cst_29 {dimension_numbers = #tpu.dot_dimension_numbers<[1], [0], [0], [1], [0, 0, 1, 1], [], []>} : vector<8x64xf32>, vector<64x512xf32>, vector<8x512xf32> -> vector<8x512xf32>
    %50 = vector.broadcast %14 : vector<1x512xf32> to vector<8x512xf32>
    %51 = arith.addf %49, %50 : vector<8x512xf32>
    %cst_30 = arith.constant 0.000000e+00 : f32
    %52 = vector.broadcast %cst_30 : f32 to vector<8x512xf32>
    %53 = arith.cmpf ogt, %51, %52 : vector<8x512xf32>
    %cst_31 = arith.constant 0.00999999977 : f32
    %54 = vector.broadcast %cst_31 : f32 to vector<8x512xf32>
    %55 = arith.mulf %54, %51 : vector<8x512xf32>
    %56 = arith.select %53, %51, %55 : vector<8x512xi1>, vector<8x512xf32>
    %57 = arith.maximumf %46, %56 : vector<8x512xf32>
    %c4 = arith.constant 4 : index
    %c0_32 = arith.constant 0 : index
    %c0_33 = arith.constant 0 : index
    %58 = vector.load %arg0[%c4, %c0_32, %c0_33] : memref<10x8x64xf32, #tpu.memory_space<vmem>>, vector<1x8x64xf32>
    %59 = vector.shape_cast %58 : vector<1x8x64xf32> to vector<8x64xf32>
    %cst_34 = arith.constant dense<0.000000e+00> : vector<8x512xf32>
    %60 = tpu.matmul %59, %8, %cst_34 {dimension_numbers = #tpu.dot_dimension_numbers<[1], [0], [0], [1], [0, 0, 1, 1], [], []>} : vector<8x64xf32>, vector<64x512xf32>, vector<8x512xf32> -> vector<8x512xf32>
    %61 = vector.broadcast %14 : vector<1x512xf32> to vector<8x512xf32>
    %62 = arith.addf %60, %61 : vector<8x512xf32>
    %cst_35 = arith.constant 0.000000e+00 : f32
    %63 = vector.broadcast %cst_35 : f32 to vector<8x512xf32>
    %64 = arith.cmpf ogt, %62, %63 : vector<8x512xf32>
    %cst_36 = arith.constant 0.00999999977 : f32
    %65 = vector.broadcast %cst_36 : f32 to vector<8x512xf32>
    %66 = arith.mulf %65, %62 : vector<8x512xf32>
    %67 = arith.select %64, %62, %66 : vector<8x512xi1>, vector<8x512xf32>
    %68 = arith.maximumf %57, %67 : vector<8x512xf32>
    %c5 = arith.constant 5 : index
    %c0_37 = arith.constant 0 : index
    %c0_38 = arith.constant 0 : index
    %69 = vector.load %arg0[%c5, %c0_37, %c0_38] : memref<10x8x64xf32, #tpu.memory_space<vmem>>, vector<1x8x64xf32>
    %70 = vector.shape_cast %69 : vector<1x8x64xf32> to vector<8x64xf32>
    %cst_39 = arith.constant dense<0.000000e+00> : vector<8x512xf32>
    %71 = tpu.matmul %70, %8, %cst_39 {dimension_numbers = #tpu.dot_dimension_numbers<[1], [0], [0], [1], [0, 0, 1, 1], [], []>} : vector<8x64xf32>, vector<64x512xf32>, vector<8x512xf32> -> vector<8x512xf32>
    %72 = vector.broadcast %14 : vector<1x512xf32> to vector<8x512xf32>
    %73 = arith.addf %71, %72 : vector<8x512xf32>
    %cst_40 = arith.constant 0.000000e+00 : f32
    %74 = vector.broadcast %cst_40 : f32 to vector<8x512xf32>
    %75 = arith.cmpf ogt, %73, %74 : vector<8x512xf32>
    %cst_41 = arith.constant 0.00999999977 : f32
    %76 = vector.broadcast %cst_41 : f32 to vector<8x512xf32>
    %77 = arith.mulf %76, %73 : vector<8x512xf32>
    %78 = arith.select %75, %73, %77 : vector<8x512xi1>, vector<8x512xf32>
    %79 = arith.maximumf %68, %78 : vector<8x512xf32>
    %c6 = arith.constant 6 : index
    %c0_42 = arith.constant 0 : index
    %c0_43 = arith.constant 0 : index
    %80 = vector.load %arg0[%c6, %c0_42, %c0_43] : memref<10x8x64xf32, #tpu.memory_space<vmem>>, vector<1x8x64xf32>
    %81 = vector.shape_cast %80 : vector<1x8x64xf32> to vector<8x64xf32>
    %cst_44 = arith.constant dense<0.000000e+00> : vector<8x512xf32>
    %82 = tpu.matmul %81, %8, %cst_44 {dimension_numbers = #tpu.dot_dimension_numbers<[1], [0], [0], [1], [0, 0, 1, 1], [], []>} : vector<8x64xf32>, vector<64x512xf32>, vector<8x512xf32> -> vector<8x512xf32>
    %83 = vector.broadcast %14 : vector<1x512xf32> to vector<8x512xf32>
    %84 = arith.addf %82, %83 : vector<8x512xf32>
    %cst_45 = arith.constant 0.000000e+00 : f32
    %85 = vector.broadcast %cst_45 : f32 to vector<8x512xf32>
    %86 = arith.cmpf ogt, %84, %85 : vector<8x512xf32>
    %cst_46 = arith.constant 0.00999999977 : f32
    %87 = vector.broadcast %cst_46 : f32 to vector<8x512xf32>
    %88 = arith.mulf %87, %84 : vector<8x512xf32>
    %89 = arith.select %86, %84, %88 : vector<8x512xi1>, vector<8x512xf32>
    %90 = arith.maximumf %79, %89 : vector<8x512xf32>
    %c7 = arith.constant 7 : index
    %c0_47 = arith.constant 0 : index
    %c0_48 = arith.constant 0 : index
    %91 = vector.load %arg0[%c7, %c0_47, %c0_48] : memref<10x8x64xf32, #tpu.memory_space<vmem>>, vector<1x8x64xf32>
    %92 = vector.shape_cast %91 : vector<1x8x64xf32> to vector<8x64xf32>
    %cst_49 = arith.constant dense<0.000000e+00> : vector<8x512xf32>
    %93 = tpu.matmul %92, %8, %cst_49 {dimension_numbers = #tpu.dot_dimension_numbers<[1], [0], [0], [1], [0, 0, 1, 1], [], []>} : vector<8x64xf32>, vector<64x512xf32>, vector<8x512xf32> -> vector<8x512xf32>
    %94 = vector.broadcast %14 : vector<1x512xf32> to vector<8x512xf32>
    %95 = arith.addf %93, %94 : vector<8x512xf32>
    %cst_50 = arith.constant 0.000000e+00 : f32
    %96 = vector.broadcast %cst_50 : f32 to vector<8x512xf32>
    %97 = arith.cmpf ogt, %95, %96 : vector<8x512xf32>
    %cst_51 = arith.constant 0.00999999977 : f32
    %98 = vector.broadcast %cst_51 : f32 to vector<8x512xf32>
    %99 = arith.mulf %98, %95 : vector<8x512xf32>
    %100 = arith.select %97, %95, %99 : vector<8x512xi1>, vector<8x512xf32>
    %101 = arith.maximumf %90, %100 : vector<8x512xf32>
    %c8 = arith.constant 8 : index
    %c0_52 = arith.constant 0 : index
    %c0_53 = arith.constant 0 : index
    %102 = vector.load %arg0[%c8, %c0_52, %c0_53] : memref<10x8x64xf32, #tpu.memory_space<vmem>>, vector<1x8x64xf32>
    %103 = vector.shape_cast %102 : vector<1x8x64xf32> to vector<8x64xf32>
    %cst_54 = arith.constant dense<0.000000e+00> : vector<8x512xf32>
    %104 = tpu.matmul %103, %8, %cst_54 {dimension_numbers = #tpu.dot_dimension_numbers<[1], [0], [0], [1], [0, 0, 1, 1], [], []>} : vector<8x64xf32>, vector<64x512xf32>, vector<8x512xf32> -> vector<8x512xf32>
    %105 = vector.broadcast %14 : vector<1x512xf32> to vector<8x512xf32>
    %106 = arith.addf %104, %105 : vector<8x512xf32>
    %cst_55 = arith.constant 0.000000e+00 : f32
    %107 = vector.broadcast %cst_55 : f32 to vector<8x512xf32>
    %108 = arith.cmpf ogt, %106, %107 : vector<8x512xf32>
    %cst_56 = arith.constant 0.00999999977 : f32
    %109 = vector.broadcast %cst_56 : f32 to vector<8x512xf32>
    %110 = arith.mulf %109, %106 : vector<8x512xf32>
    %111 = arith.select %108, %106, %110 : vector<8x512xi1>, vector<8x512xf32>
    %112 = arith.maximumf %101, %111 : vector<8x512xf32>
    %c9 = arith.constant 9 : index
    %c0_57 = arith.constant 0 : index
    %c0_58 = arith.constant 0 : index
    %113 = vector.load %arg0[%c9, %c0_57, %c0_58] : memref<10x8x64xf32, #tpu.memory_space<vmem>>, vector<1x8x64xf32>
    %114 = vector.shape_cast %113 : vector<1x8x64xf32> to vector<8x64xf32>
    %cst_59 = arith.constant dense<0.000000e+00> : vector<8x512xf32>
    %115 = tpu.matmul %114, %8, %cst_59 {dimension_numbers = #tpu.dot_dimension_numbers<[1], [0], [0], [1], [0, 0, 1, 1], [], []>} : vector<8x64xf32>, vector<64x512xf32>, vector<8x512xf32> -> vector<8x512xf32>
    %116 = vector.broadcast %14 : vector<1x512xf32> to vector<8x512xf32>
    %117 = arith.addf %115, %116 : vector<8x512xf32>
    %cst_60 = arith.constant 0.000000e+00 : f32
    %118 = vector.broadcast %cst_60 : f32 to vector<8x512xf32>
    %119 = arith.cmpf ogt, %117, %118 : vector<8x512xf32>
    %cst_61 = arith.constant 0.00999999977 : f32
    %120 = vector.broadcast %cst_61 : f32 to vector<8x512xf32>
    %121 = arith.mulf %120, %117 : vector<8x512xf32>
    %122 = arith.select %119, %117, %121 : vector<8x512xi1>, vector<8x512xf32>
    %123 = arith.maximumf %112, %122 : vector<8x512xf32>
    %c0_62 = arith.constant 0 : index
    %c0_63 = arith.constant 0 : index
    %124 = vector.load %arg10[%c0_62, %c0_63] : memref<512x128xf32, #tpu.memory_space<vmem>>, vector<512x128xf32>
    %cst_64 = arith.constant dense<0.000000e+00> : vector<8x128xf32>
    %125 = tpu.matmul %123, %124, %cst_64 {dimension_numbers = #tpu.dot_dimension_numbers<[1], [0], [0], [1], [0, 0, 1, 1], [], []>} : vector<8x512xf32>, vector<512x128xf32>, vector<8x128xf32> -> vector<8x128xf32>
    %c0_65 = arith.constant 0 : index
    %c0_66 = arith.constant 0 : index
    %126 = vector.load %arg13[%c0_65, %c0_66] : memref<1x128xf32, #tpu.memory_space<vmem>>, vector<1x128xf32>
    %127 = vector.shape_cast %126 : vector<1x128xf32> to vector<1x128xf32>
    %128 = vector.broadcast %127 : vector<1x128xf32> to vector<8x128xf32>
    %129 = arith.addf %125, %128 : vector<8x128xf32>
    %130 = tpu.iota {dimensions = array<i32: 1>} : vector<64x32xi32>
    %c0_67 = arith.constant 0 : index
    %c0_68 = arith.constant 0 : index
    %131 = vector.load %arg1[%c0_67, %c0_68] : memref<64x1xi32, #tpu.memory_space<vmem>>, vector<64x1xi32>
    %132 = vector.broadcast %131 : vector<64x1xi32> to vector<64x32xi32>
    %133 = arith.cmpi eq, %132, %130 : vector<64x32xi32>
    %134 = arith.extui %133 : vector<64x32xi1> to vector<64x32xi32>
    %135 = arith.sitofp %134 : vector<64x32xi32> to vector<64x32xf32>
    %c0_69 = arith.constant 0 : index
    %c0_70 = arith.constant 0 : index
    %136 = vector.load %arg9[%c0_69, %c0_70] : memref<32x16xf32, #tpu.memory_space<vmem>>, vector<32x16xf32>
    %c0_71 = arith.constant 0 : index
    %c0_72 = arith.constant 0 : index
    %137 = vector.load %arg11[%c0_71, %c0_72] : memref<16x128xf32, #tpu.memory_space<vmem>>, vector<16x128xf32>
    %cst_73 = arith.constant dense<0.000000e+00> : vector<32x128xf32>
    %138 = tpu.matmul %136, %137, %cst_73 {dimension_numbers = #tpu.dot_dimension_numbers<[1], [0], [0], [1], [0, 0, 1, 1], [], []>} : vector<32x16xf32>, vector<16x128xf32>, vector<32x128xf32> -> vector<32x128xf32>
    %cst_74 = arith.constant dense<0.000000e+00> : vector<64x128xf32>
    %139 = tpu.matmul %135, %138, %cst_74 {dimension_numbers = #tpu.dot_dimension_numbers<[1], [0], [0], [1], [0, 0, 1, 1], [], []>} : vector<64x32xf32>, vector<32x128xf32>, vector<64x128xf32> -> vector<64x128xf32>
    %c0_75 = arith.constant 0 : index
    %c0_76 = arith.constant 0 : index
    %140 = vector.load %arg17[%c0_75, %c0_76] : memref<1x128xf32, #tpu.memory_space<vmem>>, vector<1x128xf32>
    %141 = vector.shape_cast %140 : vector<1x128xf32> to vector<1x128xf32>
    %142 = vector.broadcast %141 : vector<1x128xf32> to vector<8x128xf32>
    %c0_77 = arith.constant 0 : index
    %c0_78 = arith.constant 0 : index
    %143 = vector.load %arg20[%c0_77, %c0_78] : memref<1x50xf32, #tpu.memory_space<vmem>>, vector<1x50xf32>
    %144 = vector.shape_cast %143 : vector<1x50xf32> to vector<1x50xf32>
    %145 = vector.broadcast %144 : vector<1x50xf32> to vector<8x50xf32>
    %c0_79 = arith.constant 0 : index
    %c0_80 = arith.constant 0 : index
    %146 = vector.load %arg22[%c0_79, %c0_80] : memref<1x10xf32, #tpu.memory_space<vmem>>, vector<1x10xf32>
    %147 = vector.shape_cast %146 : vector<1x10xf32> to vector<1x10xf32>
    %148 = vector.broadcast %147 : vector<1x10xf32> to vector<8x10xf32>
    %149 = tpu.iota {dimensions = array<i32: 1>} : vector<8x128xi32>
    %c96_i32 = arith.constant 96 : i32
    %150 = vector.broadcast %c96_i32 : i32 to vector<8x128xi32>
    %151 = arith.cmpi sge, %149, %150 : vector<8x128xi32>
    %c0_81 = arith.constant 0 : index
    %c0_82 = arith.constant 0 : index
    %152 = vector.load %arg12[%c0_81, %c0_82] : memref<32x128xf32, #tpu.memory_space<vmem>>, vector<32x128xf32>
    %c0_83 = arith.constant 0 : index
    %c0_84 = arith.constant 0 : index
    %153 = vector.load %arg14[%c0_83, %c0_84] : memref<32x128xf32, #tpu.memory_space<vmem>>, vector<32x128xf32>
    %c0_85 = arith.constant 0 : index
    %c0_86 = arith.constant 0 : index
    %154 = vector.load %arg15[%c0_85, %c0_86] : memref<10x128xf32, #tpu.memory_space<vmem>>, vector<10x128xf32>
    %c0_87 = arith.constant 0 : index
    %c0_88 = arith.constant 0 : index
    %155 = vector.load %arg16[%c0_87, %c0_88] : memref<32x128xf32, #tpu.memory_space<vmem>>, vector<32x128xf32>
    %c0_89 = arith.constant 0 : index
    %c0_90 = arith.constant 0 : index
    %156 = vector.load %arg18[%c0_89, %c0_90] : memref<32x50xf32, #tpu.memory_space<vmem>>, vector<32x50xf32>
    %c0_91 = arith.constant 0 : index
    %c0_92 = arith.constant 0 : index
    %157 = vector.load %arg19[%c0_91, %c0_92] : memref<32x50xf32, #tpu.memory_space<vmem>>, vector<32x50xf32>
    %c0_93 = arith.constant 0 : index
    %c0_94 = arith.constant 0 : index
    %158 = vector.load %arg21[%c0_93, %c0_94] : memref<50x10xf32, #tpu.memory_space<vmem>>, vector<50x10xf32>
    %c0_95 = arith.constant 0 : index
    %c0_96 = arith.constant 0 : index
    %c0_97 = arith.constant 0 : index
    %159 = vector.load %arg2[%c0_95, %c0_96, %c0_97] : memref<2x8x64xf32, #tpu.memory_space<vmem>>, vector<1x8x64xf32>
    %160 = vector.shape_cast %159 : vector<1x8x64xf32> to vector<8x64xf32>
    %c1_98 = arith.constant 1 : index
    %c0_99 = arith.constant 0 : index
    %c0_100 = arith.constant 0 : index
    %161 = vector.load %arg2[%c1_98, %c0_99, %c0_100] : memref<2x8x64xf32, #tpu.memory_space<vmem>>, vector<1x8x64xf32>
    %162 = vector.shape_cast %161 : vector<1x8x64xf32> to vector<8x64xf32>
    %163 = vector.extract_strided_slice %160 {offsets = [0, 0], sizes = [8, 32], strides = [1, 1]} : vector<8x64xf32> to vector<8x32xf32>
    %164 = vector.extract_strided_slice %160 {offsets = [0, 32], sizes = [8, 32], strides = [1, 1]} : vector<8x64xf32> to vector<8x32xf32>
    %165 = vector.extract_strided_slice %162 {offsets = [0, 0], sizes = [8, 32], strides = [1, 1]} : vector<8x64xf32> to vector<8x32xf32>
    %166 = vector.extract_strided_slice %162 {offsets = [0, 32], sizes = [8, 32], strides = [1, 1]} : vector<8x64xf32> to vector<8x32xf32>
    %167 = vector.extract_strided_slice %139 {offsets = [0, 0], sizes = [8, 128], strides = [1, 1]} : vector<64x128xf32> to vector<8x128xf32>
    %168 = arith.addf %129, %167 : vector<8x128xf32>
    %cst_101 = arith.constant dense<0.000000e+00> : vector<8x128xf32>
    %169 = tpu.matmul %163, %152, %cst_101 {dimension_numbers = #tpu.dot_dimension_numbers<[1], [0], [0], [1], [0, 0, 1, 1], [], []>} : vector<8x32xf32>, vector<32x128xf32>, vector<8x128xf32> -> vector<8x128xf32>
    %170 = arith.addf %168, %169 : vector<8x128xf32>
    %171 = math.tanh %170 : vector<8x128xf32>
    %cst_102 = arith.constant 5.000000e-01 : f32
    %172 = vector.broadcast %cst_102 : f32 to vector<8x128xf32>
    %173 = arith.mulf %172, %170 : vector<8x128xf32>
    %174 = math.tanh %173 : vector<8x128xf32>
    %cst_103 = arith.constant 1.000000e+00 : f32
    %175 = vector.broadcast %cst_103 : f32 to vector<8x128xf32>
    %176 = arith.addf %174, %175 : vector<8x128xf32>
    %cst_104 = arith.constant 5.000000e-01 : f32
    %177 = vector.broadcast %cst_104 : f32 to vector<8x128xf32>
    %178 = arith.mulf %177, %176 : vector<8x128xf32>
    %179 = arith.select %151, %171, %178 : vector<8x128xi1>, vector<8x128xf32>
    %180 = vector.extract_strided_slice %179 {offsets = [0, 0], sizes = [8, 32], strides = [1, 1]} : vector<8x128xf32> to vector<8x32xf32>
    %181 = vector.extract_strided_slice %179 {offsets = [0, 32], sizes = [8, 32], strides = [1, 1]} : vector<8x128xf32> to vector<8x32xf32>
    %182 = vector.extract_strided_slice %179 {offsets = [0, 64], sizes = [8, 32], strides = [1, 1]} : vector<8x128xf32> to vector<8x32xf32>
    %183 = vector.extract_strided_slice %179 {offsets = [0, 96], sizes = [8, 32], strides = [1, 1]} : vector<8x128xf32> to vector<8x32xf32>
    %184 = arith.mulf %181, %164 : vector<8x32xf32>
    %185 = arith.mulf %180, %183 : vector<8x32xf32>
    %186 = arith.addf %184, %185 : vector<8x32xf32>
    %187 = math.tanh %186 : vector<8x32xf32>
    %188 = arith.mulf %182, %187 : vector<8x32xf32>
    %cst_105 = arith.constant dense<0.000000e+00> : vector<8x50xf32>
    %189 = tpu.matmul %188, %156, %cst_105 {dimension_numbers = #tpu.dot_dimension_numbers<[1], [0], [0], [1], [0, 0, 1, 1], [], []>} : vector<8x32xf32>, vector<32x50xf32>, vector<8x50xf32> -> vector<8x50xf32>
    %cst_106 = arith.constant dense<0.000000e+00> : vector<8x50xf32>
    %190 = tpu.matmul %186, %157, %cst_106 {dimension_numbers = #tpu.dot_dimension_numbers<[1], [0], [0], [1], [0, 0, 1, 1], [], []>} : vector<8x32xf32>, vector<32x50xf32>, vector<8x50xf32> -> vector<8x50xf32>
    %191 = arith.addf %189, %190 : vector<8x50xf32>
    %192 = arith.addf %191, %145 : vector<8x50xf32>
    %cst_107 = arith.constant 0.000000e+00 : f32
    %193 = vector.broadcast %cst_107 : f32 to vector<8x50xf32>
    %194 = arith.cmpf ogt, %192, %193 : vector<8x50xf32>
    %cst_108 = arith.constant 0.00999999977 : f32
    %195 = vector.broadcast %cst_108 : f32 to vector<8x50xf32>
    %196 = arith.mulf %195, %192 : vector<8x50xf32>
    %197 = arith.select %194, %192, %196 : vector<8x50xi1>, vector<8x50xf32>
    %cst_109 = arith.constant dense<0.000000e+00> : vector<8x10xf32>
    %198 = tpu.matmul %197, %158, %cst_109 {dimension_numbers = #tpu.dot_dimension_numbers<[1], [0], [0], [1], [0, 0, 1, 1], [], []>} : vector<8x50xf32>, vector<50x10xf32>, vector<8x10xf32> -> vector<8x10xf32>
    %199 = arith.addf %198, %148 : vector<8x10xf32>
    %cst_110 = arith.constant dense<0xFF800000> : vector<8xf32>
    %200 = vector.multi_reduction <maximumf>, %199, %cst_110 [1] : vector<8x10xf32> to vector<8xf32>
    %201 = vector.shape_cast %200 : vector<8xf32> to vector<8x1xf32>
    %202 = vector.broadcast %201 : vector<8x1xf32> to vector<8x10xf32>
    %203 = arith.subf %199, %202 : vector<8x10xf32>
    %204 = math.exp %203 : vector<8x10xf32>
    %cst_111 = arith.constant dense<0.000000e+00> : vector<8xf32>
    %205 = vector.multi_reduction <add>, %204, %cst_111 [1] : vector<8x10xf32> to vector<8xf32>
    %206 = vector.shape_cast %205 : vector<8xf32> to vector<8x1xf32>
    %207 = tpu.reciprocal %206 {approx = true} : vector<8x1xf32> -> vector<8x1xf32>
    %208 = vector.broadcast %207 : vector<8x1xf32> to vector<8x10xf32>
    %209 = arith.mulf %204, %208 : vector<8x10xf32>
    %cst_112 = arith.constant dense<0.000000e+00> : vector<8x128xf32>
    %210 = tpu.matmul %188, %153, %cst_112 {dimension_numbers = #tpu.dot_dimension_numbers<[1], [0], [0], [1], [0, 0, 1, 1], [], []>} : vector<8x32xf32>, vector<32x128xf32>, vector<8x128xf32> -> vector<8x128xf32>
    %cst_113 = arith.constant dense<0.000000e+00> : vector<8x128xf32>
    %211 = tpu.matmul %209, %154, %cst_113 {dimension_numbers = #tpu.dot_dimension_numbers<[1], [0], [0], [1], [0, 0, 1, 1], [], []>} : vector<8x10xf32>, vector<10x128xf32>, vector<8x128xf32> -> vector<8x128xf32>
    %212 = arith.addf %210, %211 : vector<8x128xf32>
    %cst_114 = arith.constant dense<0.000000e+00> : vector<8x128xf32>
    %213 = tpu.matmul %165, %155, %cst_114 {dimension_numbers = #tpu.dot_dimension_numbers<[1], [0], [0], [1], [0, 0, 1, 1], [], []>} : vector<8x32xf32>, vector<32x128xf32>, vector<8x128xf32> -> vector<8x128xf32>
    %214 = arith.addf %212, %213 : vector<8x128xf32>
    %215 = arith.addf %214, %142 : vector<8x128xf32>
    %216 = math.tanh %215 : vector<8x128xf32>
    %cst_115 = arith.constant 5.000000e-01 : f32
    %217 = vector.broadcast %cst_115 : f32 to vector<8x128xf32>
    %218 = arith.mulf %217, %215 : vector<8x128xf32>
    %219 = math.tanh %218 : vector<8x128xf32>
    %cst_116 = arith.constant 1.000000e+00 : f32
    %220 = vector.broadcast %cst_116 : f32 to vector<8x128xf32>
    %221 = arith.addf %219, %220 : vector<8x128xf32>
    %cst_117 = arith.constant 5.000000e-01 : f32
    %222 = vector.broadcast %cst_117 : f32 to vector<8x128xf32>
    %223 = arith.mulf %222, %221 : vector<8x128xf32>
    %224 = arith.select %151, %216, %223 : vector<8x128xi1>, vector<8x128xf32>
    %225 = vector.extract_strided_slice %224 {offsets = [0, 0], sizes = [8, 32], strides = [1, 1]} : vector<8x128xf32> to vector<8x32xf32>
    %226 = vector.extract_strided_slice %224 {offsets = [0, 32], sizes = [8, 32], strides = [1, 1]} : vector<8x128xf32> to vector<8x32xf32>
    %227 = vector.extract_strided_slice %224 {offsets = [0, 64], sizes = [8, 32], strides = [1, 1]} : vector<8x128xf32> to vector<8x32xf32>
    %228 = vector.extract_strided_slice %224 {offsets = [0, 96], sizes = [8, 32], strides = [1, 1]} : vector<8x128xf32> to vector<8x32xf32>
    %229 = arith.mulf %226, %166 : vector<8x32xf32>
    %230 = arith.mulf %225, %228 : vector<8x32xf32>
    %231 = arith.addf %229, %230 : vector<8x32xf32>
    %232 = math.tanh %231 : vector<8x32xf32>
    %233 = arith.mulf %227, %232 : vector<8x32xf32>
    %c0_118 = arith.constant 0 : index
    %c0_119 = arith.constant 0 : index
    %234 = vector.load %arg27[%c0_118, %c0_119] : memref<64x32xf32, #tpu.memory_space<vmem>>, vector<8x32xf32>
    tpu.vector_store %arg27[%c0_118, %c0_119], %231 {strides = array<i32>} : memref<64x32xf32, #tpu.memory_space<vmem>>, vector<8x32xf32>,
    %235 = vector.extract_strided_slice %139 {offsets = [8, 0], sizes = [8, 128], strides = [1, 1]} : vector<64x128xf32> to vector<8x128xf32>
    %236 = arith.addf %129, %235 : vector<8x128xf32>
    %cst_120 = arith.constant dense<0.000000e+00> : vector<8x128xf32>
    %237 = tpu.matmul %188, %152, %cst_120 {dimension_numbers = #tpu.dot_dimension_numbers<[1], [0], [0], [1], [0, 0, 1, 1], [], []>} : vector<8x32xf32>, vector<32x128xf32>, vector<8x128xf32> -> vector<8x128xf32>
    %238 = arith.addf %236, %237 : vector<8x128xf32>
    %239 = math.tanh %238 : vector<8x128xf32>
    %cst_121 = arith.constant 5.000000e-01 : f32
    %240 = vector.broadcast %cst_121 : f32 to vector<8x128xf32>
    %241 = arith.mulf %240, %238 : vector<8x128xf32>
    %242 = math.tanh %241 : vector<8x128xf32>
    %cst_122 = arith.constant 1.000000e+00 : f32
    %243 = vector.broadcast %cst_122 : f32 to vector<8x128xf32>
    %244 = arith.addf %242, %243 : vector<8x128xf32>
    %cst_123 = arith.constant 5.000000e-01 : f32
    %245 = vector.broadcast %cst_123 : f32 to vector<8x128xf32>
    %246 = arith.mulf %245, %244 : vector<8x128xf32>
    %247 = arith.select %151, %239, %246 : vector<8x128xi1>, vector<8x128xf32>
    %248 = vector.extract_strided_slice %247 {offsets = [0, 0], sizes = [8, 32], strides = [1, 1]} : vector<8x128xf32> to vector<8x32xf32>
    %249 = vector.extract_strided_slice %247 {offsets = [0, 32], sizes = [8, 32], strides = [1, 1]} : vector<8x128xf32> to vector<8x32xf32>
    %250 = vector.extract_strided_slice %247 {offsets = [0, 64], sizes = [8, 32], strides = [1, 1]} : vector<8x128xf32> to vector<8x32xf32>
    %251 = vector.extract_strided_slice %247 {offsets = [0, 96], sizes = [8, 32], strides = [1, 1]} : vector<8x128xf32> to vector<8x32xf32>
    %252 = arith.mulf %249, %186 : vector<8x32xf32>
    %253 = arith.mulf %248, %251 : vector<8x32xf32>
    %254 = arith.addf %252, %253 : vector<8x32xf32>
    %255 = math.tanh %254 : vector<8x32xf32>
    %256 = arith.mulf %250, %255 : vector<8x32xf32>
    %cst_124 = arith.constant dense<0.000000e+00> : vector<8x50xf32>
    %257 = tpu.matmul %256, %156, %cst_124 {dimension_numbers = #tpu.dot_dimension_numbers<[1], [0], [0], [1], [0, 0, 1, 1], [], []>} : vector<8x32xf32>, vector<32x50xf32>, vector<8x50xf32> -> vector<8x50xf32>
    %cst_125 = arith.constant dense<0.000000e+00> : vector<8x50xf32>
    %258 = tpu.matmul %254, %157, %cst_125 {dimension_numbers = #tpu.dot_dimension_numbers<[1], [0], [0], [1], [0, 0, 1, 1], [], []>} : vector<8x32xf32>, vector<32x50xf32>, vector<8x50xf32> -> vector<8x50xf32>
    %259 = arith.addf %257, %258 : vector<8x50xf32>
    %260 = arith.addf %259, %145 : vector<8x50xf32>
    %cst_126 = arith.constant 0.000000e+00 : f32
    %261 = vector.broadcast %cst_126 : f32 to vector<8x50xf32>
    %262 = arith.cmpf ogt, %260, %261 : vector<8x50xf32>
    %cst_127 = arith.constant 0.00999999977 : f32
    %263 = vector.broadcast %cst_127 : f32 to vector<8x50xf32>
    %264 = arith.mulf %263, %260 : vector<8x50xf32>
    %265 = arith.select %262, %260, %264 : vector<8x50xi1>, vector<8x50xf32>
    %cst_128 = arith.constant dense<0.000000e+00> : vector<8x10xf32>
    %266 = tpu.matmul %265, %158, %cst_128 {dimension_numbers = #tpu.dot_dimension_numbers<[1], [0], [0], [1], [0, 0, 1, 1], [], []>} : vector<8x50xf32>, vector<50x10xf32>, vector<8x10xf32> -> vector<8x10xf32>
    %267 = arith.addf %266, %148 : vector<8x10xf32>
    %cst_129 = arith.constant dense<0xFF800000> : vector<8xf32>
    %268 = vector.multi_reduction <maximumf>, %267, %cst_129 [1] : vector<8x10xf32> to vector<8xf32>
    %269 = vector.shape_cast %268 : vector<8xf32> to vector<8x1xf32>
    %270 = vector.broadcast %269 : vector<8x1xf32> to vector<8x10xf32>
    %271 = arith.subf %267, %270 : vector<8x10xf32>
    %272 = math.exp %271 : vector<8x10xf32>
    %cst_130 = arith.constant dense<0.000000e+00> : vector<8xf32>
    %273 = vector.multi_reduction <add>, %272, %cst_130 [1] : vector<8x10xf32> to vector<8xf32>
    %274 = vector.shape_cast %273 : vector<8xf32> to vector<8x1xf32>
    %275 = tpu.reciprocal %274 {approx = true} : vector<8x1xf32> -> vector<8x1xf32>
    %276 = vector.broadcast %275 : vector<8x1xf32> to vector<8x10xf32>
    %277 = arith.mulf %272, %276 : vector<8x10xf32>
    %cst_131 = arith.constant dense<0.000000e+00> : vector<8x128xf32>
    %278 = tpu.matmul %256, %153, %cst_131 {dimension_numbers = #tpu.dot_dimension_numbers<[1], [0], [0], [1], [0, 0, 1, 1], [], []>} : vector<8x32xf32>, vector<32x128xf32>, vector<8x128xf32> -> vector<8x128xf32>
    %cst_132 = arith.constant dense<0.000000e+00> : vector<8x128xf32>
    %279 = tpu.matmul %277, %154, %cst_132 {dimension_numbers = #tpu.dot_dimension_numbers<[1], [0], [0], [1], [0, 0, 1, 1], [], []>} : vector<8x10xf32>, vector<10x128xf32>, vector<8x128xf32> -> vector<8x128xf32>
    %280 = arith.addf %278, %279 : vector<8x128xf32>
    %cst_133 = arith.constant dense<0.000000e+00> : vector<8x128xf32>
    %281 = tpu.matmul %233, %155, %cst_133 {dimension_numbers = #tpu.dot_dimension_numbers<[1], [0], [0], [1], [0, 0, 1, 1], [], []>} : vector<8x32xf32>, vector<32x128xf32>, vector<8x128xf32> -> vector<8x128xf32>
    %282 = arith.addf %280, %281 : vector<8x128xf32>
    %283 = arith.addf %282, %142 : vector<8x128xf32>
    %284 = math.tanh %283 : vector<8x128xf32>
    %cst_134 = arith.constant 5.000000e-01 : f32
    %285 = vector.broadcast %cst_134 : f32 to vector<8x128xf32>
    %286 = arith.mulf %285, %283 : vector<8x128xf32>
    %287 = math.tanh %286 : vector<8x128xf32>
    %cst_135 = arith.constant 1.000000e+00 : f32
    %288 = vector.broadcast %cst_135 : f32 to vector<8x128xf32>
    %289 = arith.addf %287, %288 : vector<8x128xf32>
    %cst_136 = arith.constant 5.000000e-01 : f32
    %290 = vector.broadcast %cst_136 : f32 to vector<8x128xf32>
    %291 = arith.mulf %290, %289 : vector<8x128xf32>
    %292 = arith.select %151, %284, %291 : vector<8x128xi1>, vector<8x128xf32>
    %293 = vector.extract_strided_slice %292 {offsets = [0, 0], sizes = [8, 32], strides = [1, 1]} : vector<8x128xf32> to vector<8x32xf32>
    %294 = vector.extract_strided_slice %292 {offsets = [0, 32], sizes = [8, 32], strides = [1, 1]} : vector<8x128xf32> to vector<8x32xf32>
    %295 = vector.extract_strided_slice %292 {offsets = [0, 64], sizes = [8, 32], strides = [1, 1]} : vector<8x128xf32> to vector<8x32xf32>
    %296 = vector.extract_strided_slice %292 {offsets = [0, 96], sizes = [8, 32], strides = [1, 1]} : vector<8x128xf32> to vector<8x32xf32>
    %297 = arith.mulf %294, %231 : vector<8x32xf32>
    %298 = arith.mulf %293, %296 : vector<8x32xf32>
    %299 = arith.addf %297, %298 : vector<8x32xf32>
    %300 = math.tanh %299 : vector<8x32xf32>
    %301 = arith.mulf %295, %300 : vector<8x32xf32>
    %c8_137 = arith.constant 8 : index
    %c0_138 = arith.constant 0 : index
    %302 = vector.load %arg27[%c8_137, %c0_138] : memref<64x32xf32, #tpu.memory_space<vmem>>, vector<8x32xf32>
    tpu.vector_store %arg27[%c8_137, %c0_138], %299 {strides = array<i32>} : memref<64x32xf32, #tpu.memory_space<vmem>>, vector<8x32xf32>,
    %303 = vector.extract_strided_slice %139 {offsets = [16, 0], sizes = [8, 128], strides = [1, 1]} : vector<64x128xf32> to vector<8x128xf32>
    %304 = arith.addf %129, %303 : vector<8x128xf32>
    %cst_139 = arith.constant dense<0.000000e+00> : vector<8x128xf32>
    %305 = tpu.matmul %256, %152, %cst_139 {dimension_numbers = #tpu.dot_dimension_numbers<[1], [0], [0], [1], [0, 0, 1, 1], [], []>} : vector<8x32xf32>, vector<32x128xf32>, vector<8x128xf32> -> vector<8x128xf32>
    %306 = arith.addf %304, %305 : vector<8x128xf32>
    %307 = math.tanh %306 : vector<8x128xf32>
    %cst_140 = arith.constant 5.000000e-01 : f32
    %308 = vector.broadcast %cst_140 : f32 to vector<8x128xf32>
    %309 = arith.mulf %308, %306 : vector<8x128xf32>
    %310 = math.tanh %309 : vector<8x128xf32>
    %cst_141 = arith.constant 1.000000e+00 : f32
    %311 = vector.broadcast %cst_141 : f32 to vector<8x128xf32>
    %312 = arith.addf %310, %311 : vector<8x128xf32>
    %cst_142 = arith.constant 5.000000e-01 : f32
    %313 = vector.broadcast %cst_142 : f32 to vector<8x128xf32>
    %314 = arith.mulf %313, %312 : vector<8x128xf32>
    %315 = arith.select %151, %307, %314 : vector<8x128xi1>, vector<8x128xf32>
    %316 = vector.extract_strided_slice %315 {offsets = [0, 0], sizes = [8, 32], strides = [1, 1]} : vector<8x128xf32> to vector<8x32xf32>
    %317 = vector.extract_strided_slice %315 {offsets = [0, 32], sizes = [8, 32], strides = [1, 1]} : vector<8x128xf32> to vector<8x32xf32>
    %318 = vector.extract_strided_slice %315 {offsets = [0, 64], sizes = [8, 32], strides = [1, 1]} : vector<8x128xf32> to vector<8x32xf32>
    %319 = vector.extract_strided_slice %315 {offsets = [0, 96], sizes = [8, 32], strides = [1, 1]} : vector<8x128xf32> to vector<8x32xf32>
    %320 = arith.mulf %317, %254 : vector<8x32xf32>
    %321 = arith.mulf %316, %319 : vector<8x32xf32>
    %322 = arith.addf %320, %321 : vector<8x32xf32>
    %323 = math.tanh %322 : vector<8x32xf32>
    %324 = arith.mulf %318, %323 : vector<8x32xf32>
    %cst_143 = arith.constant dense<0.000000e+00> : vector<8x50xf32>
    %325 = tpu.matmul %324, %156, %cst_143 {dimension_numbers = #tpu.dot_dimension_numbers<[1], [0], [0], [1], [0, 0, 1, 1], [], []>} : vector<8x32xf32>, vector<32x50xf32>, vector<8x50xf32> -> vector<8x50xf32>
    %cst_144 = arith.constant dense<0.000000e+00> : vector<8x50xf32>
    %326 = tpu.matmul %322, %157, %cst_144 {dimension_numbers = #tpu.dot_dimension_numbers<[1], [0], [0], [1], [0, 0, 1, 1], [], []>} : vector<8x32xf32>, vector<32x50xf32>, vector<8x50xf32> -> vector<8x50xf32>
    %327 = arith.addf %325, %326 : vector<8x50xf32>
    %328 = arith.addf %327, %145 : vector<8x50xf32>
    %cst_145 = arith.constant 0.000000e+00 : f32
    %329 = vector.broadcast %cst_145 : f32 to vector<8x50xf32>
    %330 = arith.cmpf ogt, %328, %329 : vector<8x50xf32>
    %cst_146 = arith.constant 0.00999999977 : f32
    %331 = vector.broadcast %cst_146 : f32 to vector<8x50xf32>
    %332 = arith.mulf %331, %328 : vector<8x50xf32>
    %333 = arith.select %330, %328, %332 : vector<8x50xi1>, vector<8x50xf32>
    %cst_147 = arith.constant dense<0.000000e+00> : vector<8x10xf32>
    %334 = tpu.matmul %333, %158, %cst_147 {dimension_numbers = #tpu.dot_dimension_numbers<[1], [0], [0], [1], [0, 0, 1, 1], [], []>} : vector<8x50xf32>, vector<50x10xf32>, vector<8x10xf32> -> vector<8x10xf32>
    %335 = arith.addf %334, %148 : vector<8x10xf32>
    %cst_148 = arith.constant dense<0xFF800000> : vector<8xf32>
    %336 = vector.multi_reduction <maximumf>, %335, %cst_148 [1] : vector<8x10xf32> to vector<8xf32>
    %337 = vector.shape_cast %336 : vector<8xf32> to vector<8x1xf32>
    %338 = vector.broadcast %337 : vector<8x1xf32> to vector<8x10xf32>
    %339 = arith.subf %335, %338 : vector<8x10xf32>
    %340 = math.exp %339 : vector<8x10xf32>
    %cst_149 = arith.constant dense<0.000000e+00> : vector<8xf32>
    %341 = vector.multi_reduction <add>, %340, %cst_149 [1] : vector<8x10xf32> to vector<8xf32>
    %342 = vector.shape_cast %341 : vector<8xf32> to vector<8x1xf32>
    %343 = tpu.reciprocal %342 {approx = true} : vector<8x1xf32> -> vector<8x1xf32>
    %344 = vector.broadcast %343 : vector<8x1xf32> to vector<8x10xf32>
    %345 = arith.mulf %340, %344 : vector<8x10xf32>
    %cst_150 = arith.constant dense<0.000000e+00> : vector<8x128xf32>
    %346 = tpu.matmul %324, %153, %cst_150 {dimension_numbers = #tpu.dot_dimension_numbers<[1], [0], [0], [1], [0, 0, 1, 1], [], []>} : vector<8x32xf32>, vector<32x128xf32>, vector<8x128xf32> -> vector<8x128xf32>
    %cst_151 = arith.constant dense<0.000000e+00> : vector<8x128xf32>
    %347 = tpu.matmul %345, %154, %cst_151 {dimension_numbers = #tpu.dot_dimension_numbers<[1], [0], [0], [1], [0, 0, 1, 1], [], []>} : vector<8x10xf32>, vector<10x128xf32>, vector<8x128xf32> -> vector<8x128xf32>
    %348 = arith.addf %346, %347 : vector<8x128xf32>
    %cst_152 = arith.constant dense<0.000000e+00> : vector<8x128xf32>
    %349 = tpu.matmul %301, %155, %cst_152 {dimension_numbers = #tpu.dot_dimension_numbers<[1], [0], [0], [1], [0, 0, 1, 1], [], []>} : vector<8x32xf32>, vector<32x128xf32>, vector<8x128xf32> -> vector<8x128xf32>
    %350 = arith.addf %348, %349 : vector<8x128xf32>
    %351 = arith.addf %350, %142 : vector<8x128xf32>
    %352 = math.tanh %351 : vector<8x128xf32>
    %cst_153 = arith.constant 5.000000e-01 : f32
    %353 = vector.broadcast %cst_153 : f32 to vector<8x128xf32>
    %354 = arith.mulf %353, %351 : vector<8x128xf32>
    %355 = math.tanh %354 : vector<8x128xf32>
    %cst_154 = arith.constant 1.000000e+00 : f32
    %356 = vector.broadcast %cst_154 : f32 to vector<8x128xf32>
    %357 = arith.addf %355, %356 : vector<8x128xf32>
    %cst_155 = arith.constant 5.000000e-01 : f32
    %358 = vector.broadcast %cst_155 : f32 to vector<8x128xf32>
    %359 = arith.mulf %358, %357 : vector<8x128xf32>
    %360 = arith.select %151, %352, %359 : vector<8x128xi1>, vector<8x128xf32>
    %361 = vector.extract_strided_slice %360 {offsets = [0, 0], sizes = [8, 32], strides = [1, 1]} : vector<8x128xf32> to vector<8x32xf32>
    %362 = vector.extract_strided_slice %360 {offsets = [0, 32], sizes = [8, 32], strides = [1, 1]} : vector<8x128xf32> to vector<8x32xf32>
    %363 = vector.extract_strided_slice %360 {offsets = [0, 64], sizes = [8, 32], strides = [1, 1]} : vector<8x128xf32> to vector<8x32xf32>
    %364 = vector.extract_strided_slice %360 {offsets = [0, 96], sizes = [8, 32], strides = [1, 1]} : vector<8x128xf32> to vector<8x32xf32>
    %365 = arith.mulf %362, %299 : vector<8x32xf32>
    %366 = arith.mulf %361, %364 : vector<8x32xf32>
    %367 = arith.addf %365, %366 : vector<8x32xf32>
    %368 = math.tanh %367 : vector<8x32xf32>
    %369 = arith.mulf %363, %368 : vector<8x32xf32>
    %c16 = arith.constant 16 : index
    %c0_156 = arith.constant 0 : index
    %370 = vector.load %arg27[%c16, %c0_156] : memref<64x32xf32, #tpu.memory_space<vmem>>, vector<8x32xf32>
    tpu.vector_store %arg27[%c16, %c0_156], %367 {strides = array<i32>} : memref<64x32xf32, #tpu.memory_space<vmem>>, vector<8x32xf32>,
    %371 = vector.extract_strided_slice %139 {offsets = [24, 0], sizes = [8, 128], strides = [1, 1]} : vector<64x128xf32> to vector<8x128xf32>
    %372 = arith.addf %129, %371 : vector<8x128xf32>
    %cst_157 = arith.constant dense<0.000000e+00> : vector<8x128xf32>
    %373 = tpu.matmul %324, %152, %cst_157 {dimension_numbers = #tpu.dot_dimension_numbers<[1], [0], [0], [1], [0, 0, 1, 1], [], []>} : vector<8x32xf32>, vector<32x128xf32>, vector<8x128xf32> -> vector<8x128xf32>
    %374 = arith.addf %372, %373 : vector<8x128xf32>
    %375 = math.tanh %374 : vector<8x128xf32>
    %cst_158 = arith.constant 5.000000e-01 : f32
    %376 = vector.broadcast %cst_158 : f32 to vector<8x128xf32>
    %377 = arith.mulf %376, %374 : vector<8x128xf32>
    %378 = math.tanh %377 : vector<8x128xf32>
    %cst_159 = arith.constant 1.000000e+00 : f32
    %379 = vector.broadcast %cst_159 : f32 to vector<8x128xf32>
    %380 = arith.addf %378, %379 : vector<8x128xf32>
    %cst_160 = arith.constant 5.000000e-01 : f32
    %381 = vector.broadcast %cst_160 : f32 to vector<8x128xf32>
    %382 = arith.mulf %381, %380 : vector<8x128xf32>
    %383 = arith.select %151, %375, %382 : vector<8x128xi1>, vector<8x128xf32>
    %384 = vector.extract_strided_slice %383 {offsets = [0, 0], sizes = [8, 32], strides = [1, 1]} : vector<8x128xf32> to vector<8x32xf32>
    %385 = vector.extract_strided_slice %383 {offsets = [0, 32], sizes = [8, 32], strides = [1, 1]} : vector<8x128xf32> to vector<8x32xf32>
    %386 = vector.extract_strided_slice %383 {offsets = [0, 64], sizes = [8, 32], strides = [1, 1]} : vector<8x128xf32> to vector<8x32xf32>
    %387 = vector.extract_strided_slice %383 {offsets = [0, 96], sizes = [8, 32], strides = [1, 1]} : vector<8x128xf32> to vector<8x32xf32>
    %388 = arith.mulf %385, %322 : vector<8x32xf32>
    %389 = arith.mulf %384, %387 : vector<8x32xf32>
    %390 = arith.addf %388, %389 : vector<8x32xf32>
    %391 = math.tanh %390 : vector<8x32xf32>
    %392 = arith.mulf %386, %391 : vector<8x32xf32>
    %cst_161 = arith.constant dense<0.000000e+00> : vector<8x50xf32>
    %393 = tpu.matmul %392, %156, %cst_161 {dimension_numbers = #tpu.dot_dimension_numbers<[1], [0], [0], [1], [0, 0, 1, 1], [], []>} : vector<8x32xf32>, vector<32x50xf32>, vector<8x50xf32> -> vector<8x50xf32>
    %cst_162 = arith.constant dense<0.000000e+00> : vector<8x50xf32>
    %394 = tpu.matmul %390, %157, %cst_162 {dimension_numbers = #tpu.dot_dimension_numbers<[1], [0], [0], [1], [0, 0, 1, 1], [], []>} : vector<8x32xf32>, vector<32x50xf32>, vector<8x50xf32> -> vector<8x50xf32>
    %395 = arith.addf %393, %394 : vector<8x50xf32>
    %396 = arith.addf %395, %145 : vector<8x50xf32>
    %cst_163 = arith.constant 0.000000e+00 : f32
    %397 = vector.broadcast %cst_163 : f32 to vector<8x50xf32>
    %398 = arith.cmpf ogt, %396, %397 : vector<8x50xf32>
    %cst_164 = arith.constant 0.00999999977 : f32
    %399 = vector.broadcast %cst_164 : f32 to vector<8x50xf32>
    %400 = arith.mulf %399, %396 : vector<8x50xf32>
    %401 = arith.select %398, %396, %400 : vector<8x50xi1>, vector<8x50xf32>
    %cst_165 = arith.constant dense<0.000000e+00> : vector<8x10xf32>
    %402 = tpu.matmul %401, %158, %cst_165 {dimension_numbers = #tpu.dot_dimension_numbers<[1], [0], [0], [1], [0, 0, 1, 1], [], []>} : vector<8x50xf32>, vector<50x10xf32>, vector<8x10xf32> -> vector<8x10xf32>
    %403 = arith.addf %402, %148 : vector<8x10xf32>
    %cst_166 = arith.constant dense<0xFF800000> : vector<8xf32>
    %404 = vector.multi_reduction <maximumf>, %403, %cst_166 [1] : vector<8x10xf32> to vector<8xf32>
    %405 = vector.shape_cast %404 : vector<8xf32> to vector<8x1xf32>
    %406 = vector.broadcast %405 : vector<8x1xf32> to vector<8x10xf32>
    %407 = arith.subf %403, %406 : vector<8x10xf32>
    %408 = math.exp %407 : vector<8x10xf32>
    %cst_167 = arith.constant dense<0.000000e+00> : vector<8xf32>
    %409 = vector.multi_reduction <add>, %408, %cst_167 [1] : vector<8x10xf32> to vector<8xf32>
    %410 = vector.shape_cast %409 : vector<8xf32> to vector<8x1xf32>
    %411 = tpu.reciprocal %410 {approx = true} : vector<8x1xf32> -> vector<8x1xf32>
    %412 = vector.broadcast %411 : vector<8x1xf32> to vector<8x10xf32>
    %413 = arith.mulf %408, %412 : vector<8x10xf32>
    %cst_168 = arith.constant dense<0.000000e+00> : vector<8x128xf32>
    %414 = tpu.matmul %392, %153, %cst_168 {dimension_numbers = #tpu.dot_dimension_numbers<[1], [0], [0], [1], [0, 0, 1, 1], [], []>} : vector<8x32xf32>, vector<32x128xf32>, vector<8x128xf32> -> vector<8x128xf32>
    %cst_169 = arith.constant dense<0.000000e+00> : vector<8x128xf32>
    %415 = tpu.matmul %413, %154, %cst_169 {dimension_numbers = #tpu.dot_dimension_numbers<[1], [0], [0], [1], [0, 0, 1, 1], [], []>} : vector<8x10xf32>, vector<10x128xf32>, vector<8x128xf32> -> vector<8x128xf32>
    %416 = arith.addf %414, %415 : vector<8x128xf32>
    %cst_170 = arith.constant dense<0.000000e+00> : vector<8x128xf32>
    %417 = tpu.matmul %369, %155, %cst_170 {dimension_numbers = #tpu.dot_dimension_numbers<[1], [0], [0], [1], [0, 0, 1, 1], [], []>} : vector<8x32xf32>, vector<32x128xf32>, vector<8x128xf32> -> vector<8x128xf32>
    %418 = arith.addf %416, %417 : vector<8x128xf32>
    %419 = arith.addf %418, %142 : vector<8x128xf32>
    %420 = math.tanh %419 : vector<8x128xf32>
    %cst_171 = arith.constant 5.000000e-01 : f32
    %421 = vector.broadcast %cst_171 : f32 to vector<8x128xf32>
    %422 = arith.mulf %421, %419 : vector<8x128xf32>
    %423 = math.tanh %422 : vector<8x128xf32>
    %cst_172 = arith.constant 1.000000e+00 : f32
    %424 = vector.broadcast %cst_172 : f32 to vector<8x128xf32>
    %425 = arith.addf %423, %424 : vector<8x128xf32>
    %cst_173 = arith.constant 5.000000e-01 : f32
    %426 = vector.broadcast %cst_173 : f32 to vector<8x128xf32>
    %427 = arith.mulf %426, %425 : vector<8x128xf32>
    %428 = arith.select %151, %420, %427 : vector<8x128xi1>, vector<8x128xf32>
    %429 = vector.extract_strided_slice %428 {offsets = [0, 0], sizes = [8, 32], strides = [1, 1]} : vector<8x128xf32> to vector<8x32xf32>
    %430 = vector.extract_strided_slice %428 {offsets = [0, 32], sizes = [8, 32], strides = [1, 1]} : vector<8x128xf32> to vector<8x32xf32>
    %431 = vector.extract_strided_slice %428 {offsets = [0, 64], sizes = [8, 32], strides = [1, 1]} : vector<8x128xf32> to vector<8x32xf32>
    %432 = vector.extract_strided_slice %428 {offsets = [0, 96], sizes = [8, 32], strides = [1, 1]} : vector<8x128xf32> to vector<8x32xf32>
    %433 = arith.mulf %430, %367 : vector<8x32xf32>
    %434 = arith.mulf %429, %432 : vector<8x32xf32>
    %435 = arith.addf %433, %434 : vector<8x32xf32>
    %436 = math.tanh %435 : vector<8x32xf32>
    %437 = arith.mulf %431, %436 : vector<8x32xf32>
    %c24 = arith.constant 24 : index
    %c0_174 = arith.constant 0 : index
    %438 = vector.load %arg27[%c24, %c0_174] : memref<64x32xf32, #tpu.memory_space<vmem>>, vector<8x32xf32>
    tpu.vector_store %arg27[%c24, %c0_174], %435 {strides = array<i32>} : memref<64x32xf32, #tpu.memory_space<vmem>>, vector<8x32xf32>,
    %439 = vector.extract_strided_slice %139 {offsets = [32, 0], sizes = [8, 128], strides = [1, 1]} : vector<64x128xf32> to vector<8x128xf32>
    %440 = arith.addf %129, %439 : vector<8x128xf32>
    %cst_175 = arith.constant dense<0.000000e+00> : vector<8x128xf32>
    %441 = tpu.matmul %392, %152, %cst_175 {dimension_numbers = #tpu.dot_dimension_numbers<[1], [0], [0], [1], [0, 0, 1, 1], [], []>} : vector<8x32xf32>, vector<32x128xf32>, vector<8x128xf32> -> vector<8x128xf32>
    %442 = arith.addf %440, %441 : vector<8x128xf32>
    %443 = math.tanh %442 : vector<8x128xf32>
    %cst_176 = arith.constant 5.000000e-01 : f32
    %444 = vector.broadcast %cst_176 : f32 to vector<8x128xf32>
    %445 = arith.mulf %444, %442 : vector<8x128xf32>
    %446 = math.tanh %445 : vector<8x128xf32>
    %cst_177 = arith.constant 1.000000e+00 : f32
    %447 = vector.broadcast %cst_177 : f32 to vector<8x128xf32>
    %448 = arith.addf %446, %447 : vector<8x128xf32>
    %cst_178 = arith.constant 5.000000e-01 : f32
    %449 = vector.broadcast %cst_178 : f32 to vector<8x128xf32>
    %450 = arith.mulf %449, %448 : vector<8x128xf32>
    %451 = arith.select %151, %443, %450 : vector<8x128xi1>, vector<8x128xf32>
    %452 = vector.extract_strided_slice %451 {offsets = [0, 0], sizes = [8, 32], strides = [1, 1]} : vector<8x128xf32> to vector<8x32xf32>
    %453 = vector.extract_strided_slice %451 {offsets = [0, 32], sizes = [8, 32], strides = [1, 1]} : vector<8x128xf32> to vector<8x32xf32>
    %454 = vector.extract_strided_slice %451 {offsets = [0, 64], sizes = [8, 32], strides = [1, 1]} : vector<8x128xf32> to vector<8x32xf32>
    %455 = vector.extract_strided_slice %451 {offsets = [0, 96], sizes = [8, 32], strides = [1, 1]} : vector<8x128xf32> to vector<8x32xf32>
    %456 = arith.mulf %453, %390 : vector<8x32xf32>
    %457 = arith.mulf %452, %455 : vector<8x32xf32>
    %458 = arith.addf %456, %457 : vector<8x32xf32>
    %459 = math.tanh %458 : vector<8x32xf32>
    %460 = arith.mulf %454, %459 : vector<8x32xf32>
    %cst_179 = arith.constant dense<0.000000e+00> : vector<8x50xf32>
    %461 = tpu.matmul %460, %156, %cst_179 {dimension_numbers = #tpu.dot_dimension_numbers<[1], [0], [0], [1], [0, 0, 1, 1], [], []>} : vector<8x32xf32>, vector<32x50xf32>, vector<8x50xf32> -> vector<8x50xf32>
    %cst_180 = arith.constant dense<0.000000e+00> : vector<8x50xf32>
    %462 = tpu.matmul %458, %157, %cst_180 {dimension_numbers = #tpu.dot_dimension_numbers<[1], [0], [0], [1], [0, 0, 1, 1], [], []>} : vector<8x32xf32>, vector<32x50xf32>, vector<8x50xf32> -> vector<8x50xf32>
    %463 = arith.addf %461, %462 : vector<8x50xf32>
    %464 = arith.addf %463, %145 : vector<8x50xf32>
    %cst_181 = arith.constant 0.000000e+00 : f32
    %465 = vector.broadcast %cst_181 : f32 to vector<8x50xf32>
    %466 = arith.cmpf ogt, %464, %465 : vector<8x50xf32>
    %cst_182 = arith.constant 0.00999999977 : f32
    %467 = vector.broadcast %cst_182 : f32 to vector<8x50xf32>
    %468 = arith.mulf %467, %464 : vector<8x50xf32>
    %469 = arith.select %466, %464, %468 : vector<8x50xi1>, vector<8x50xf32>
    %cst_183 = arith.constant dense<0.000000e+00> : vector<8x10xf32>
    %470 = tpu.matmul %469, %158, %cst_183 {dimension_numbers = #tpu.dot_dimension_numbers<[1], [0], [0], [1], [0, 0, 1, 1], [], []>} : vector<8x50xf32>, vector<50x10xf32>, vector<8x10xf32> -> vector<8x10xf32>
    %471 = arith.addf %470, %148 : vector<8x10xf32>
    %cst_184 = arith.constant dense<0xFF800000> : vector<8xf32>
    %472 = vector.multi_reduction <maximumf>, %471, %cst_184 [1] : vector<8x10xf32> to vector<8xf32>
    %473 = vector.shape_cast %472 : vector<8xf32> to vector<8x1xf32>
    %474 = vector.broadcast %473 : vector<8x1xf32> to vector<8x10xf32>
    %475 = arith.subf %471, %474 : vector<8x10xf32>
    %476 = math.exp %475 : vector<8x10xf32>
    %cst_185 = arith.constant dense<0.000000e+00> : vector<8xf32>
    %477 = vector.multi_reduction <add>, %476, %cst_185 [1] : vector<8x10xf32> to vector<8xf32>
    %478 = vector.shape_cast %477 : vector<8xf32> to vector<8x1xf32>
    %479 = tpu.reciprocal %478 {approx = true} : vector<8x1xf32> -> vector<8x1xf32>
    %480 = vector.broadcast %479 : vector<8x1xf32> to vector<8x10xf32>
    %481 = arith.mulf %476, %480 : vector<8x10xf32>
    %cst_186 = arith.constant dense<0.000000e+00> : vector<8x128xf32>
    %482 = tpu.matmul %460, %153, %cst_186 {dimension_numbers = #tpu.dot_dimension_numbers<[1], [0], [0], [1], [0, 0, 1, 1], [], []>} : vector<8x32xf32>, vector<32x128xf32>, vector<8x128xf32> -> vector<8x128xf32>
    %cst_187 = arith.constant dense<0.000000e+00> : vector<8x128xf32>
    %483 = tpu.matmul %481, %154, %cst_187 {dimension_numbers = #tpu.dot_dimension_numbers<[1], [0], [0], [1], [0, 0, 1, 1], [], []>} : vector<8x10xf32>, vector<10x128xf32>, vector<8x128xf32> -> vector<8x128xf32>
    %484 = arith.addf %482, %483 : vector<8x128xf32>
    %cst_188 = arith.constant dense<0.000000e+00> : vector<8x128xf32>
    %485 = tpu.matmul %437, %155, %cst_188 {dimension_numbers = #tpu.dot_dimension_numbers<[1], [0], [0], [1], [0, 0, 1, 1], [], []>} : vector<8x32xf32>, vector<32x128xf32>, vector<8x128xf32> -> vector<8x128xf32>
    %486 = arith.addf %484, %485 : vector<8x128xf32>
    %487 = arith.addf %486, %142 : vector<8x128xf32>
    %488 = math.tanh %487 : vector<8x128xf32>
    %cst_189 = arith.constant 5.000000e-01 : f32
    %489 = vector.broadcast %cst_189 : f32 to vector<8x128xf32>
    %490 = arith.mulf %489, %487 : vector<8x128xf32>
    %491 = math.tanh %490 : vector<8x128xf32>
    %cst_190 = arith.constant 1.000000e+00 : f32
    %492 = vector.broadcast %cst_190 : f32 to vector<8x128xf32>
    %493 = arith.addf %491, %492 : vector<8x128xf32>
    %cst_191 = arith.constant 5.000000e-01 : f32
    %494 = vector.broadcast %cst_191 : f32 to vector<8x128xf32>
    %495 = arith.mulf %494, %493 : vector<8x128xf32>
    %496 = arith.select %151, %488, %495 : vector<8x128xi1>, vector<8x128xf32>
    %497 = vector.extract_strided_slice %496 {offsets = [0, 0], sizes = [8, 32], strides = [1, 1]} : vector<8x128xf32> to vector<8x32xf32>
    %498 = vector.extract_strided_slice %496 {offsets = [0, 32], sizes = [8, 32], strides = [1, 1]} : vector<8x128xf32> to vector<8x32xf32>
    %499 = vector.extract_strided_slice %496 {offsets = [0, 64], sizes = [8, 32], strides = [1, 1]} : vector<8x128xf32> to vector<8x32xf32>
    %500 = vector.extract_strided_slice %496 {offsets = [0, 96], sizes = [8, 32], strides = [1, 1]} : vector<8x128xf32> to vector<8x32xf32>
    %501 = arith.mulf %498, %435 : vector<8x32xf32>
    %502 = arith.mulf %497, %500 : vector<8x32xf32>
    %503 = arith.addf %501, %502 : vector<8x32xf32>
    %504 = math.tanh %503 : vector<8x32xf32>
    %505 = arith.mulf %499, %504 : vector<8x32xf32>
    %c32 = arith.constant 32 : index
    %c0_192 = arith.constant 0 : index
    %506 = vector.load %arg27[%c32, %c0_192] : memref<64x32xf32, #tpu.memory_space<vmem>>, vector<8x32xf32>
    tpu.vector_store %arg27[%c32, %c0_192], %503 {strides = array<i32>} : memref<64x32xf32, #tpu.memory_space<vmem>>, vector<8x32xf32>,
    %507 = vector.extract_strided_slice %139 {offsets = [40, 0], sizes = [8, 128], strides = [1, 1]} : vector<64x128xf32> to vector<8x128xf32>
    %508 = arith.addf %129, %507 : vector<8x128xf32>
    %cst_193 = arith.constant dense<0.000000e+00> : vector<8x128xf32>
    %509 = tpu.matmul %460, %152, %cst_193 {dimension_numbers = #tpu.dot_dimension_numbers<[1], [0], [0], [1], [0, 0, 1, 1], [], []>} : vector<8x32xf32>, vector<32x128xf32>, vector<8x128xf32> -> vector<8x128xf32>
    %510 = arith.addf %508, %509 : vector<8x128xf32>
    %511 = math.tanh %510 : vector<8x128xf32>
    %cst_194 = arith.constant 5.000000e-01 : f32
    %512 = vector.broadcast %cst_194 : f32 to vector<8x128xf32>
    %513 = arith.mulf %512, %510 : vector<8x128xf32>
    %514 = math.tanh %513 : vector<8x128xf32>
    %cst_195 = arith.constant 1.000000e+00 : f32
    %515 = vector.broadcast %cst_195 : f32 to vector<8x128xf32>
    %516 = arith.addf %514, %515 : vector<8x128xf32>
    %cst_196 = arith.constant 5.000000e-01 : f32
    %517 = vector.broadcast %cst_196 : f32 to vector<8x128xf32>
    %518 = arith.mulf %517, %516 : vector<8x128xf32>
    %519 = arith.select %151, %511, %518 : vector<8x128xi1>, vector<8x128xf32>
    %520 = vector.extract_strided_slice %519 {offsets = [0, 0], sizes = [8, 32], strides = [1, 1]} : vector<8x128xf32> to vector<8x32xf32>
    %521 = vector.extract_strided_slice %519 {offsets = [0, 32], sizes = [8, 32], strides = [1, 1]} : vector<8x128xf32> to vector<8x32xf32>
    %522 = vector.extract_strided_slice %519 {offsets = [0, 64], sizes = [8, 32], strides = [1, 1]} : vector<8x128xf32> to vector<8x32xf32>
    %523 = vector.extract_strided_slice %519 {offsets = [0, 96], sizes = [8, 32], strides = [1, 1]} : vector<8x128xf32> to vector<8x32xf32>
    %524 = arith.mulf %521, %458 : vector<8x32xf32>
    %525 = arith.mulf %520, %523 : vector<8x32xf32>
    %526 = arith.addf %524, %525 : vector<8x32xf32>
    %527 = math.tanh %526 : vector<8x32xf32>
    %528 = arith.mulf %522, %527 : vector<8x32xf32>
    %cst_197 = arith.constant dense<0.000000e+00> : vector<8x50xf32>
    %529 = tpu.matmul %528, %156, %cst_197 {dimension_numbers = #tpu.dot_dimension_numbers<[1], [0], [0], [1], [0, 0, 1, 1], [], []>} : vector<8x32xf32>, vector<32x50xf32>, vector<8x50xf32> -> vector<8x50xf32>
    %cst_198 = arith.constant dense<0.000000e+00> : vector<8x50xf32>
    %530 = tpu.matmul %526, %157, %cst_198 {dimension_numbers = #tpu.dot_dimension_numbers<[1], [0], [0], [1], [0, 0, 1, 1], [], []>} : vector<8x32xf32>, vector<32x50xf32>, vector<8x50xf32> -> vector<8x50xf32>
    %531 = arith.addf %529, %530 : vector<8x50xf32>
    %532 = arith.addf %531, %145 : vector<8x50xf32>
    %cst_199 = arith.constant 0.000000e+00 : f32
    %533 = vector.broadcast %cst_199 : f32 to vector<8x50xf32>
    %534 = arith.cmpf ogt, %532, %533 : vector<8x50xf32>
    %cst_200 = arith.constant 0.00999999977 : f32
    %535 = vector.broadcast %cst_200 : f32 to vector<8x50xf32>
    %536 = arith.mulf %535, %532 : vector<8x50xf32>
    %537 = arith.select %534, %532, %536 : vector<8x50xi1>, vector<8x50xf32>
    %cst_201 = arith.constant dense<0.000000e+00> : vector<8x10xf32>
    %538 = tpu.matmul %537, %158, %cst_201 {dimension_numbers = #tpu.dot_dimension_numbers<[1], [0], [0], [1], [0, 0, 1, 1], [], []>} : vector<8x50xf32>, vector<50x10xf32>, vector<8x10xf32> -> vector<8x10xf32>
    %539 = arith.addf %538, %148 : vector<8x10xf32>
    %cst_202 = arith.constant dense<0xFF800000> : vector<8xf32>
    %540 = vector.multi_reduction <maximumf>, %539, %cst_202 [1] : vector<8x10xf32> to vector<8xf32>
    %541 = vector.shape_cast %540 : vector<8xf32> to vector<8x1xf32>
    %542 = vector.broadcast %541 : vector<8x1xf32> to vector<8x10xf32>
    %543 = arith.subf %539, %542 : vector<8x10xf32>
    %544 = math.exp %543 : vector<8x10xf32>
    %cst_203 = arith.constant dense<0.000000e+00> : vector<8xf32>
    %545 = vector.multi_reduction <add>, %544, %cst_203 [1] : vector<8x10xf32> to vector<8xf32>
    %546 = vector.shape_cast %545 : vector<8xf32> to vector<8x1xf32>
    %547 = tpu.reciprocal %546 {approx = true} : vector<8x1xf32> -> vector<8x1xf32>
    %548 = vector.broadcast %547 : vector<8x1xf32> to vector<8x10xf32>
    %549 = arith.mulf %544, %548 : vector<8x10xf32>
    %cst_204 = arith.constant dense<0.000000e+00> : vector<8x128xf32>
    %550 = tpu.matmul %528, %153, %cst_204 {dimension_numbers = #tpu.dot_dimension_numbers<[1], [0], [0], [1], [0, 0, 1, 1], [], []>} : vector<8x32xf32>, vector<32x128xf32>, vector<8x128xf32> -> vector<8x128xf32>
    %cst_205 = arith.constant dense<0.000000e+00> : vector<8x128xf32>
    %551 = tpu.matmul %549, %154, %cst_205 {dimension_numbers = #tpu.dot_dimension_numbers<[1], [0], [0], [1], [0, 0, 1, 1], [], []>} : vector<8x10xf32>, vector<10x128xf32>, vector<8x128xf32> -> vector<8x128xf32>
    %552 = arith.addf %550, %551 : vector<8x128xf32>
    %cst_206 = arith.constant dense<0.000000e+00> : vector<8x128xf32>
    %553 = tpu.matmul %505, %155, %cst_206 {dimension_numbers = #tpu.dot_dimension_numbers<[1], [0], [0], [1], [0, 0, 1, 1], [], []>} : vector<8x32xf32>, vector<32x128xf32>, vector<8x128xf32> -> vector<8x128xf32>
    %554 = arith.addf %552, %553 : vector<8x128xf32>
    %555 = arith.addf %554, %142 : vector<8x128xf32>
    %556 = math.tanh %555 : vector<8x128xf32>
    %cst_207 = arith.constant 5.000000e-01 : f32
    %557 = vector.broadcast %cst_207 : f32 to vector<8x128xf32>
    %558 = arith.mulf %557, %555 : vector<8x128xf32>
    %559 = math.tanh %558 : vector<8x128xf32>
    %cst_208 = arith.constant 1.000000e+00 : f32
    %560 = vector.broadcast %cst_208 : f32 to vector<8x128xf32>
    %561 = arith.addf %559, %560 : vector<8x128xf32>
    %cst_209 = arith.constant 5.000000e-01 : f32
    %562 = vector.broadcast %cst_209 : f32 to vector<8x128xf32>
    %563 = arith.mulf %562, %561 : vector<8x128xf32>
    %564 = arith.select %151, %556, %563 : vector<8x128xi1>, vector<8x128xf32>
    %565 = vector.extract_strided_slice %564 {offsets = [0, 0], sizes = [8, 32], strides = [1, 1]} : vector<8x128xf32> to vector<8x32xf32>
    %566 = vector.extract_strided_slice %564 {offsets = [0, 32], sizes = [8, 32], strides = [1, 1]} : vector<8x128xf32> to vector<8x32xf32>
    %567 = vector.extract_strided_slice %564 {offsets = [0, 64], sizes = [8, 32], strides = [1, 1]} : vector<8x128xf32> to vector<8x32xf32>
    %568 = vector.extract_strided_slice %564 {offsets = [0, 96], sizes = [8, 32], strides = [1, 1]} : vector<8x128xf32> to vector<8x32xf32>
    %569 = arith.mulf %566, %503 : vector<8x32xf32>
    %570 = arith.mulf %565, %568 : vector<8x32xf32>
    %571 = arith.addf %569, %570 : vector<8x32xf32>
    %572 = math.tanh %571 : vector<8x32xf32>
    %573 = arith.mulf %567, %572 : vector<8x32xf32>
    %c40 = arith.constant 40 : index
    %c0_210 = arith.constant 0 : index
    %574 = vector.load %arg27[%c40, %c0_210] : memref<64x32xf32, #tpu.memory_space<vmem>>, vector<8x32xf32>
    tpu.vector_store %arg27[%c40, %c0_210], %571 {strides = array<i32>} : memref<64x32xf32, #tpu.memory_space<vmem>>, vector<8x32xf32>,
    %575 = vector.extract_strided_slice %139 {offsets = [48, 0], sizes = [8, 128], strides = [1, 1]} : vector<64x128xf32> to vector<8x128xf32>
    %576 = arith.addf %129, %575 : vector<8x128xf32>
    %cst_211 = arith.constant dense<0.000000e+00> : vector<8x128xf32>
    %577 = tpu.matmul %528, %152, %cst_211 {dimension_numbers = #tpu.dot_dimension_numbers<[1], [0], [0], [1], [0, 0, 1, 1], [], []>} : vector<8x32xf32>, vector<32x128xf32>, vector<8x128xf32> -> vector<8x128xf32>
    %578 = arith.addf %576, %577 : vector<8x128xf32>
    %579 = math.tanh %578 : vector<8x128xf32>
    %cst_212 = arith.constant 5.000000e-01 : f32
    %580 = vector.broadcast %cst_212 : f32 to vector<8x128xf32>
    %581 = arith.mulf %580, %578 : vector<8x128xf32>
    %582 = math.tanh %581 : vector<8x128xf32>
    %cst_213 = arith.constant 1.000000e+00 : f32
    %583 = vector.broadcast %cst_213 : f32 to vector<8x128xf32>
    %584 = arith.addf %582, %583 : vector<8x128xf32>
    %cst_214 = arith.constant 5.000000e-01 : f32
    %585 = vector.broadcast %cst_214 : f32 to vector<8x128xf32>
    %586 = arith.mulf %585, %584 : vector<8x128xf32>
    %587 = arith.select %151, %579, %586 : vector<8x128xi1>, vector<8x128xf32>
    %588 = vector.extract_strided_slice %587 {offsets = [0, 0], sizes = [8, 32], strides = [1, 1]} : vector<8x128xf32> to vector<8x32xf32>
    %589 = vector.extract_strided_slice %587 {offsets = [0, 32], sizes = [8, 32], strides = [1, 1]} : vector<8x128xf32> to vector<8x32xf32>
    %590 = vector.extract_strided_slice %587 {offsets = [0, 64], sizes = [8, 32], strides = [1, 1]} : vector<8x128xf32> to vector<8x32xf32>
    %591 = vector.extract_strided_slice %587 {offsets = [0, 96], sizes = [8, 32], strides = [1, 1]} : vector<8x128xf32> to vector<8x32xf32>
    %592 = arith.mulf %589, %526 : vector<8x32xf32>
    %593 = arith.mulf %588, %591 : vector<8x32xf32>
    %594 = arith.addf %592, %593 : vector<8x32xf32>
    %595 = math.tanh %594 : vector<8x32xf32>
    %596 = arith.mulf %590, %595 : vector<8x32xf32>
    %cst_215 = arith.constant dense<0.000000e+00> : vector<8x50xf32>
    %597 = tpu.matmul %596, %156, %cst_215 {dimension_numbers = #tpu.dot_dimension_numbers<[1], [0], [0], [1], [0, 0, 1, 1], [], []>} : vector<8x32xf32>, vector<32x50xf32>, vector<8x50xf32> -> vector<8x50xf32>
    %cst_216 = arith.constant dense<0.000000e+00> : vector<8x50xf32>
    %598 = tpu.matmul %594, %157, %cst_216 {dimension_numbers = #tpu.dot_dimension_numbers<[1], [0], [0], [1], [0, 0, 1, 1], [], []>} : vector<8x32xf32>, vector<32x50xf32>, vector<8x50xf32> -> vector<8x50xf32>
    %599 = arith.addf %597, %598 : vector<8x50xf32>
    %600 = arith.addf %599, %145 : vector<8x50xf32>
    %cst_217 = arith.constant 0.000000e+00 : f32
    %601 = vector.broadcast %cst_217 : f32 to vector<8x50xf32>
    %602 = arith.cmpf ogt, %600, %601 : vector<8x50xf32>
    %cst_218 = arith.constant 0.00999999977 : f32
    %603 = vector.broadcast %cst_218 : f32 to vector<8x50xf32>
    %604 = arith.mulf %603, %600 : vector<8x50xf32>
    %605 = arith.select %602, %600, %604 : vector<8x50xi1>, vector<8x50xf32>
    %cst_219 = arith.constant dense<0.000000e+00> : vector<8x10xf32>
    %606 = tpu.matmul %605, %158, %cst_219 {dimension_numbers = #tpu.dot_dimension_numbers<[1], [0], [0], [1], [0, 0, 1, 1], [], []>} : vector<8x50xf32>, vector<50x10xf32>, vector<8x10xf32> -> vector<8x10xf32>
    %607 = arith.addf %606, %148 : vector<8x10xf32>
    %cst_220 = arith.constant dense<0xFF800000> : vector<8xf32>
    %608 = vector.multi_reduction <maximumf>, %607, %cst_220 [1] : vector<8x10xf32> to vector<8xf32>
    %609 = vector.shape_cast %608 : vector<8xf32> to vector<8x1xf32>
    %610 = vector.broadcast %609 : vector<8x1xf32> to vector<8x10xf32>
    %611 = arith.subf %607, %610 : vector<8x10xf32>
    %612 = math.exp %611 : vector<8x10xf32>
    %cst_221 = arith.constant dense<0.000000e+00> : vector<8xf32>
    %613 = vector.multi_reduction <add>, %612, %cst_221 [1] : vector<8x10xf32> to vector<8xf32>
    %614 = vector.shape_cast %613 : vector<8xf32> to vector<8x1xf32>
    %615 = tpu.reciprocal %614 {approx = true} : vector<8x1xf32> -> vector<8x1xf32>
    %616 = vector.broadcast %615 : vector<8x1xf32> to vector<8x10xf32>
    %617 = arith.mulf %612, %616 : vector<8x10xf32>
    %cst_222 = arith.constant dense<0.000000e+00> : vector<8x128xf32>
    %618 = tpu.matmul %596, %153, %cst_222 {dimension_numbers = #tpu.dot_dimension_numbers<[1], [0], [0], [1], [0, 0, 1, 1], [], []>} : vector<8x32xf32>, vector<32x128xf32>, vector<8x128xf32> -> vector<8x128xf32>
    %cst_223 = arith.constant dense<0.000000e+00> : vector<8x128xf32>
    %619 = tpu.matmul %617, %154, %cst_223 {dimension_numbers = #tpu.dot_dimension_numbers<[1], [0], [0], [1], [0, 0, 1, 1], [], []>} : vector<8x10xf32>, vector<10x128xf32>, vector<8x128xf32> -> vector<8x128xf32>
    %620 = arith.addf %618, %619 : vector<8x128xf32>
    %cst_224 = arith.constant dense<0.000000e+00> : vector<8x128xf32>
    %621 = tpu.matmul %573, %155, %cst_224 {dimension_numbers = #tpu.dot_dimension_numbers<[1], [0], [0], [1], [0, 0, 1, 1], [], []>} : vector<8x32xf32>, vector<32x128xf32>, vector<8x128xf32> -> vector<8x128xf32>
    %622 = arith.addf %620, %621 : vector<8x128xf32>
    %623 = arith.addf %622, %142 : vector<8x128xf32>
    %624 = math.tanh %623 : vector<8x128xf32>
    %cst_225 = arith.constant 5.000000e-01 : f32
    %625 = vector.broadcast %cst_225 : f32 to vector<8x128xf32>
    %626 = arith.mulf %625, %623 : vector<8x128xf32>
    %627 = math.tanh %626 : vector<8x128xf32>
    %cst_226 = arith.constant 1.000000e+00 : f32
    %628 = vector.broadcast %cst_226 : f32 to vector<8x128xf32>
    %629 = arith.addf %627, %628 : vector<8x128xf32>
    %cst_227 = arith.constant 5.000000e-01 : f32
    %630 = vector.broadcast %cst_227 : f32 to vector<8x128xf32>
    %631 = arith.mulf %630, %629 : vector<8x128xf32>
    %632 = arith.select %151, %624, %631 : vector<8x128xi1>, vector<8x128xf32>
    %633 = vector.extract_strided_slice %632 {offsets = [0, 0], sizes = [8, 32], strides = [1, 1]} : vector<8x128xf32> to vector<8x32xf32>
    %634 = vector.extract_strided_slice %632 {offsets = [0, 32], sizes = [8, 32], strides = [1, 1]} : vector<8x128xf32> to vector<8x32xf32>
    %635 = vector.extract_strided_slice %632 {offsets = [0, 64], sizes = [8, 32], strides = [1, 1]} : vector<8x128xf32> to vector<8x32xf32>
    %636 = vector.extract_strided_slice %632 {offsets = [0, 96], sizes = [8, 32], strides = [1, 1]} : vector<8x128xf32> to vector<8x32xf32>
    %637 = arith.mulf %634, %571 : vector<8x32xf32>
    %638 = arith.mulf %633, %636 : vector<8x32xf32>
    %639 = arith.addf %637, %638 : vector<8x32xf32>
    %640 = math.tanh %639 : vector<8x32xf32>
    %641 = arith.mulf %635, %640 : vector<8x32xf32>
    %c48 = arith.constant 48 : index
    %c0_228 = arith.constant 0 : index
    %642 = vector.load %arg27[%c48, %c0_228] : memref<64x32xf32, #tpu.memory_space<vmem>>, vector<8x32xf32>
    tpu.vector_store %arg27[%c48, %c0_228], %639 {strides = array<i32>} : memref<64x32xf32, #tpu.memory_space<vmem>>, vector<8x32xf32>,
    %643 = vector.extract_strided_slice %139 {offsets = [56, 0], sizes = [8, 128], strides = [1, 1]} : vector<64x128xf32> to vector<8x128xf32>
    %644 = arith.addf %129, %643 : vector<8x128xf32>
    %cst_229 = arith.constant dense<0.000000e+00> : vector<8x128xf32>
    %645 = tpu.matmul %596, %152, %cst_229 {dimension_numbers = #tpu.dot_dimension_numbers<[1], [0], [0], [1], [0, 0, 1, 1], [], []>} : vector<8x32xf32>, vector<32x128xf32>, vector<8x128xf32> -> vector<8x128xf32>
    %646 = arith.addf %644, %645 : vector<8x128xf32>
    %647 = math.tanh %646 : vector<8x128xf32>
    %cst_230 = arith.constant 5.000000e-01 : f32
    %648 = vector.broadcast %cst_230 : f32 to vector<8x128xf32>
    %649 = arith.mulf %648, %646 : vector<8x128xf32>
    %650 = math.tanh %649 : vector<8x128xf32>
    %cst_231 = arith.constant 1.000000e+00 : f32
    %651 = vector.broadcast %cst_231 : f32 to vector<8x128xf32>
    %652 = arith.addf %650, %651 : vector<8x128xf32>
    %cst_232 = arith.constant 5.000000e-01 : f32
    %653 = vector.broadcast %cst_232 : f32 to vector<8x128xf32>
    %654 = arith.mulf %653, %652 : vector<8x128xf32>
    %655 = arith.select %151, %647, %654 : vector<8x128xi1>, vector<8x128xf32>
    %656 = vector.extract_strided_slice %655 {offsets = [0, 0], sizes = [8, 32], strides = [1, 1]} : vector<8x128xf32> to vector<8x32xf32>
    %657 = vector.extract_strided_slice %655 {offsets = [0, 32], sizes = [8, 32], strides = [1, 1]} : vector<8x128xf32> to vector<8x32xf32>
    %658 = vector.extract_strided_slice %655 {offsets = [0, 64], sizes = [8, 32], strides = [1, 1]} : vector<8x128xf32> to vector<8x32xf32>
    %659 = vector.extract_strided_slice %655 {offsets = [0, 96], sizes = [8, 32], strides = [1, 1]} : vector<8x128xf32> to vector<8x32xf32>
    %660 = arith.mulf %657, %594 : vector<8x32xf32>
    %661 = arith.mulf %656, %659 : vector<8x32xf32>
    %662 = arith.addf %660, %661 : vector<8x32xf32>
    %663 = math.tanh %662 : vector<8x32xf32>
    %664 = arith.mulf %658, %663 : vector<8x32xf32>
    %cst_233 = arith.constant dense<0.000000e+00> : vector<8x50xf32>
    %665 = tpu.matmul %664, %156, %cst_233 {dimension_numbers = #tpu.dot_dimension_numbers<[1], [0], [0], [1], [0, 0, 1, 1], [], []>} : vector<8x32xf32>, vector<32x50xf32>, vector<8x50xf32> -> vector<8x50xf32>
    %cst_234 = arith.constant dense<0.000000e+00> : vector<8x50xf32>
    %666 = tpu.matmul %662, %157, %cst_234 {dimension_numbers = #tpu.dot_dimension_numbers<[1], [0], [0], [1], [0, 0, 1, 1], [], []>} : vector<8x32xf32>, vector<32x50xf32>, vector<8x50xf32> -> vector<8x50xf32>
    %667 = arith.addf %665, %666 : vector<8x50xf32>
    %668 = arith.addf %667, %145 : vector<8x50xf32>
    %cst_235 = arith.constant 0.000000e+00 : f32
    %669 = vector.broadcast %cst_235 : f32 to vector<8x50xf32>
    %670 = arith.cmpf ogt, %668, %669 : vector<8x50xf32>
    %cst_236 = arith.constant 0.00999999977 : f32
    %671 = vector.broadcast %cst_236 : f32 to vector<8x50xf32>
    %672 = arith.mulf %671, %668 : vector<8x50xf32>
    %673 = arith.select %670, %668, %672 : vector<8x50xi1>, vector<8x50xf32>
    %cst_237 = arith.constant dense<0.000000e+00> : vector<8x10xf32>
    %674 = tpu.matmul %673, %158, %cst_237 {dimension_numbers = #tpu.dot_dimension_numbers<[1], [0], [0], [1], [0, 0, 1, 1], [], []>} : vector<8x50xf32>, vector<50x10xf32>, vector<8x10xf32> -> vector<8x10xf32>
    %675 = arith.addf %674, %148 : vector<8x10xf32>
    %cst_238 = arith.constant dense<0xFF800000> : vector<8xf32>
    %676 = vector.multi_reduction <maximumf>, %675, %cst_238 [1] : vector<8x10xf32> to vector<8xf32>
    %677 = vector.shape_cast %676 : vector<8xf32> to vector<8x1xf32>
    %678 = vector.broadcast %677 : vector<8x1xf32> to vector<8x10xf32>
    %679 = arith.subf %675, %678 : vector<8x10xf32>
    %680 = math.exp %679 : vector<8x10xf32>
    %cst_239 = arith.constant dense<0.000000e+00> : vector<8xf32>
    %681 = vector.multi_reduction <add>, %680, %cst_239 [1] : vector<8x10xf32> to vector<8xf32>
    %682 = vector.shape_cast %681 : vector<8xf32> to vector<8x1xf32>
    %683 = tpu.reciprocal %682 {approx = true} : vector<8x1xf32> -> vector<8x1xf32>
    %684 = vector.broadcast %683 : vector<8x1xf32> to vector<8x10xf32>
    %685 = arith.mulf %680, %684 : vector<8x10xf32>
    %cst_240 = arith.constant dense<0.000000e+00> : vector<8x128xf32>
    %686 = tpu.matmul %664, %153, %cst_240 {dimension_numbers = #tpu.dot_dimension_numbers<[1], [0], [0], [1], [0, 0, 1, 1], [], []>} : vector<8x32xf32>, vector<32x128xf32>, vector<8x128xf32> -> vector<8x128xf32>
    %cst_241 = arith.constant dense<0.000000e+00> : vector<8x128xf32>
    %687 = tpu.matmul %685, %154, %cst_241 {dimension_numbers = #tpu.dot_dimension_numbers<[1], [0], [0], [1], [0, 0, 1, 1], [], []>} : vector<8x10xf32>, vector<10x128xf32>, vector<8x128xf32> -> vector<8x128xf32>
    %688 = arith.addf %686, %687 : vector<8x128xf32>
    %cst_242 = arith.constant dense<0.000000e+00> : vector<8x128xf32>
    %689 = tpu.matmul %641, %155, %cst_242 {dimension_numbers = #tpu.dot_dimension_numbers<[1], [0], [0], [1], [0, 0, 1, 1], [], []>} : vector<8x32xf32>, vector<32x128xf32>, vector<8x128xf32> -> vector<8x128xf32>
    %690 = arith.addf %688, %689 : vector<8x128xf32>
    %691 = arith.addf %690, %142 : vector<8x128xf32>
    %692 = math.tanh %691 : vector<8x128xf32>
    %cst_243 = arith.constant 5.000000e-01 : f32
    %693 = vector.broadcast %cst_243 : f32 to vector<8x128xf32>
    %694 = arith.mulf %693, %691 : vector<8x128xf32>
    %695 = math.tanh %694 : vector<8x128xf32>
    %cst_244 = arith.constant 1.000000e+00 : f32
    %696 = vector.broadcast %cst_244 : f32 to vector<8x128xf32>
    %697 = arith.addf %695, %696 : vector<8x128xf32>
    %cst_245 = arith.constant 5.000000e-01 : f32
    %698 = vector.broadcast %cst_245 : f32 to vector<8x128xf32>
    %699 = arith.mulf %698, %697 : vector<8x128xf32>
    %700 = arith.select %151, %692, %699 : vector<8x128xi1>, vector<8x128xf32>
    %701 = vector.extract_strided_slice %700 {offsets = [0, 0], sizes = [8, 32], strides = [1, 1]} : vector<8x128xf32> to vector<8x32xf32>
    %702 = vector.extract_strided_slice %700 {offsets = [0, 32], sizes = [8, 32], strides = [1, 1]} : vector<8x128xf32> to vector<8x32xf32>
    %703 = vector.extract_strided_slice %700 {offsets = [0, 64], sizes = [8, 32], strides = [1, 1]} : vector<8x128xf32> to vector<8x32xf32>
    %704 = vector.extract_strided_slice %700 {offsets = [0, 96], sizes = [8, 32], strides = [1, 1]} : vector<8x128xf32> to vector<8x32xf32>
    %705 = arith.mulf %702, %639 : vector<8x32xf32>
    %706 = arith.mulf %701, %704 : vector<8x32xf32>
    %707 = arith.addf %705, %706 : vector<8x32xf32>
    %708 = math.tanh %707 : vector<8x32xf32>
    %709 = arith.mulf %703, %708 : vector<8x32xf32>
    %c56 = arith.constant 56 : index
    %c0_246 = arith.constant 0 : index
    %710 = vector.load %arg27[%c56, %c0_246] : memref<64x32xf32, #tpu.memory_space<vmem>>, vector<8x32xf32>
    tpu.vector_store %arg27[%c56, %c0_246], %707 {strides = array<i32>} : memref<64x32xf32, #tpu.memory_space<vmem>>, vector<8x32xf32>,
    %c0_247 = arith.constant 0 : index
    %c0_248 = arith.constant 0 : index
    %711 = vector.load %arg27[%c0_247, %c0_248] : memref<64x32xf32, #tpu.memory_space<vmem>>, vector<64x32xf32>
    %c0_249 = arith.constant 0 : index
    %c0_250 = arith.constant 0 : index
    %712 = vector.load %arg23[%c0_249, %c0_250] : memref<32x32xf32, #tpu.memory_space<vmem>>, vector<32x32xf32>
    %cst_251 = arith.constant dense<0.000000e+00> : vector<64x32xf32>
    %713 = tpu.matmul %711, %712, %cst_251 {dimension_numbers = #tpu.dot_dimension_numbers<[1], [0], [0], [1], [0, 0, 1, 1], [], []>} : vector<64x32xf32>, vector<32x32xf32>, vector<64x32xf32> -> vector<64x32xf32>
    %c0_252 = arith.constant 0 : index
    %c0_253 = arith.constant 0 : index
    %714 = vector.load %arg24[%c0_252, %c0_253] : memref<1x32xf32, #tpu.memory_space<vmem>>, vector<1x32xf32>
    %715 = vector.broadcast %714 : vector<1x32xf32> to vector<64x32xf32>
    %716 = arith.addf %713, %715 : vector<64x32xf32>
    %c0_254 = arith.constant 0 : index
    %c0_255 = arith.constant 0 : index
    %717 = vector.load %arg25[%c0_254, %c0_255] : memref<64x32xf32, #tpu.memory_space<vmem>>, vector<64x32xf32>
    tpu.vector_store %arg25[%c0_254, %c0_255], %716 {strides = array<i32>} : memref<64x32xf32, #tpu.memory_space<vmem>>, vector<64x32xf32>,
    %718 = tpu.concatenate %664, %662 in 1 : vector<8x32xf32>, vector<8x32xf32> -> vector<8x64xf32>
    %c0_256 = arith.constant 0 : index
    %c0_257 = arith.constant 0 : index
    %c0_258 = arith.constant 0 : index
    %719 = vector.load %arg26[%c0_256, %c0_257, %c0_258] : memref<2x8x64xf32, #tpu.memory_space<vmem>>, vector<1x8x64xf32>
    %720 = vector.shape_cast %719 : vector<1x8x64xf32> to vector<8x64xf32>
    %721 = vector.shape_cast %718 : vector<8x64xf32> to vector<1x8x64xf32>
    tpu.vector_store %arg26[%c0_256, %c0_257, %c0_258], %721 {strides = array<i32>} : memref<2x8x64xf32, #tpu.memory_space<vmem>>, vector<1x8x64xf32>,
    %722 = tpu.concatenate %709, %707 in 1 : vector<8x32xf32>, vector<8x32xf32> -> vector<8x64xf32>
    %c1_259 = arith.constant 1 : index
    %c0_260 = arith.constant 0 : index
    %c0_261 = arith.constant 0 : index
    %723 = vector.load %arg26[%c1_259, %c0_260, %c0_261] : memref<2x8x64xf32, #tpu.memory_space<vmem>>, vector<1x8x64xf32>
    %724 = vector.shape_cast %723 : vector<1x8x64xf32> to vector<8x64xf32>
    %725 = vector.shape_cast %722 : vector<8x64xf32> to vector<1x8x64xf32>
    tpu.vector_store %arg26[%c1_259, %c0_260, %c0_261], %725 {strides = array<i32>} : memref<2x8x64xf32, #tpu.memory_space<vmem>>, vector<1x8x64xf32>,
    return
  }
}

</mosaic_0001>

<llo_original>
// kernel: image_caption_forward.1
$region0: #{image_caption_forward.1}
  #allocation0 [shape = 'u32[]', space=smem, size = 0x4, offset = 0x4, fixed_abs, tag = 'smem constant byte address 0x4 - core index']
  #allocation1 [shape = 'u32[72,128]{1,0:T(1,128)}', space=vmem, size = 0x9000, scoped, tag = 'internal scratch']
  #allocation2 [shape = 'f32[64,32]{1,0:T(8,128)}', space=vmem, size = 0x8000, scoped, tag = 'scratch operand']
  %s0 = inlined_call_operand.vmem [shape: f32[10,8,64], index: 0, kind: input, shape index: {}]
  %s1 = inlined_call_operand.vmem [shape: s32[64,1], index: 1, kind: input, shape index: {}]
  %s2 = inlined_call_operand.vmem [shape: f32[2,8,64], index: 2, kind: input, shape index: {}]
  %s3 = inlined_call_operand.hbm [shape: f32[64,512], index: 3, kind: input, shape index: {}]
  %s4 = inlined_call_operand.vmem [shape: f32[1,512], index: 4, kind: input, shape index: {}]
  %s5 = inlined_call_operand.vmem [shape: f32[1,512], index: 5, kind: input, shape index: {}]
  %s6 = inlined_call_operand.vmem [shape: f32[1,512], index: 6, kind: input, shape index: {}]
  %s7 = inlined_call_operand.vmem [shape: f32[1,512], index: 7, kind: input, shape index: {}]
  %s8 = inlined_call_operand.vmem [shape: f32[1,512], index: 8, kind: input, shape index: {}]
  %s9 = inlined_call_operand.vmem [shape: f32[32,16], index: 9, kind: input, shape index: {}]
  %s10 = inlined_call_operand.hbm [shape: f32[512,128], index: 10, kind: input, shape index: {}]
  %s11 = inlined_call_operand.vmem [shape: f32[16,128], index: 11, kind: input, shape index: {}]
  %s12 = inlined_call_operand.vmem [shape: f32[32,128], index: 12, kind: input, shape index: {}]
  %s13 = inlined_call_operand.vmem [shape: f32[1,128], index: 13, kind: input, shape index: {}]
  %s14 = inlined_call_operand.vmem [shape: f32[32,128], index: 14, kind: input, shape index: {}]
  %s15 = inlined_call_operand.vmem [shape: f32[10,128], index: 15, kind: input, shape index: {}]
  %s16 = inlined_call_operand.vmem [shape: f32[32,128], index: 16, kind: input, shape index: {}]
  %s17 = inlined_call_operand.vmem [shape: f32[1,128], index: 17, kind: input, shape index: {}]
  %s18 = inlined_call_operand.vmem [shape: f32[32,50], index: 18, kind: input, shape index: {}]
  %s19 = inlined_call_operand.vmem [shape: f32[32,50], index: 19, kind: input, shape index: {}]
  %s20 = inlined_call_operand.vmem [shape: f32[1,50], index: 20, kind: input, shape index: {}]
  %s21 = inlined_call_operand.vmem [shape: f32[50,10], index: 21, kind: input, shape index: {}]
  %s22 = inlined_call_operand.vmem [shape: f32[1,10], index: 22, kind: input, shape index: {}]
  %s23 = inlined_call_operand.vmem [shape: f32[32,32], index: 23, kind: input, shape index: {}]
  %s24 = inlined_call_operand.vmem [shape: f32[1,32], index: 24, kind: input, shape index: {}]
  %s25 = inlined_call_operand.vmem [shape: f32[64,32], index: 25, kind: output, shape index: {0}]
  %s26 = inlined_call_operand.vmem [shape: f32[2,8,64], index: 26, kind: output, shape index: {1}]
  %27 = xla_tuple %s25, %s26
  %s28 = sld [smem:[#allocation0]]
  $region126: #{image_caption_forward.1} parent=0
    _
  %s30 = ssub.s32 1, %s28
  %s31 = scalar_select 0, %s30, %s28
  $region1: #{image_caption_forward.1} parent=0
    #allocation3 [shape = 'u8[131072]{0}', space=vmem, size = 0x20000, scoped, tag = 'input window, operand 3, single buffered']
    #allocation4 [shape = 's32[1]{0}', space=sflag, size = 0x4, scoped, tag = 'scoped memory for image_caption_forward.1']
    #allocation5 [shape = 'u8[262144]{0}', space=vmem, size = 0x40000, scoped, tag = 'input window, operand 10, single buffered']
    #allocation6 [shape = 's32[1]{0}', space=sflag, size = 0x4, scoped, tag = 'scoped memory for image_caption_forward.1']
    %32 = vsyncpa [#allocation4], 0
    %33 = vsyncpa [#allocation6], 0
    // Predicated region
    $region2: #{image_caption_forward.1} parent=1 // pred_check
      _
    $region3: #{image_caption_forward.1} parent=1 // pred_check_branch
      %35 = sbr.rel (0) target = $region5
    $region4: #{image_caption_forward.1} parent=1 // pred_region
      _
    $region5: #{image_caption_forward.1} parent=1 // pred_fallthru
      _
    // Predicated region
    $region6: #{image_caption_forward.1} parent=1 // pred_check
      _
    $region7: #{image_caption_forward.1} parent=1 // pred_check_branch
      %37 = sbr.rel (0) target = $region9
    $region8: #{image_caption_forward.1} parent=1 // pred_region
      _
    $region9: #{image_caption_forward.1} parent=1 // pred_fallthru
      _
    // Predicated region
    $region10: #{image_caption_forward.1} parent=1 // pred_check
      _
    $region11: #{image_caption_forward.1} parent=1 // pred_check_branch
      %39 = sbr.rel (0) target = $region13
    $region12: #{image_caption_forward.1} parent=1 // pred_region
      _
    $region13: #{image_caption_forward.1} parent=1 // pred_fallthru
      _
    // Predicated region
    $region14: #{image_caption_forward.1} parent=1 // pred_check
      _
    $region15: #{image_caption_forward.1} parent=1 // pred_check_branch
      %41 = sbr.rel (0) target = $region17
    $region16: #{image_caption_forward.1} parent=1 // pred_region
      %43 = vsyncadd [#allocation4], 0
      %s44 = sshll.u32 %s3, 4
      %s45 = int_to_ptr.hbm [resolvable:$true] %s44
      %s46 = sshll.u32 [#allocation3], 4
      %s47 = int_to_ptr.vmem [resolvable:$true] %s46
      %52 = dma.hbm_to_vmem [thread:$0]  %s45, 4096, %s47, [#allocation4], 512, 512, 32
    $region17: #{image_caption_forward.1} parent=1 // pred_fallthru
      _
    // Predicated region
    $region18: #{image_caption_forward.1} parent=1 // pred_check
      _
    $region19: #{image_caption_forward.1} parent=1 // pred_check_branch
      %54 = sbr.rel (0) target = $region21
    $region20: #{image_caption_forward.1} parent=1 // pred_region
      _
    $region21: #{image_caption_forward.1} parent=1 // pred_fallthru
      _
    // Predicated region
    $region22: #{image_caption_forward.1} parent=1 // pred_check
      _
    $region23: #{image_caption_forward.1} parent=1 // pred_check_branch
      %56 = sbr.rel (0) target = $region25
    $region24: #{image_caption_forward.1} parent=1 // pred_region
      _
    $region25: #{image_caption_forward.1} parent=1 // pred_fallthru
      _
    // Predicated region
    $region26: #{image_caption_forward.1} parent=1 // pred_check
      _
    $region27: #{image_caption_forward.1} parent=1 // pred_check_branch
      %58 = sbr.rel (0) target = $region29
    $region28: #{image_caption_forward.1} parent=1 // pred_region
      _
    $region29: #{image_caption_forward.1} parent=1 // pred_fallthru
      _
    // Predicated region
    $region30: #{image_caption_forward.1} parent=1 // pred_check
      _
    $region31: #{image_caption_forward.1} parent=1 // pred_check_branch
      %60 = sbr.rel (0) target = $region33
    $region32: #{image_caption_forward.1} parent=1 // pred_region
      _
    $region33: #{image_caption_forward.1} parent=1 // pred_fallthru
      _
    // Predicated region
    $region34: #{image_caption_forward.1} parent=1 // pred_check
      _
    $region35: #{image_caption_forward.1} parent=1 // pred_check_branch
      %62 = sbr.rel (0) target = $region37
    $region36: #{image_caption_forward.1} parent=1 // pred_region
      _
    $region37: #{image_caption_forward.1} parent=1 // pred_fallthru
      _
    // Predicated region
    $region38: #{image_caption_forward.1} parent=1 // pred_check
      _
    $region39: #{image_caption_forward.1} parent=1 // pred_check_branch
      %64 = sbr.rel (0) target = $region41
    $region40: #{image_caption_forward.1} parent=1 // pred_region
      _
    $region41: #{image_caption_forward.1} parent=1 // pred_fallthru
      _
    // Predicated region
    $region42: #{image_caption_forward.1} parent=1 // pred_check
      _
    $region43: #{image_caption_forward.1} parent=1 // pred_check_branch
      %66 = sbr.rel (0) target = $region45
    $region44: #{image_caption_forward.1} parent=1 // pred_region
      %68 = vsyncadd [#allocation6], 0
      %s69 = sshll.u32 %s10, 4
      %s70 = int_to_ptr.hbm [resolvable:$true] %s69
      %s71 = sshll.u32 [#allocation5], 4
      %s72 = int_to_ptr.vmem [resolvable:$true] %s71
      %77 = dma.hbm_to_vmem [thread:$0]  %s70, 8192, %s72, [#allocation6], 128, 128, 8
    $region45: #{image_caption_forward.1} parent=1 // pred_fallthru
      _
    // Predicated region
    $region46: #{image_caption_forward.1} parent=1 // pred_check
      _
    $region47: #{image_caption_forward.1} parent=1 // pred_check_branch
      %79 = sbr.rel (0) target = $region49
    $region48: #{image_caption_forward.1} parent=1 // pred_region
      _
    $region49: #{image_caption_forward.1} parent=1 // pred_fallthru
      _
    // Predicated region
    $region50: #{image_caption_forward.1} parent=1 // pred_check
      _
    $region51: #{image_caption_forward.1} parent=1 // pred_check_branch
      %81 = sbr.rel (0) target = $region53
    $region52: #{image_caption_forward.1} parent=1 // pred_region
      _
    $region53: #{image_caption_forward.1} parent=1 // pred_fallthru
      _
    // Predicated region
    $region54: #{image_caption_forward.1} parent=1 // pred_check
      _
    $region55: #{image_caption_forward.1} parent=1 // pred_check_branch
      %83 = sbr.rel (0) target = $region57
    $region56: #{image_caption_forward.1} parent=1 // pred_region
      _
    $region57: #{image_caption_forward.1} parent=1 // pred_fallthru
      _
    // Predicated region
    $region58: #{image_caption_forward.1} parent=1 // pred_check
      _
    $region59: #{image_caption_forward.1} parent=1 // pred_check_branch
      %85 = sbr.rel (0) target = $region61
    $region60: #{image_caption_forward.1} parent=1 // pred_region
      _
    $region61: #{image_caption_forward.1} parent=1 // pred_fallthru
      _
    // Predicated region
    $region62: #{image_caption_forward.1} parent=1 // pred_check
      _
    $region63: #{image_caption_forward.1} parent=1 // pred_check_branch
      %87 = sbr.rel (0) target = $region65
    $region64: #{image_caption_forward.1} parent=1 // pred_region
      _
    $region65: #{image_caption_forward.1} parent=1 // pred_fallthru
      _
    // Predicated region
    $region66: #{image_caption_forward.1} parent=1 // pred_check
      _
    $region67: #{image_caption_forward.1} parent=1 // pred_check_branch
      %89 = sbr.rel (0) target = $region69
    $region68: #{image_caption_forward.1} parent=1 // pred_region
      _
    $region69: #{image_caption_forward.1} parent=1 // pred_fallthru
      _
    // Predicated region
    $region70: #{image_caption_forward.1} parent=1 // pred_check
      _
    $region71: #{image_caption_forward.1} parent=1 // pred_check_branch
      %91 = sbr.rel (0) target = $region73
    $region72: #{image_caption_forward.1} parent=1 // pred_region
      _
    $region73: #{image_caption_forward.1} parent=1 // pred_fallthru
      _
    // Predicated region
    $region74: #{image_caption_forward.1} parent=1 // pred_check
      _
    $region75: #{image_caption_forward.1} parent=1 // pred_check_branch
      %93 = sbr.rel (0) target = $region77
    $region76: #{image_caption_forward.1} parent=1 // pred_region
      _
    $region77: #{image_caption_forward.1} parent=1 // pred_fallthru
      _
    // Predicated region
    $region78: #{image_caption_forward.1} parent=1 // pred_check
      _
    $region79: #{image_caption_forward.1} parent=1 // pred_check_branch
      %95 = sbr.rel (0) target = $region81
    $region80: #{image_caption_forward.1} parent=1 // pred_region
      _
    $region81: #{image_caption_forward.1} parent=1 // pred_fallthru
      _
    // Predicated region
    $region82: #{image_caption_forward.1} parent=1 // pred_check
      _
    $region83: #{image_caption_forward.1} parent=1 // pred_check_branch
      %97 = sbr.rel (0) target = $region85
    $region84: #{image_caption_forward.1} parent=1 // pred_region
      _
    $region85: #{image_caption_forward.1} parent=1 // pred_fallthru
      _
    // Predicated region
    $region86: #{image_caption_forward.1} parent=1 // pred_check
      _
    $region87: #{image_caption_forward.1} parent=1 // pred_check_branch
      %99 = sbr.rel (0) target = $region89
    $region88: #{image_caption_forward.1} parent=1 // pred_region
      _
    $region89: #{image_caption_forward.1} parent=1 // pred_fallthru
      _
    // Predicated region
    $region90: #{image_caption_forward.1} parent=1 // pred_check
      _
    $region91: #{image_caption_forward.1} parent=1 // pred_check_branch
      %101 = sbr.rel (0) target = $region93
    $region92: #{image_caption_forward.1} parent=1 // pred_region
      _
    $region93: #{image_caption_forward.1} parent=1 // pred_fallthru
      _
    // Predicated region
    $region94: #{image_caption_forward.1} parent=1 // pred_check
      _
    $region95: #{image_caption_forward.1} parent=1 // pred_check_branch
      %103 = sbr.rel (0) target = $region97
    $region96: #{image_caption_forward.1} parent=1 // pred_region
      _
    $region97: #{image_caption_forward.1} parent=1 // pred_fallthru
      _
    // Predicated region
    $region98: #{image_caption_forward.1} parent=1 // pred_check
      _
    $region99: #{image_caption_forward.1} parent=1 // pred_check_branch
      %105 = sbr.rel (0) target = $region101
    $region100: #{image_caption_forward.1} parent=1 // pred_region
      _
    $region101: #{image_caption_forward.1} parent=1 // pred_fallthru
      _
    // Predicated region
    $region102: #{image_caption_forward.1} parent=1 // pred_check
      _
    $region103: #{image_caption_forward.1} parent=1 // pred_check_branch
      %107 = sbr.rel (0) target = $region105
    $region104: #{image_caption_forward.1} parent=1 // pred_region
      %109 = dma.done [#allocation4], 4096
    $region105: #{image_caption_forward.1} parent=1 // pred_fallthru
      _
    // Predicated region
    $region106: #{image_caption_forward.1} parent=1 // pred_check
      _
    $region107: #{image_caption_forward.1} parent=1 // pred_check_branch
      %111 = sbr.rel (0) target = $region109
    $region108: #{image_caption_forward.1} parent=1 // pred_region
      %113 = dma.done [#allocation6], 8192
    $region109: #{image_caption_forward.1} parent=1 // pred_fallthru
      _
    %v114 = vld [vmem:[%s5] sm:$0xf]
    %v115 = vld [vmem:[%s8] sm:$0xf]
    %v116 = vadd.f32 %v115, 1e-05
    %v117 = vrsqrt.pop %v116
    %v118 = vmul.f32 %v117, %v116
    %v119 = vmul.f32 %v118, %v117
    %v120 = vmul.f32 0.5, %v119
    %v121 = vsub.f32 1.5, %v120
    %v122 = vmul.f32 %v117, %v121
    %vm123 = vweird.f32 %v116
    %vm124 = vweird.f32 %v117
    %vm125 = vmor %vm123, %vm124
    %v126 = vsel %vm125, %v117, %v122
    %v127 = vmul.f32 %v114, %v126
    %v128 = vld [vmem:[#allocation3] sm:$0xff]
    %v129 = vld [vmem:[#allocation3 + $0x8] sm:$0xff]
    %v130 = vld [vmem:[#allocation3 + $0x10] sm:$0xff]
    %v131 = vld [vmem:[#allocation3 + $0x18] sm:$0xff]
    %v132 = vld [vmem:[#allocation3 + $0x20] sm:$0xff]
    %v133 = vld [vmem:[#allocation3 + $0x28] sm:$0xff]
    %v134 = vld [vmem:[#allocation3 + $0x30] sm:$0xff]
    %v135 = vld [vmem:[#allocation3 + $0x38] sm:$0xff]
    %v136 = vld [vmem:[#allocation3 + $0x40] sm:$0xff]
    %v137 = vld [vmem:[#allocation3 + $0x48] sm:$0xff]
    %v138 = vld [vmem:[#allocation3 + $0x50] sm:$0xff]
    %v139 = vld [vmem:[#allocation3 + $0x58] sm:$0xff]
    %v140 = vld [vmem:[#allocation3 + $0x60] sm:$0xff]
    %v141 = vld [vmem:[#allocation3 + $0x68] sm:$0xff]
    %v142 = vld [vmem:[#allocation3 + $0x70] sm:$0xff]
    %v143 = vld [vmem:[#allocation3 + $0x78] sm:$0xff]
    %v144 = vld [vmem:[#allocation3 + $0x80] sm:$0xff]
    %v145 = vld [vmem:[#allocation3 + $0x88] sm:$0xff]
    %v146 = vld [vmem:[#allocation3 + $0x90] sm:$0xff]
    %v147 = vld [vmem:[#allocation3 + $0x98] sm:$0xff]
    %v148 = vld [vmem:[#allocation3 + $0xa0] sm:$0xff]
    %v149 = vld [vmem:[#allocation3 + $0xa8] sm:$0xff]
    %v150 = vld [vmem:[#allocation3 + $0xb0] sm:$0xff]
    %v151 = vld [vmem:[#allocation3 + $0xb8] sm:$0xff]
    %v152 = vld [vmem:[#allocation3 + $0xc0] sm:$0xff]
    %v153 = vld [vmem:[#allocation3 + $0xc8] sm:$0xff]
    %v154 = vld [vmem:[#allocation3 + $0xd0] sm:$0xff]
    %v155 = vld [vmem:[#allocation3 + $0xd8] sm:$0xff]
    %v156 = vld [vmem:[#allocation3 + $0xe0] sm:$0xff]
    %v157 = vld [vmem:[#allocation3 + $0xe8] sm:$0xff]
    %v158 = vld [vmem:[#allocation3 + $0xf0] sm:$0xff]
    %v159 = vld [vmem:[#allocation3 + $0xf8] sm:$0xff]
    %v161 = vperm.slane %v127, 0
    %v162 = vperm.slane %v127, 1
    %v163 = vperm.slane %v127, 2
    %v164 = vperm.slane %v127, 3
    %v169 = vmul.f32 %v128, %v161
    %v170 = vmul.f32 %v129, %v162
    %v171 = vmul.f32 %v130, %v163
    %v172 = vmul.f32 %v131, %v164
    %v173 = vmul.f32 %v132, %v161
    %v174 = vmul.f32 %v133, %v162
    %v175 = vmul.f32 %v134, %v163
    %v176 = vmul.f32 %v135, %v164
    %v177 = vmul.f32 %v136, %v161
    %v178 = vmul.f32 %v137, %v162
    %v179 = vmul.f32 %v138, %v163
    %v180 = vmul.f32 %v139, %v164
    %v181 = vmul.f32 %v140, %v161
    %v182 = vmul.f32 %v141, %v162
    %v183 = vmul.f32 %v142, %v163
    %v184 = vmul.f32 %v143, %v164
    %v185 = vmul.f32 %v144, %v161
    %v186 = vmul.f32 %v145, %v162
    %v187 = vmul.f32 %v146, %v163
    %v188 = vmul.f32 %v147, %v164
    %v189 = vmul.f32 %v148, %v161
    %v190 = vmul.f32 %v149, %v162
    %v191 = vmul.f32 %v150, %v163
    %v192 = vmul.f32 %v151, %v164
    %v193 = vmul.f32 %v152, %v161
    %v194 = vmul.f32 %v153, %v162
    %v195 = vmul.f32 %v154, %v163
    %v196 = vmul.f32 %v155, %v164
    %v197 = vmul.f32 %v156, %v161
    %v198 = vmul.f32 %v157, %v162
    %v199 = vmul.f32 %v158, %v163
    %v200 = vmul.f32 %v159, %v164
    %v201 = vld [vmem:[%s4] sm:$0xf]
    %v202 = vld [vmem:[%s7] sm:$0xf]
    %v203 = vsub.f32 %v201, %v202
    %v204 = vmul.f32 %v203, %v127
    %v205 = vld [vmem:[%s6] sm:$0xf]
    %v206 = vadd.f32 %v204, %v205
    %v207 = vld [vmem:[%s0] sm:$0xff]
    %v209 = vperm.slane %v206, 0
    %v210 = vperm.slane %v206, 1
    %v211 = vperm.slane %v206, 2
    %v212 = vperm.slane %v206, 3
    %vm217 = vcmask 523264
    %v219 = vsel %vm217, %v207, 0
    %221 = vmatpush.msra.mxu0 0.0
    %222 = vmatpush.msra.mxu0 0.0
    %223 = vmatpush.msra.mxu0 0.0
    %224 = vmatpush.msra.mxu0 0.0
    %225 = vmatpush.msra.mxu0 0.0
    %226 = vmatpush.msra.mxu0 0.0
    %227 = vmatpush.msra.mxu0 0.0
    %228 = vmatpush.msra.mxu0 0.0
    %229 = vmatpush.msra.mxu0 %v197
    %230 = vmatpush.msra.mxu0 %v193
    %231 = vmatpush.msra.mxu0 %v189
    %232 = vmatpush.msra.mxu0 %v185
    %233 = vmatpush.msra.mxu0 %v181
    %234 = vmatpush.msra.mxu0 %v177
    %235 = vmatpush.msra.mxu0 %v173
    %236 = vmatpush.msra.mxu0 %v169
    %237 = vmatmul.f32.gmra.mxu0 %v219
    %v238 = vpop.f32.mrf.mxu0
    %v239 = vadd.f32 %v209, %v238
    %240 = vdwg.mxu0
    %241 = vmatpush.msra.mxu0 0.0
    %242 = vmatpush.msra.mxu0 0.0
    %243 = vmatpush.msra.mxu0 0.0
    %244 = vmatpush.msra.mxu0 0.0
    %245 = vmatpush.msra.mxu0 0.0
    %246 = vmatpush.msra.mxu0 0.0
    %247 = vmatpush.msra.mxu0 0.0
    %248 = vmatpush.msra.mxu0 0.0
    %249 = vmatpush.msra.mxu0 %v198
    %250 = vmatpush.msra.mxu0 %v194
    %251 = vmatpush.msra.mxu0 %v190
    %252 = vmatpush.msra.mxu0 %v186
    %253 = vmatpush.msra.mxu0 %v182
    %254 = vmatpush.msra.mxu0 %v178
    %255 = vmatpush.msra.mxu0 %v174
    %256 = vmatpush.msra.mxu0 %v170
    %257 = vmatmul.f32.gmra.mxu0 %v219
    %v258 = vpop.f32.mrf.mxu0
    %v259 = vadd.f32 %v210, %v258
    %260 = vdwg.mxu0
    %261 = vmatpush.msra.mxu0 0.0
    %262 = vmatpush.msra.mxu0 0.0
    %263 = vmatpush.msra.mxu0 0.0
    %264 = vmatpush.msra.mxu0 0.0
    %265 = vmatpush.msra.mxu0 0.0
    %266 = vmatpush.msra.mxu0 0.0
    %267 = vmatpush.msra.mxu0 0.0
    %268 = vmatpush.msra.mxu0 0.0
    %269 = vmatpush.msra.mxu0 %v199
    %270 = vmatpush.msra.mxu0 %v195
    %271 = vmatpush.msra.mxu0 %v191
    %272 = vmatpush.msra.mxu0 %v187
    %273 = vmatpush.msra.mxu0 %v183
    %274 = vmatpush.msra.mxu0 %v179
    %275 = vmatpush.msra.mxu0 %v175
    %276 = vmatpush.msra.mxu0 %v171
    %277 = vmatmul.f32.gmra.mxu0 %v219
    %v278 = vpop.f32.mrf.mxu0
    %v279 = vadd.f32 %v211, %v278
    %280 = vdwg.mxu0
    %281 = vmatpush.msra.mxu0 0.0
    %282 = vmatpush.msra.mxu0 0.0
    %283 = vmatpush.msra.mxu0 0.0
    %284 = vmatpush.msra.mxu0 0.0
    %285 = vmatpush.msra.mxu0 0.0
    %286 = vmatpush.msra.mxu0 0.0
    %287 = vmatpush.msra.mxu0 0.0
    %288 = vmatpush.msra.mxu0 0.0
    %289 = vmatpush.msra.mxu0 %v200
    %290 = vmatpush.msra.mxu0 %v196
    %291 = vmatpush.msra.mxu0 %v192
    %292 = vmatpush.msra.mxu0 %v188
    %293 = vmatpush.msra.mxu0 %v184
    %294 = vmatpush.msra.mxu0 %v180
    %295 = vmatpush.msra.mxu0 %v176
    %296 = vmatpush.msra.mxu0 %v172
    %297 = vmatmul.f32.gmra.mxu0 %v219
    %v298 = vpop.f32.mrf.mxu0
    %v299 = vadd.f32 %v212, %v298
    %300 = vdwg.mxu0
    %vm301 = vcmp.gt.f32.partialorder %v239, 0.0
    %vm302 = vcmp.gt.f32.partialorder %v259, 0.0
    %vm303 = vcmp.gt.f32.partialorder %v279, 0.0
    %vm304 = vcmp.gt.f32.partialorder %v299, 0.0
    %v305 = vmul.f32 %v239, 0.01
    %v306 = vmul.f32 %v259, 0.01
    %v307 = vmul.f32 %v279, 0.01
    %v308 = vmul.f32 %v299, 0.01
    %v309 = vsel %vm301, %v239, %v305
    %v310 = vsel %vm302, %v259, %v306
    %v311 = vsel %vm303, %v279, %v307
    %v312 = vsel %vm304, %v299, %v308
    %s313 = scalar_lea.vmem %s0, 8
    %v314 = vld [vmem:[%s313] sm:$0xff]
    %v316 = vsel %vm217, %v314, 0
    %318 = vmatpush.msra.mxu0 0.0
    %319 = vmatpush.msra.mxu0 0.0
    %320 = vmatpush.msra.mxu0 0.0
    %321 = vmatpush.msra.mxu0 0.0
    %322 = vmatpush.msra.mxu0 0.0
    %323 = vmatpush.msra.mxu0 0.0
    %324 = vmatpush.msra.mxu0 0.0
    %325 = vmatpush.msra.mxu0 0.0
    %326 = vmatpush.msra.mxu0 %v197
    %327 = vmatpush.msra.mxu0 %v193
    %328 = vmatpush.msra.mxu0 %v189
    %329 = vmatpush.msra.mxu0 %v185
    %330 = vmatpush.msra.mxu0 %v181
    %331 = vmatpush.msra.mxu0 %v177
    %332 = vmatpush.msra.mxu0 %v173
    %333 = vmatpush.msra.mxu0 %v169
    %334 = vmatmul.f32.gmra.mxu0 %v316
    %v335 = vpop.f32.mrf.mxu0
    %v336 = vadd.f32 %v209, %v335
    %337 = vdwg.mxu0
    %338 = vmatpush.msra.mxu0 0.0
    %339 = vmatpush.msra.mxu0 0.0
    %340 = vmatpush.msra.mxu0 0.0
    %341 = vmatpush.msra.mxu0 0.0
    %342 = vmatpush.msra.mxu0 0.0
    %343 = vmatpush.msra.mxu0 0.0
    %344 = vmatpush.msra.mxu0 0.0
    %345 = vmatpush.msra.mxu0 0.0
    %346 = vmatpush.msra.mxu0 %v198
    %347 = vmatpush.msra.mxu0 %v194
    %348 = vmatpush.msra.mxu0 %v190
    %349 = vmatpush.msra.mxu0 %v186
    %350 = vmatpush.msra.mxu0 %v182
    %351 = vmatpush.msra.mxu0 %v178
    %352 = vmatpush.msra.mxu0 %v174
    %353 = vmatpush.msra.mxu0 %v170
    %354 = vmatmul.f32.gmra.mxu0 %v316
    %v355 = vpop.f32.mrf.mxu0
    %v356 = vadd.f32 %v210, %v355
    %357 = vdwg.mxu0
    %358 = vmatpush.msra.mxu0 0.0
    %359 = vmatpush.msra.mxu0 0.0
    %360 = vmatpush.msra.mxu0 0.0
    %361 = vmatpush.msra.mxu0 0.0
    %362 = vmatpush.msra.mxu0 0.0
    %363 = vmatpush.msra.mxu0 0.0
    %364 = vmatpush.msra.mxu0 0.0
    %365 = vmatpush.msra.mxu0 0.0
    %366 = vmatpush.msra.mxu0 %v199
    %367 = vmatpush.msra.mxu0 %v195
    %368 = vmatpush.msra.mxu0 %v191
    %369 = vmatpush.msra.mxu0 %v187
    %370 = vmatpush.msra.mxu0 %v183
    %371 = vmatpush.msra.mxu0 %v179
    %372 = vmatpush.msra.mxu0 %v175
    %373 = vmatpush.msra.mxu0 %v171
    %374 = vmatmul.f32.gmra.mxu0 %v316
    %v375 = vpop.f32.mrf.mxu0
    %v376 = vadd.f32 %v211, %v375
    %377 = vdwg.mxu0
    %378 = vmatpush.msra.mxu0 0.0
    %379 = vmatpush.msra.mxu0 0.0
    %380 = vmatpush.msra.mxu0 0.0
    %381 = vmatpush.msra.mxu0 0.0
    %382 = vmatpush.msra.mxu0 0.0
    %383 = vmatpush.msra.mxu0 0.0
    %384 = vmatpush.msra.mxu0 0.0
    %385 = vmatpush.msra.mxu0 0.0
    %386 = vmatpush.msra.mxu0 %v200
    %387 = vmatpush.msra.mxu0 %v196
    %388 = vmatpush.msra.mxu0 %v192
    %389 = vmatpush.msra.mxu0 %v188
    %390 = vmatpush.msra.mxu0 %v184
    %391 = vmatpush.msra.mxu0 %v180
    %392 = vmatpush.msra.mxu0 %v176
    %393 = vmatpush.msra.mxu0 %v172
    %394 = vmatmul.f32.gmra.mxu0 %v316
    %v395 = vpop.f32.mrf.mxu0
    %v396 = vadd.f32 %v212, %v395
    %397 = vdwg.mxu0
    %vm398 = vcmp.gt.f32.partialorder %v336, 0.0
    %vm399 = vcmp.gt.f32.partialorder %v356, 0.0
    %vm400 = vcmp.gt.f32.partialorder %v376, 0.0
    %vm401 = vcmp.gt.f32.partialorder %v396, 0.0
    %v402 = vmul.f32 %v336, 0.01
    %v403 = vmul.f32 %v356, 0.01
    %v404 = vmul.f32 %v376, 0.01
    %v405 = vmul.f32 %v396, 0.01
    %v406 = vsel %vm398, %v336, %v402
    %v407 = vsel %vm399, %v356, %v403
    %v408 = vsel %vm400, %v376, %v404
    %v409 = vsel %vm401, %v396, %v405
    %v410 = vmax.f32 %v309, %v406
    %v411 = vmax.f32 %v310, %v407
    %v412 = vmax.f32 %v311, %v408
    %v413 = vmax.f32 %v312, %v409
    %s414 = scalar_lea.vmem %s0, 16
    %v415 = vld [vmem:[%s414] sm:$0xff]
    %v417 = vsel %vm217, %v415, 0
    %419 = vmatpush.msra.mxu0 0.0
    %420 = vmatpush.msra.mxu0 0.0
    %421 = vmatpush.msra.mxu0 0.0
    %422 = vmatpush.msra.mxu0 0.0
    %423 = vmatpush.msra.mxu0 0.0
    %424 = vmatpush.msra.mxu0 0.0
    %425 = vmatpush.msra.mxu0 0.0
    %426 = vmatpush.msra.mxu0 0.0
    %427 = vmatpush.msra.mxu0 %v197
    %428 = vmatpush.msra.mxu0 %v193
    %429 = vmatpush.msra.mxu0 %v189
    %430 = vmatpush.msra.mxu0 %v185
    %431 = vmatpush.msra.mxu0 %v181
    %432 = vmatpush.msra.mxu0 %v177
    %433 = vmatpush.msra.mxu0 %v173
    %434 = vmatpush.msra.mxu0 %v169
    %435 = vmatmul.f32.gmra.mxu0 %v417
    %v436 = vpop.f32.mrf.mxu0
    %v437 = vadd.f32 %v209, %v436
    %438 = vdwg.mxu0
    %439 = vmatpush.msra.mxu0 0.0
    %440 = vmatpush.msra.mxu0 0.0
    %441 = vmatpush.msra.mxu0 0.0
    %442 = vmatpush.msra.mxu0 0.0
    %443 = vmatpush.msra.mxu0 0.0
    %444 = vmatpush.msra.mxu0 0.0
    %445 = vmatpush.msra.mxu0 0.0
    %446 = vmatpush.msra.mxu0 0.0
    %447 = vmatpush.msra.mxu0 %v198
    %448 = vmatpush.msra.mxu0 %v194
    %449 = vmatpush.msra.mxu0 %v190
    %450 = vmatpush.msra.mxu0 %v186
    %451 = vmatpush.msra.mxu0 %v182
    %452 = vmatpush.msra.mxu0 %v178
    %453 = vmatpush.msra.mxu0 %v174
    %454 = vmatpush.msra.mxu0 %v170
    %455 = vmatmul.f32.gmra.mxu0 %v417
    %v456 = vpop.f32.mrf.mxu0
    %v457 = vadd.f32 %v210, %v456
    %458 = vdwg.mxu0
    %459 = vmatpush.msra.mxu0 0.0
    %460 = vmatpush.msra.mxu0 0.0
    %461 = vmatpush.msra.mxu0 0.0
    %462 = vmatpush.msra.mxu0 0.0
    %463 = vmatpush.msra.mxu0 0.0
    %464 = vmatpush.msra.mxu0 0.0
    %465 = vmatpush.msra.mxu0 0.0
    %466 = vmatpush.msra.mxu0 0.0
    %467 = vmatpush.msra.mxu0 %v199
    %468 = vmatpush.msra.mxu0 %v195
    %469 = vmatpush.msra.mxu0 %v191
    %470 = vmatpush.msra.mxu0 %v187
    %471 = vmatpush.msra.mxu0 %v183
    %472 = vmatpush.msra.mxu0 %v179
    %473 = vmatpush.msra.mxu0 %v175
    %474 = vmatpush.msra.mxu0 %v171
    %475 = vmatmul.f32.gmra.mxu0 %v417
    %v476 = vpop.f32.mrf.mxu0
    %v477 = vadd.f32 %v211, %v476
    %478 = vdwg.mxu0
    %479 = vmatpush.msra.mxu0 0.0
    %480 = vmatpush.msra.mxu0 0.0
    %481 = vmatpush.msra.mxu0 0.0
    %482 = vmatpush.msra.mxu0 0.0
    %483 = vmatpush.msra.mxu0 0.0
    %484 = vmatpush.msra.mxu0 0.0
    %485 = vmatpush.msra.mxu0 0.0
    %486 = vmatpush.msra.mxu0 0.0
    %487 = vmatpush.msra.mxu0 %v200
    %488 = vmatpush.msra.mxu0 %v196
    %489 = vmatpush.msra.mxu0 %v192
    %490 = vmatpush.msra.mxu0 %v188
    %491 = vmatpush.msra.mxu0 %v184
    %492 = vmatpush.msra.mxu0 %v180
    %493 = vmatpush.msra.mxu0 %v176
    %494 = vmatpush.msra.mxu0 %v172
    %495 = vmatmul.f32.gmra.mxu0 %v417
    %v496 = vpop.f32.mrf.mxu0
    %v497 = vadd.f32 %v212, %v496
    %498 = vdwg.mxu0
    %vm499 = vcmp.gt.f32.partialorder %v437, 0.0
    %vm500 = vcmp.gt.f32.partialorder %v457, 0.0
    %vm501 = vcmp.gt.f32.partialorder %v477, 0.0
    %vm502 = vcmp.gt.f32.partialorder %v497, 0.0
    %v503 = vmul.f32 %v437, 0.01
    %v504 = vmul.f32 %v457, 0.01
    %v505 = vmul.f32 %v477, 0.01
    %v506 = vmul.f32 %v497, 0.01
    %v507 = vsel %vm499, %v437, %v503
    %v508 = vsel %vm500, %v457, %v504
    %v509 = vsel %vm501, %v477, %v505
    %v510 = vsel %vm502, %v497, %v506
    %v511 = vmax.f32 %v410, %v507
    %v512 = vmax.f32 %v411, %v508
    %v513 = vmax.f32 %v412, %v509
    %v514 = vmax.f32 %v413, %v510
    %s515 = scalar_lea.vmem %s0, 24
    %v516 = vld [vmem:[%s515] sm:$0xff]
    %v518 = vsel %vm217, %v516, 0
    %520 = vmatpush.msra.mxu0 0.0
    %521 = vmatpush.msra.mxu0 0.0
    %522 = vmatpush.msra.mxu0 0.0
    %523 = vmatpush.msra.mxu0 0.0
    %524 = vmatpush.msra.mxu0 0.0
    %525 = vmatpush.msra.mxu0 0.0
    %526 = vmatpush.msra.mxu0 0.0
    %527 = vmatpush.msra.mxu0 0.0
    %528 = vmatpush.msra.mxu0 %v197
    %529 = vmatpush.msra.mxu0 %v193
    %530 = vmatpush.msra.mxu0 %v189
    %531 = vmatpush.msra.mxu0 %v185
    %532 = vmatpush.msra.mxu0 %v181
    %533 = vmatpush.msra.mxu0 %v177
    %534 = vmatpush.msra.mxu0 %v173
    %535 = vmatpush.msra.mxu0 %v169
    %536 = vmatmul.f32.gmra.mxu0 %v518
    %v537 = vpop.f32.mrf.mxu0
    %v538 = vadd.f32 %v209, %v537
    %539 = vdwg.mxu0
    %540 = vmatpush.msra.mxu0 0.0
    %541 = vmatpush.msra.mxu0 0.0
    %542 = vmatpush.msra.mxu0 0.0
    %543 = vmatpush.msra.mxu0 0.0
    %544 = vmatpush.msra.mxu0 0.0
    %545 = vmatpush.msra.mxu0 0.0
    %546 = vmatpush.msra.mxu0 0.0
    %547 = vmatpush.msra.mxu0 0.0
    %548 = vmatpush.msra.mxu0 %v198
    %549 = vmatpush.msra.mxu0 %v194
    %550 = vmatpush.msra.mxu0 %v190
    %551 = vmatpush.msra.mxu0 %v186
    %552 = vmatpush.msra.mxu0 %v182
    %553 = vmatpush.msra.mxu0 %v178
    %554 = vmatpush.msra.mxu0 %v174
    %555 = vmatpush.msra.mxu0 %v170
    %556 = vmatmul.f32.gmra.mxu0 %v518
    %v557 = vpop.f32.mrf.mxu0
    %v558 = vadd.f32 %v210, %v557
    %559 = vdwg.mxu0
    %560 = vmatpush.msra.mxu0 0.0
    %561 = vmatpush.msra.mxu0 0.0
    %562 = vmatpush.msra.mxu0 0.0
    %563 = vmatpush.msra.mxu0 0.0
    %564 = vmatpush.msra.mxu0 0.0
    %565 = vmatpush.msra.mxu0 0.0
    %566 = vmatpush.msra.mxu0 0.0
    %567 = vmatpush.msra.mxu0 0.0
    %568 = vmatpush.msra.mxu0 %v199
    %569 = vmatpush.msra.mxu0 %v195
    %570 = vmatpush.msra.mxu0 %v191
    %571 = vmatpush.msra.mxu0 %v187
    %572 = vmatpush.msra.mxu0 %v183
    %573 = vmatpush.msra.mxu0 %v179
    %574 = vmatpush.msra.mxu0 %v175
    %575 = vmatpush.msra.mxu0 %v171
    %576 = vmatmul.f32.gmra.mxu0 %v518
    %v577 = vpop.f32.mrf.mxu0
    %v578 = vadd.f32 %v211, %v577
    %579 = vdwg.mxu0
    %580 = vmatpush.msra.mxu0 0.0
    %581 = vmatpush.msra.mxu0 0.0
    %582 = vmatpush.msra.mxu0 0.0
    %583 = vmatpush.msra.mxu0 0.0
    %584 = vmatpush.msra.mxu0 0.0
    %585 = vmatpush.msra.mxu0 0.0
    %586 = vmatpush.msra.mxu0 0.0
    %587 = vmatpush.msra.mxu0 0.0
    %588 = vmatpush.msra.mxu0 %v200
    %589 = vmatpush.msra.mxu0 %v196
    %590 = vmatpush.msra.mxu0 %v192
    %591 = vmatpush.msra.mxu0 %v188
    %592 = vmatpush.msra.mxu0 %v184
    %593 = vmatpush.msra.mxu0 %v180
    %594 = vmatpush.msra.mxu0 %v176
    %595 = vmatpush.msra.mxu0 %v172
    %596 = vmatmul.f32.gmra.mxu0 %v518
    %v597 = vpop.f32.mrf.mxu0
    %v598 = vadd.f32 %v212, %v597
    %599 = vdwg.mxu0
    %vm600 = vcmp.gt.f32.partialorder %v538, 0.0
    %vm601 = vcmp.gt.f32.partialorder %v558, 0.0
    %vm602 = vcmp.gt.f32.partialorder %v578, 0.0
    %vm603 = vcmp.gt.f32.partialorder %v598, 0.0
    %v604 = vmul.f32 %v538, 0.01
    %v605 = vmul.f32 %v558, 0.01
    %v606 = vmul.f32 %v578, 0.01
    %v607 = vmul.f32 %v598, 0.01
    %v608 = vsel %vm600, %v538, %v604
    %v609 = vsel %vm601, %v558, %v605
    %v610 = vsel %vm602, %v578, %v606
    %v611 = vsel %vm603, %v598, %v607
    %v612 = vmax.f32 %v511, %v608
    %v613 = vmax.f32 %v512, %v609
    %v614 = vmax.f32 %v513, %v610
    %v615 = vmax.f32 %v514, %v611
    %s616 = scalar_lea.vmem %s0, 32
    %v617 = vld [vmem:[%s616] sm:$0xff]
    %v619 = vsel %vm217, %v617, 0
    %621 = vmatpush.msra.mxu0 0.0
    %622 = vmatpush.msra.mxu0 0.0
    %623 = vmatpush.msra.mxu0 0.0
    %624 = vmatpush.msra.mxu0 0.0
    %625 = vmatpush.msra.mxu0 0.0
    %626 = vmatpush.msra.mxu0 0.0
    %627 = vmatpush.msra.mxu0 0.0
    %628 = vmatpush.msra.mxu0 0.0
    %629 = vmatpush.msra.mxu0 %v197
    %630 = vmatpush.msra.mxu0 %v193
    %631 = vmatpush.msra.mxu0 %v189
    %632 = vmatpush.msra.mxu0 %v185
    %633 = vmatpush.msra.mxu0 %v181
    %634 = vmatpush.msra.mxu0 %v177
    %635 = vmatpush.msra.mxu0 %v173
    %636 = vmatpush.msra.mxu0 %v169
    %637 = vmatmul.f32.gmra.mxu0 %v619
    %v638 = vpop.f32.mrf.mxu0
    %v639 = vadd.f32 %v209, %v638
    %640 = vdwg.mxu0
    %641 = vmatpush.msra.mxu0 0.0
    %642 = vmatpush.msra.mxu0 0.0
    %643 = vmatpush.msra.mxu0 0.0
    %644 = vmatpush.msra.mxu0 0.0
    %645 = vmatpush.msra.mxu0 0.0
    %646 = vmatpush.msra.mxu0 0.0
    %647 = vmatpush.msra.mxu0 0.0
    %648 = vmatpush.msra.mxu0 0.0
    %649 = vmatpush.msra.mxu0 %v198
    %650 = vmatpush.msra.mxu0 %v194
    %651 = vmatpush.msra.mxu0 %v190
    %652 = vmatpush.msra.mxu0 %v186
    %653 = vmatpush.msra.mxu0 %v182
    %654 = vmatpush.msra.mxu0 %v178
    %655 = vmatpush.msra.mxu0 %v174
    %656 = vmatpush.msra.mxu0 %v170
    %657 = vmatmul.f32.gmra.mxu0 %v619
    %v658 = vpop.f32.mrf.mxu0
    %v659 = vadd.f32 %v210, %v658
    %660 = vdwg.mxu0
    %661 = vmatpush.msra.mxu0 0.0
    %662 = vmatpush.msra.mxu0 0.0
    %663 = vmatpush.msra.mxu0 0.0
    %664 = vmatpush.msra.mxu0 0.0
    %665 = vmatpush.msra.mxu0 0.0
    %666 = vmatpush.msra.mxu0 0.0
    %667 = vmatpush.msra.mxu0 0.0
    %668 = vmatpush.msra.mxu0 0.0
    %669 = vmatpush.msra.mxu0 %v199
    %670 = vmatpush.msra.mxu0 %v195
    %671 = vmatpush.msra.mxu0 %v191
    %672 = vmatpush.msra.mxu0 %v187
    %673 = vmatpush.msra.mxu0 %v183
    %674 = vmatpush.msra.mxu0 %v179
    %675 = vmatpush.msra.mxu0 %v175
    %676 = vmatpush.msra.mxu0 %v171
    %677 = vmatmul.f32.gmra.mxu0 %v619
    %v678 = vpop.f32.mrf.mxu0
    %v679 = vadd.f32 %v211, %v678
    %680 = vdwg.mxu0
    %681 = vmatpush.msra.mxu0 0.0
    %682 = vmatpush.msra.mxu0 0.0
    %683 = vmatpush.msra.mxu0 0.0
    %684 = vmatpush.msra.mxu0 0.0
    %685 = vmatpush.msra.mxu0 0.0
    %686 = vmatpush.msra.mxu0 0.0
    %687 = vmatpush.msra.mxu0 0.0
    %688 = vmatpush.msra.mxu0 0.0
    %689 = vmatpush.msra.mxu0 %v200
    %690 = vmatpush.msra.mxu0 %v196
    %691 = vmatpush.msra.mxu0 %v192
    %692 = vmatpush.msra.mxu0 %v188
    %693 = vmatpush.msra.mxu0 %v184
    %694 = vmatpush.msra.mxu0 %v180
    %695 = vmatpush.msra.mxu0 %v176
    %696 = vmatpush.msra.mxu0 %v172
    %697 = vmatmul.f32.gmra.mxu0 %v619
    %v698 = vpop.f32.mrf.mxu0
    %v699 = vadd.f32 %v212, %v698
    %700 = vdwg.mxu0
    %vm701 = vcmp.gt.f32.partialorder %v639, 0.0
    %vm702 = vcmp.gt.f32.partialorder %v659, 0.0
    %vm703 = vcmp.gt.f32.partialorder %v679, 0.0
    %vm704 = vcmp.gt.f32.partialorder %v699, 0.0
    %v705 = vmul.f32 %v639, 0.01
    %v706 = vmul.f32 %v659, 0.01
    %v707 = vmul.f32 %v679, 0.01
    %v708 = vmul.f32 %v699, 0.01
    %v709 = vsel %vm701, %v639, %v705
    %v710 = vsel %vm702, %v659, %v706
    %v711 = vsel %vm703, %v679, %v707
    %v712 = vsel %vm704, %v699, %v708
    %v713 = vmax.f32 %v612, %v709
    %v714 = vmax.f32 %v613, %v710
    %v715 = vmax.f32 %v614, %v711
    %v716 = vmax.f32 %v615, %v712
    %s717 = scalar_lea.vmem %s0, 40
    %v718 = vld [vmem:[%s717] sm:$0xff]
    %v720 = vsel %vm217, %v718, 0
    %722 = vmatpush.msra.mxu0 0.0
    %723 = vmatpush.msra.mxu0 0.0
    %724 = vmatpush.msra.mxu0 0.0
    %725 = vmatpush.msra.mxu0 0.0
    %726 = vmatpush.msra.mxu0 0.0
    %727 = vmatpush.msra.mxu0 0.0
    %728 = vmatpush.msra.mxu0 0.0
    %729 = vmatpush.msra.mxu0 0.0
    %730 = vmatpush.msra.mxu0 %v197
    %731 = vmatpush.msra.mxu0 %v193
    %732 = vmatpush.msra.mxu0 %v189
    %733 = vmatpush.msra.mxu0 %v185
    %734 = vmatpush.msra.mxu0 %v181
    %735 = vmatpush.msra.mxu0 %v177
    %736 = vmatpush.msra.mxu0 %v173
    %737 = vmatpush.msra.mxu0 %v169
    %738 = vmatmul.f32.gmra.mxu0 %v720
    %v739 = vpop.f32.mrf.mxu0
    %v740 = vadd.f32 %v209, %v739
    %741 = vdwg.mxu0
    %742 = vmatpush.msra.mxu0 0.0
    %743 = vmatpush.msra.mxu0 0.0
    %744 = vmatpush.msra.mxu0 0.0
    %745 = vmatpush.msra.mxu0 0.0
    %746 = vmatpush.msra.mxu0 0.0
    %747 = vmatpush.msra.mxu0 0.0
    %748 = vmatpush.msra.mxu0 0.0
    %749 = vmatpush.msra.mxu0 0.0
    %750 = vmatpush.msra.mxu0 %v198
    %751 = vmatpush.msra.mxu0 %v194
    %752 = vmatpush.msra.mxu0 %v190
    %753 = vmatpush.msra.mxu0 %v186
    %754 = vmatpush.msra.mxu0 %v182
    %755 = vmatpush.msra.mxu0 %v178
    %756 = vmatpush.msra.mxu0 %v174
    %757 = vmatpush.msra.mxu0 %v170
    %758 = vmatmul.f32.gmra.mxu0 %v720
    %v759 = vpop.f32.mrf.mxu0
    %v760 = vadd.f32 %v210, %v759
    %761 = vdwg.mxu0
    %762 = vmatpush.msra.mxu0 0.0
    %763 = vmatpush.msra.mxu0 0.0
    %764 = vmatpush.msra.mxu0 0.0
    %765 = vmatpush.msra.mxu0 0.0
    %766 = vmatpush.msra.mxu0 0.0
    %767 = vmatpush.msra.mxu0 0.0
    %768 = vmatpush.msra.mxu0 0.0
    %769 = vmatpush.msra.mxu0 0.0
    %770 = vmatpush.msra.mxu0 %v199
    %771 = vmatpush.msra.mxu0 %v195
    %772 = vmatpush.msra.mxu0 %v191
    %773 = vmatpush.msra.mxu0 %v187
    %774 = vmatpush.msra.mxu0 %v183
    %775 = vmatpush.msra.mxu0 %v179
    %776 = vmatpush.msra.mxu0 %v175
    %777 = vmatpush.msra.mxu0 %v171
    %778 = vmatmul.f32.gmra.mxu0 %v720
    %v779 = vpop.f32.mrf.mxu0
    %v780 = vadd.f32 %v211, %v779
    %781 = vdwg.mxu0
    %782 = vmatpush.msra.mxu0 0.0
    %783 = vmatpush.msra.mxu0 0.0
    %784 = vmatpush.msra.mxu0 0.0
    %785 = vmatpush.msra.mxu0 0.0
    %786 = vmatpush.msra.mxu0 0.0
    %787 = vmatpush.msra.mxu0 0.0
    %788 = vmatpush.msra.mxu0 0.0
    %789 = vmatpush.msra.mxu0 0.0
    %790 = vmatpush.msra.mxu0 %v200
    %791 = vmatpush.msra.mxu0 %v196
    %792 = vmatpush.msra.mxu0 %v192
    %793 = vmatpush.msra.mxu0 %v188
    %794 = vmatpush.msra.mxu0 %v184
    %795 = vmatpush.msra.mxu0 %v180
    %796 = vmatpush.msra.mxu0 %v176
    %797 = vmatpush.msra.mxu0 %v172
    %798 = vmatmul.f32.gmra.mxu0 %v720
    %v799 = vpop.f32.mrf.mxu0
    %v800 = vadd.f32 %v212, %v799
    %801 = vdwg.mxu0
    %vm802 = vcmp.gt.f32.partialorder %v740, 0.0
    %vm803 = vcmp.gt.f32.partialorder %v760, 0.0
    %vm804 = vcmp.gt.f32.partialorder %v780, 0.0
    %vm805 = vcmp.gt.f32.partialorder %v800, 0.0
    %v806 = vmul.f32 %v740, 0.01
    %v807 = vmul.f32 %v760, 0.01
    %v808 = vmul.f32 %v780, 0.01
    %v809 = vmul.f32 %v800, 0.01
    %v810 = vsel %vm802, %v740, %v806
    %v811 = vsel %vm803, %v760, %v807
    %v812 = vsel %vm804, %v780, %v808
    %v813 = vsel %vm805, %v800, %v809
    %v814 = vmax.f32 %v713, %v810
    %v815 = vmax.f32 %v714, %v811
    %v816 = vmax.f32 %v715, %v812
    %v817 = vmax.f32 %v716, %v813
    %s818 = scalar_lea.vmem %s0, 48
    %v819 = vld [vmem:[%s818] sm:$0xff]
    %v821 = vsel %vm217, %v819, 0
    %823 = vmatpush.msra.mxu0 0.0
    %824 = vmatpush.msra.mxu0 0.0
    %825 = vmatpush.msra.mxu0 0.0
    %826 = vmatpush.msra.mxu0 0.0
    %827 = vmatpush.msra.mxu0 0.0
    %828 = vmatpush.msra.mxu0 0.0
    %829 = vmatpush.msra.mxu0 0.0
    %830 = vmatpush.msra.mxu0 0.0
    %831 = vmatpush.msra.mxu0 %v197
    %832 = vmatpush.msra.mxu0 %v193
    %833 = vmatpush.msra.mxu0 %v189
    %834 = vmatpush.msra.mxu0 %v185
    %835 = vmatpush.msra.mxu0 %v181
    %836 = vmatpush.msra.mxu0 %v177
    %837 = vmatpush.msra.mxu0 %v173
    %838 = vmatpush.msra.mxu0 %v169
    %839 = vmatmul.f32.gmra.mxu0 %v821
    %v840 = vpop.f32.mrf.mxu0
    %v841 = vadd.f32 %v209, %v840
    %842 = vdwg.mxu0
    %843 = vmatpush.msra.mxu0 0.0
    %844 = vmatpush.msra.mxu0 0.0
    %845 = vmatpush.msra.mxu0 0.0
    %846 = vmatpush.msra.mxu0 0.0
    %847 = vmatpush.msra.mxu0 0.0
    %848 = vmatpush.msra.mxu0 0.0
    %849 = vmatpush.msra.mxu0 0.0
    %850 = vmatpush.msra.mxu0 0.0
    %851 = vmatpush.msra.mxu0 %v198
    %852 = vmatpush.msra.mxu0 %v194
    %853 = vmatpush.msra.mxu0 %v190
    %854 = vmatpush.msra.mxu0 %v186
    %855 = vmatpush.msra.mxu0 %v182
    %856 = vmatpush.msra.mxu0 %v178
    %857 = vmatpush.msra.mxu0 %v174
    %858 = vmatpush.msra.mxu0 %v170
    %859 = vmatmul.f32.gmra.mxu0 %v821
    %v860 = vpop.f32.mrf.mxu0
    %v861 = vadd.f32 %v210, %v860
    %862 = vdwg.mxu0
    %863 = vmatpush.msra.mxu0 0.0
    %864 = vmatpush.msra.mxu0 0.0
    %865 = vmatpush.msra.mxu0 0.0
    %866 = vmatpush.msra.mxu0 0.0
    %867 = vmatpush.msra.mxu0 0.0
    %868 = vmatpush.msra.mxu0 0.0
    %869 = vmatpush.msra.mxu0 0.0
    %870 = vmatpush.msra.mxu0 0.0
    %871 = vmatpush.msra.mxu0 %v199
    %872 = vmatpush.msra.mxu0 %v195
    %873 = vmatpush.msra.mxu0 %v191
    %874 = vmatpush.msra.mxu0 %v187
    %875 = vmatpush.msra.mxu0 %v183
    %876 = vmatpush.msra.mxu0 %v179
    %877 = vmatpush.msra.mxu0 %v175
    %878 = vmatpush.msra.mxu0 %v171
    %879 = vmatmul.f32.gmra.mxu0 %v821
    %v880 = vpop.f32.mrf.mxu0
    %v881 = vadd.f32 %v211, %v880
    %882 = vdwg.mxu0
    %883 = vmatpush.msra.mxu0 0.0
    %884 = vmatpush.msra.mxu0 0.0
    %885 = vmatpush.msra.mxu0 0.0
    %886 = vmatpush.msra.mxu0 0.0
    %887 = vmatpush.msra.mxu0 0.0
    %888 = vmatpush.msra.mxu0 0.0
    %889 = vmatpush.msra.mxu0 0.0
    %890 = vmatpush.msra.mxu0 0.0
    %891 = vmatpush.msra.mxu0 %v200
    %892 = vmatpush.msra.mxu0 %v196
    %893 = vmatpush.msra.mxu0 %v192
    %894 = vmatpush.msra.mxu0 %v188
    %895 = vmatpush.msra.mxu0 %v184
    %896 = vmatpush.msra.mxu0 %v180
    %897 = vmatpush.msra.mxu0 %v176
    %898 = vmatpush.msra.mxu0 %v172
    %899 = vmatmul.f32.gmra.mxu0 %v821
    %v900 = vpop.f32.mrf.mxu0
    %v901 = vadd.f32 %v212, %v900
    %902 = vdwg.mxu0
    %vm903 = vcmp.gt.f32.partialorder %v841, 0.0
    %vm904 = vcmp.gt.f32.partialorder %v861, 0.0
    %vm905 = vcmp.gt.f32.partialorder %v881, 0.0
    %vm906 = vcmp.gt.f32.partialorder %v901, 0.0
    %v907 = vmul.f32 %v841, 0.01
    %v908 = vmul.f32 %v861, 0.01
    %v909 = vmul.f32 %v881, 0.01
    %v910 = vmul.f32 %v901, 0.01
    %v911 = vsel %vm903, %v841, %v907
    %v912 = vsel %vm904, %v861, %v908
    %v913 = vsel %vm905, %v881, %v909
    %v914 = vsel %vm906, %v901, %v910
    %v915 = vmax.f32 %v814, %v911
    %v916 = vmax.f32 %v815, %v912
    %v917 = vmax.f32 %v816, %v913
    %v918 = vmax.f32 %v817, %v914
    %s919 = scalar_lea.vmem %s0, 56
    %v920 = vld [vmem:[%s919] sm:$0xff]
    %v922 = vsel %vm217, %v920, 0
    %924 = vmatpush.msra.mxu0 0.0
    %925 = vmatpush.msra.mxu0 0.0
    %926 = vmatpush.msra.mxu0 0.0
    %927 = vmatpush.msra.mxu0 0.0
    %928 = vmatpush.msra.mxu0 0.0
    %929 = vmatpush.msra.mxu0 0.0
    %930 = vmatpush.msra.mxu0 0.0
    %931 = vmatpush.msra.mxu0 0.0
    %932 = vmatpush.msra.mxu0 %v197
    %933 = vmatpush.msra.mxu0 %v193
    %934 = vmatpush.msra.mxu0 %v189
    %935 = vmatpush.msra.mxu0 %v185
    %936 = vmatpush.msra.mxu0 %v181
    %937 = vmatpush.msra.mxu0 %v177
    %938 = vmatpush.msra.mxu0 %v173
    %939 = vmatpush.msra.mxu0 %v169
    %940 = vmatmul.f32.gmra.mxu0 %v922
    %v941 = vpop.f32.mrf.mxu0
    %v942 = vadd.f32 %v209, %v941
    %943 = vdwg.mxu0
    %944 = vmatpush.msra.mxu0 0.0
    %945 = vmatpush.msra.mxu0 0.0
    %946 = vmatpush.msra.mxu0 0.0
    %947 = vmatpush.msra.mxu0 0.0
    %948 = vmatpush.msra.mxu0 0.0
    %949 = vmatpush.msra.mxu0 0.0
    %950 = vmatpush.msra.mxu0 0.0
    %951 = vmatpush.msra.mxu0 0.0
    %952 = vmatpush.msra.mxu0 %v198
    %953 = vmatpush.msra.mxu0 %v194
    %954 = vmatpush.msra.mxu0 %v190
    %955 = vmatpush.msra.mxu0 %v186
    %956 = vmatpush.msra.mxu0 %v182
    %957 = vmatpush.msra.mxu0 %v178
    %958 = vmatpush.msra.mxu0 %v174
    %959 = vmatpush.msra.mxu0 %v170
    %960 = vmatmul.f32.gmra.mxu0 %v922
    %v961 = vpop.f32.mrf.mxu0
    %v962 = vadd.f32 %v210, %v961
    %963 = vdwg.mxu0
    %964 = vmatpush.msra.mxu0 0.0
    %965 = vmatpush.msra.mxu0 0.0
    %966 = vmatpush.msra.mxu0 0.0
    %967 = vmatpush.msra.mxu0 0.0
    %968 = vmatpush.msra.mxu0 0.0
    %969 = vmatpush.msra.mxu0 0.0
    %970 = vmatpush.msra.mxu0 0.0
    %971 = vmatpush.msra.mxu0 0.0
    %972 = vmatpush.msra.mxu0 %v199
    %973 = vmatpush.msra.mxu0 %v195
    %974 = vmatpush.msra.mxu0 %v191
    %975 = vmatpush.msra.mxu0 %v187
    %976 = vmatpush.msra.mxu0 %v183
    %977 = vmatpush.msra.mxu0 %v179
    %978 = vmatpush.msra.mxu0 %v175
    %979 = vmatpush.msra.mxu0 %v171
    %980 = vmatmul.f32.gmra.mxu0 %v922
    %v981 = vpop.f32.mrf.mxu0
    %v982 = vadd.f32 %v211, %v981
    %983 = vdwg.mxu0
    %984 = vmatpush.msra.mxu0 0.0
    %985 = vmatpush.msra.mxu0 0.0
    %986 = vmatpush.msra.mxu0 0.0
    %987 = vmatpush.msra.mxu0 0.0
    %988 = vmatpush.msra.mxu0 0.0
    %989 = vmatpush.msra.mxu0 0.0
    %990 = vmatpush.msra.mxu0 0.0
    %991 = vmatpush.msra.mxu0 0.0
    %992 = vmatpush.msra.mxu0 %v200
    %993 = vmatpush.msra.mxu0 %v196
    %994 = vmatpush.msra.mxu0 %v192
    %995 = vmatpush.msra.mxu0 %v188
    %996 = vmatpush.msra.mxu0 %v184
    %997 = vmatpush.msra.mxu0 %v180
    %998 = vmatpush.msra.mxu0 %v176
    %999 = vmatpush.msra.mxu0 %v172
    %1000 = vmatmul.f32.gmra.mxu0 %v922
    %v1001 = vpop.f32.mrf.mxu0
    %v1002 = vadd.f32 %v212, %v1001
    %1003 = vdwg.mxu0
    %vm1004 = vcmp.gt.f32.partialorder %v942, 0.0
    %vm1005 = vcmp.gt.f32.partialorder %v962, 0.0
    %vm1006 = vcmp.gt.f32.partialorder %v982, 0.0
    %vm1007 = vcmp.gt.f32.partialorder %v1002, 0.0
    %v1008 = vmul.f32 %v942, 0.01
    %v1009 = vmul.f32 %v962, 0.01
    %v1010 = vmul.f32 %v982, 0.01
    %v1011 = vmul.f32 %v1002, 0.01
    %v1012 = vsel %vm1004, %v942, %v1008
    %v1013 = vsel %vm1005, %v962, %v1009
    %v1014 = vsel %vm1006, %v982, %v1010
    %v1015 = vsel %vm1007, %v1002, %v1011
    %v1016 = vmax.f32 %v915, %v1012
    %v1017 = vmax.f32 %v916, %v1013
    %v1018 = vmax.f32 %v917, %v1014
    %v1019 = vmax.f32 %v918, %v1015
    %s1020 = scalar_lea.vmem %s0, 64
    %v1021 = vld [vmem:[%s1020] sm:$0xff]
    %v1023 = vsel %vm217, %v1021, 0
    %1025 = vmatpush.msra.mxu0 0.0
    %1026 = vmatpush.msra.mxu0 0.0
    %1027 = vmatpush.msra.mxu0 0.0
    %1028 = vmatpush.msra.mxu0 0.0
    %1029 = vmatpush.msra.mxu0 0.0
    %1030 = vmatpush.msra.mxu0 0.0
    %1031 = vmatpush.msra.mxu0 0.0
    %1032 = vmatpush.msra.mxu0 0.0
    %1033 = vmatpush.msra.mxu0 %v197
    %1034 = vmatpush.msra.mxu0 %v193
    %1035 = vmatpush.msra.mxu0 %v189
    %1036 = vmatpush.msra.mxu0 %v185
    %1037 = vmatpush.msra.mxu0 %v181
    %1038 = vmatpush.msra.mxu0 %v177
    %1039 = vmatpush.msra.mxu0 %v173
    %1040 = vmatpush.msra.mxu0 %v169
    %1041 = vmatmul.f32.gmra.mxu0 %v1023
    %v1042 = vpop.f32.mrf.mxu0
    %v1043 = vadd.f32 %v209, %v1042
    %1044 = vdwg.mxu0
    %1045 = vmatpush.msra.mxu0 0.0
    %1046 = vmatpush.msra.mxu0 0.0
    %1047 = vmatpush.msra.mxu0 0.0
    %1048 = vmatpush.msra.mxu0 0.0
    %1049 = vmatpush.msra.mxu0 0.0
    %1050 = vmatpush.msra.mxu0 0.0
    %1051 = vmatpush.msra.mxu0 0.0
    %1052 = vmatpush.msra.mxu0 0.0
    %1053 = vmatpush.msra.mxu0 %v198
    %1054 = vmatpush.msra.mxu0 %v194
    %1055 = vmatpush.msra.mxu0 %v190
    %1056 = vmatpush.msra.mxu0 %v186
    %1057 = vmatpush.msra.mxu0 %v182
    %1058 = vmatpush.msra.mxu0 %v178
    %1059 = vmatpush.msra.mxu0 %v174
    %1060 = vmatpush.msra.mxu0 %v170
    %1061 = vmatmul.f32.gmra.mxu0 %v1023
    %v1062 = vpop.f32.mrf.mxu0
    %v1063 = vadd.f32 %v210, %v1062
    %1064 = vdwg.mxu0
    %1065 = vmatpush.msra.mxu0 0.0
    %1066 = vmatpush.msra.mxu0 0.0
    %1067 = vmatpush.msra.mxu0 0.0
    %1068 = vmatpush.msra.mxu0 0.0
    %1069 = vmatpush.msra.mxu0 0.0
    %1070 = vmatpush.msra.mxu0 0.0
    %1071 = vmatpush.msra.mxu0 0.0
    %1072 = vmatpush.msra.mxu0 0.0
    %1073 = vmatpush.msra.mxu0 %v199
    %1074 = vmatpush.msra.mxu0 %v195
    %1075 = vmatpush.msra.mxu0 %v191
    %1076 = vmatpush.msra.mxu0 %v187
    %1077 = vmatpush.msra.mxu0 %v183
    %1078 = vmatpush.msra.mxu0 %v179
    %1079 = vmatpush.msra.mxu0 %v175
    %1080 = vmatpush.msra.mxu0 %v171
    %1081 = vmatmul.f32.gmra.mxu0 %v1023
    %v1082 = vpop.f32.mrf.mxu0
    %v1083 = vadd.f32 %v211, %v1082
    %1084 = vdwg.mxu0
    %1085 = vmatpush.msra.mxu0 0.0
    %1086 = vmatpush.msra.mxu0 0.0
    %1087 = vmatpush.msra.mxu0 0.0
    %1088 = vmatpush.msra.mxu0 0.0
    %1089 = vmatpush.msra.mxu0 0.0
    %1090 = vmatpush.msra.mxu0 0.0
    %1091 = vmatpush.msra.mxu0 0.0
    %1092 = vmatpush.msra.mxu0 0.0
    %1093 = vmatpush.msra.mxu0 %v200
    %1094 = vmatpush.msra.mxu0 %v196
    %1095 = vmatpush.msra.mxu0 %v192
    %1096 = vmatpush.msra.mxu0 %v188
    %1097 = vmatpush.msra.mxu0 %v184
    %1098 = vmatpush.msra.mxu0 %v180
    %1099 = vmatpush.msra.mxu0 %v176
    %1100 = vmatpush.msra.mxu0 %v172
    %1101 = vmatmul.f32.gmra.mxu0 %v1023
    %v1102 = vpop.f32.mrf.mxu0
    %v1103 = vadd.f32 %v212, %v1102
    %1104 = vdwg.mxu0
    %vm1105 = vcmp.gt.f32.partialorder %v1043, 0.0
    %vm1106 = vcmp.gt.f32.partialorder %v1063, 0.0
    %vm1107 = vcmp.gt.f32.partialorder %v1083, 0.0
    %vm1108 = vcmp.gt.f32.partialorder %v1103, 0.0
    %v1109 = vmul.f32 %v1043, 0.01
    %v1110 = vmul.f32 %v1063, 0.01
    %v1111 = vmul.f32 %v1083, 0.01
    %v1112 = vmul.f32 %v1103, 0.01
    %v1113 = vsel %vm1105, %v1043, %v1109
    %v1114 = vsel %vm1106, %v1063, %v1110
    %v1115 = vsel %vm1107, %v1083, %v1111
    %v1116 = vsel %vm1108, %v1103, %v1112
    %v1117 = vmax.f32 %v1016, %v1113
    %v1118 = vmax.f32 %v1017, %v1114
    %v1119 = vmax.f32 %v1018, %v1115
    %v1120 = vmax.f32 %v1019, %v1116
    %s1121 = scalar_lea.vmem %s0, 72
    %v1122 = vld [vmem:[%s1121] sm:$0xff]
    %v1124 = vsel %vm217, %v1122, 0
    %1126 = vmatpush.msra.mxu0 0.0
    %1127 = vmatpush.msra.mxu0 0.0
    %1128 = vmatpush.msra.mxu0 0.0
    %1129 = vmatpush.msra.mxu0 0.0
    %1130 = vmatpush.msra.mxu0 0.0
    %1131 = vmatpush.msra.mxu0 0.0
    %1132 = vmatpush.msra.mxu0 0.0
    %1133 = vmatpush.msra.mxu0 0.0
    %1134 = vmatpush.msra.mxu0 %v197
    %1135 = vmatpush.msra.mxu0 %v193
    %1136 = vmatpush.msra.mxu0 %v189
    %1137 = vmatpush.msra.mxu0 %v185
    %1138 = vmatpush.msra.mxu0 %v181
    %1139 = vmatpush.msra.mxu0 %v177
    %1140 = vmatpush.msra.mxu0 %v173
    %1141 = vmatpush.msra.mxu0 %v169
    %1142 = vmatmul.f32.gmra.mxu0 %v1124
    %v1143 = vpop.f32.mrf.mxu0
    %v1144 = vadd.f32 %v209, %v1143
    %1145 = vdwg.mxu0
    %1146 = vmatpush.msra.mxu0 0.0
    %1147 = vmatpush.msra.mxu0 0.0
    %1148 = vmatpush.msra.mxu0 0.0
    %1149 = vmatpush.msra.mxu0 0.0
    %1150 = vmatpush.msra.mxu0 0.0
    %1151 = vmatpush.msra.mxu0 0.0
    %1152 = vmatpush.msra.mxu0 0.0
    %1153 = vmatpush.msra.mxu0 0.0
    %1154 = vmatpush.msra.mxu0 %v198
    %1155 = vmatpush.msra.mxu0 %v194
    %1156 = vmatpush.msra.mxu0 %v190
    %1157 = vmatpush.msra.mxu0 %v186
    %1158 = vmatpush.msra.mxu0 %v182
    %1159 = vmatpush.msra.mxu0 %v178
    %1160 = vmatpush.msra.mxu0 %v174
    %1161 = vmatpush.msra.mxu0 %v170
    %1162 = vmatmul.f32.gmra.mxu0 %v1124
    %v1163 = vpop.f32.mrf.mxu0
    %v1164 = vadd.f32 %v210, %v1163
    %1165 = vdwg.mxu0
    %1166 = vmatpush.msra.mxu0 0.0
    %1167 = vmatpush.msra.mxu0 0.0
    %1168 = vmatpush.msra.mxu0 0.0
    %1169 = vmatpush.msra.mxu0 0.0
    %1170 = vmatpush.msra.mxu0 0.0
    %1171 = vmatpush.msra.mxu0 0.0
    %1172 = vmatpush.msra.mxu0 0.0
    %1173 = vmatpush.msra.mxu0 0.0
    %1174 = vmatpush.msra.mxu0 %v199
    %1175 = vmatpush.msra.mxu0 %v195
    %1176 = vmatpush.msra.mxu0 %v191
    %1177 = vmatpush.msra.mxu0 %v187
    %1178 = vmatpush.msra.mxu0 %v183
    %1179 = vmatpush.msra.mxu0 %v179
    %1180 = vmatpush.msra.mxu0 %v175
    %1181 = vmatpush.msra.mxu0 %v171
    %1182 = vmatmul.f32.gmra.mxu0 %v1124
    %v1183 = vpop.f32.mrf.mxu0
    %v1184 = vadd.f32 %v211, %v1183
    %1185 = vdwg.mxu0
    %1186 = vmatpush.msra.mxu0 0.0
    %1187 = vmatpush.msra.mxu0 0.0
    %1188 = vmatpush.msra.mxu0 0.0
    %1189 = vmatpush.msra.mxu0 0.0
    %1190 = vmatpush.msra.mxu0 0.0
    %1191 = vmatpush.msra.mxu0 0.0
    %1192 = vmatpush.msra.mxu0 0.0
    %1193 = vmatpush.msra.mxu0 0.0
    %1194 = vmatpush.msra.mxu0 %v200
    %1195 = vmatpush.msra.mxu0 %v196
    %1196 = vmatpush.msra.mxu0 %v192
    %1197 = vmatpush.msra.mxu0 %v188
    %1198 = vmatpush.msra.mxu0 %v184
    %1199 = vmatpush.msra.mxu0 %v180
    %1200 = vmatpush.msra.mxu0 %v176
    %1201 = vmatpush.msra.mxu0 %v172
    %1202 = vmatmul.f32.gmra.mxu0 %v1124
    %v1203 = vpop.f32.mrf.mxu0
    %v1204 = vadd.f32 %v212, %v1203
    %1205 = vdwg.mxu0
    %vm1206 = vcmp.gt.f32.partialorder %v1144, 0.0
    %vm1207 = vcmp.gt.f32.partialorder %v1164, 0.0
    %vm1208 = vcmp.gt.f32.partialorder %v1184, 0.0
    %vm1209 = vcmp.gt.f32.partialorder %v1204, 0.0
    %v1210 = vmul.f32 %v1144, 0.01
    %v1211 = vmul.f32 %v1164, 0.01
    %v1212 = vmul.f32 %v1184, 0.01
    %v1213 = vmul.f32 %v1204, 0.01
    %v1214 = vsel %vm1206, %v1144, %v1210
    %v1215 = vsel %vm1207, %v1164, %v1211
    %v1216 = vsel %vm1208, %v1184, %v1212
    %v1217 = vsel %vm1209, %v1204, %v1213
    %v1218 = vmax.f32 %v1117, %v1214
    %v1219 = vmax.f32 %v1118, %v1215
    %v1220 = vmax.f32 %v1119, %v1216
    %v1221 = vmax.f32 %v1120, %v1217
    %v1222 = vld [vmem:[#allocation5] sm:$0xff]
    %v1223 = vld [vmem:[#allocation5 + $0x8] sm:$0xff]
    %v1224 = vld [vmem:[#allocation5 + $0x10] sm:$0xff]
    %v1225 = vld [vmem:[#allocation5 + $0x18] sm:$0xff]
    %v1226 = vld [vmem:[#allocation5 + $0x20] sm:$0xff]
    %v1227 = vld [vmem:[#allocation5 + $0x28] sm:$0xff]
    %v1228 = vld [vmem:[#allocation5 + $0x30] sm:$0xff]
    %v1229 = vld [vmem:[#allocation5 + $0x38] sm:$0xff]
    %v1230 = vld [vmem:[#allocation5 + $0x40] sm:$0xff]
    %v1231 = vld [vmem:[#allocation5 + $0x48] sm:$0xff]
    %v1232 = vld [vmem:[#allocation5 + $0x50] sm:$0xff]
    %v1233 = vld [vmem:[#allocation5 + $0x58] sm:$0xff]
    %v1234 = vld [vmem:[#allocation5 + $0x60] sm:$0xff]
    %v1235 = vld [vmem:[#allocation5 + $0x68] sm:$0xff]
    %v1236 = vld [vmem:[#allocation5 + $0x70] sm:$0xff]
    %v1237 = vld [vmem:[#allocation5 + $0x78] sm:$0xff]
    %v1238 = vld [vmem:[#allocation5 + $0x80] sm:$0xff]
    %v1239 = vld [vmem:[#allocation5 + $0x88] sm:$0xff]
    %v1240 = vld [vmem:[#allocation5 + $0x90] sm:$0xff]
    %v1241 = vld [vmem:[#allocation5 + $0x98] sm:$0xff]
    %v1242 = vld [vmem:[#allocation5 + $0xa0] sm:$0xff]
    %v1243 = vld [vmem:[#allocation5 + $0xa8] sm:$0xff]
    %v1244 = vld [vmem:[#allocation5 + $0xb0] sm:$0xff]
    %v1245 = vld [vmem:[#allocation5 + $0xb8] sm:$0xff]
    %v1246 = vld [vmem:[#allocation5 + $0xc0] sm:$0xff]
    %v1247 = vld [vmem:[#allocation5 + $0xc8] sm:$0xff]
    %v1248 = vld [vmem:[#allocation5 + $0xd0] sm:$0xff]
    %v1249 = vld [vmem:[#allocation5 + $0xd8] sm:$0xff]
    %v1250 = vld [vmem:[#allocation5 + $0xe0] sm:$0xff]
    %v1251 = vld [vmem:[#allocation5 + $0xe8] sm:$0xff]
    %v1252 = vld [vmem:[#allocation5 + $0xf0] sm:$0xff]
    %v1253 = vld [vmem:[#allocation5 + $0xf8] sm:$0xff]
    %v1254 = vld [vmem:[#allocation5 + $0x100] sm:$0xff]
    %v1255 = vld [vmem:[#allocation5 + $0x108] sm:$0xff]
    %v1256 = vld [vmem:[#allocation5 + $0x110] sm:$0xff]
    %v1257 = vld [vmem:[#allocation5 + $0x118] sm:$0xff]
    %v1258 = vld [vmem:[#allocation5 + $0x120] sm:$0xff]
    %v1259 = vld [vmem:[#allocation5 + $0x128] sm:$0xff]
    %v1260 = vld [vmem:[#allocation5 + $0x130] sm:$0xff]
    %v1261 = vld [vmem:[#allocation5 + $0x138] sm:$0xff]
    %v1262 = vld [vmem:[#allocation5 + $0x140] sm:$0xff]
    %v1263 = vld [vmem:[#allocation5 + $0x148] sm:$0xff]
    %v1264 = vld [vmem:[#allocation5 + $0x150] sm:$0xff]
    %v1265 = vld [vmem:[#allocation5 + $0x158] sm:$0xff]
    %v1266 = vld [vmem:[#allocation5 + $0x160] sm:$0xff]
    %v1267 = vld [vmem:[#allocation5 + $0x168] sm:$0xff]
    %v1268 = vld [vmem:[#allocation5 + $0x170] sm:$0xff]
    %v1269 = vld [vmem:[#allocation5 + $0x178] sm:$0xff]
    %v1270 = vld [vmem:[#allocation5 + $0x180] sm:$0xff]
    %v1271 = vld [vmem:[#allocation5 + $0x188] sm:$0xff]
    %v1272 = vld [vmem:[#allocation5 + $0x190] sm:$0xff]
    %v1273 = vld [vmem:[#allocation5 + $0x198] sm:$0xff]
    %v1274 = vld [vmem:[#allocation5 + $0x1a0] sm:$0xff]
    %v1275 = vld [vmem:[#allocation5 + $0x1a8] sm:$0xff]
    %v1276 = vld [vmem:[#allocation5 + $0x1b0] sm:$0xff]
    %v1277 = vld [vmem:[#allocation5 + $0x1b8] sm:$0xff]
    %v1278 = vld [vmem:[#allocation5 + $0x1c0] sm:$0xff]
    %v1279 = vld [vmem:[#allocation5 + $0x1c8] sm:$0xff]
    %v1280 = vld [vmem:[#allocation5 + $0x1d0] sm:$0xff]
    %v1281 = vld [vmem:[#allocation5 + $0x1d8] sm:$0xff]
    %v1282 = vld [vmem:[#allocation5 + $0x1e0] sm:$0xff]
    %v1283 = vld [vmem:[#allocation5 + $0x1e8] sm:$0xff]
    %v1284 = vld [vmem:[#allocation5 + $0x1f0] sm:$0xff]
    %v1285 = vld [vmem:[#allocation5 + $0x1f8] sm:$0xff]
    %v1286 = vld [vmem:[%s13] sm:$0x1]
    %v1288 = vperm.slane %v1286, 0
    %1290 = vmatpush.msra.mxu0 %v1237
    %1291 = vmatpush.msra.mxu0 %v1236
    %1292 = vmatpush.msra.mxu0 %v1235
    %1293 = vmatpush.msra.mxu0 %v1234
    %1294 = vmatpush.msra.mxu0 %v1233
    %1295 = vmatpush.msra.mxu0 %v1232
    %1296 = vmatpush.msra.mxu0 %v1231
    %1297 = vmatpush.msra.mxu0 %v1230
    %1298 = vmatpush.msra.mxu0 %v1229
    %1299 = vmatpush.msra.mxu0 %v1228
    %1300 = vmatpush.msra.mxu0 %v1227
    %1301 = vmatpush.msra.mxu0 %v1226
    %1302 = vmatpush.msra.mxu0 %v1225
    %1303 = vmatpush.msra.mxu0 %v1224
    %1304 = vmatpush.msra.mxu0 %v1223
    %1305 = vmatpush.msra.mxu0 %v1222
    %1306 = vmatmul.f32.gmra.mxu0 %v1218
    %v1307 = vpop.f32.mrf.mxu0
    %v1308 = vadd.f32 %v1288, %v1307
    %1309 = vdwg.mxu0
    %1310 = vmatpush.msra.mxu0 %v1253
    %1311 = vmatpush.msra.mxu0 %v1252
    %1312 = vmatpush.msra.mxu0 %v1251
    %1313 = vmatpush.msra.mxu0 %v1250
    %1314 = vmatpush.msra.mxu0 %v1249
    %1315 = vmatpush.msra.mxu0 %v1248
    %1316 = vmatpush.msra.mxu0 %v1247
    %1317 = vmatpush.msra.mxu0 %v1246
    %1318 = vmatpush.msra.mxu0 %v1245
    %1319 = vmatpush.msra.mxu0 %v1244
    %1320 = vmatpush.msra.mxu0 %v1243
    %1321 = vmatpush.msra.mxu0 %v1242
    %1322 = vmatpush.msra.mxu0 %v1241
    %1323 = vmatpush.msra.mxu0 %v1240
    %1324 = vmatpush.msra.mxu0 %v1239
    %1325 = vmatpush.msra.mxu0 %v1238
    %1326 = vmatmul.f32.gmra.mxu0 %v1219
    %v1327 = vpop.f32.mrf.mxu0
    %v1328 = vadd.f32 %v1308, %v1327
    %1329 = vdwg.mxu0
    %1330 = vmatpush.msra.mxu0 %v1269
    %1331 = vmatpush.msra.mxu0 %v1268
    %1332 = vmatpush.msra.mxu0 %v1267
    %1333 = vmatpush.msra.mxu0 %v1266
    %1334 = vmatpush.msra.mxu0 %v1265
    %1335 = vmatpush.msra.mxu0 %v1264
    %1336 = vmatpush.msra.mxu0 %v1263
    %1337 = vmatpush.msra.mxu0 %v1262
    %1338 = vmatpush.msra.mxu0 %v1261
    %1339 = vmatpush.msra.mxu0 %v1260
    %1340 = vmatpush.msra.mxu0 %v1259
    %1341 = vmatpush.msra.mxu0 %v1258
    %1342 = vmatpush.msra.mxu0 %v1257
    %1343 = vmatpush.msra.mxu0 %v1256
    %1344 = vmatpush.msra.mxu0 %v1255
    %1345 = vmatpush.msra.mxu0 %v1254
    %1346 = vmatmul.f32.gmra.mxu0 %v1220
    %v1347 = vpop.f32.mrf.mxu0
    %v1348 = vadd.f32 %v1328, %v1347
    %1349 = vdwg.mxu0
    %1350 = vmatpush.msra.mxu0 %v1285
    %1351 = vmatpush.msra.mxu0 %v1284
    %1352 = vmatpush.msra.mxu0 %v1283
    %1353 = vmatpush.msra.mxu0 %v1282
    %1354 = vmatpush.msra.mxu0 %v1281
    %1355 = vmatpush.msra.mxu0 %v1280
    %1356 = vmatpush.msra.mxu0 %v1279
    %1357 = vmatpush.msra.mxu0 %v1278
    %1358 = vmatpush.msra.mxu0 %v1277
    %1359 = vmatpush.msra.mxu0 %v1276
    %1360 = vmatpush.msra.mxu0 %v1275
    %1361 = vmatpush.msra.mxu0 %v1274
    %1362 = vmatpush.msra.mxu0 %v1273
    %1363 = vmatpush.msra.mxu0 %v1272
    %1364 = vmatpush.msra.mxu0 %v1271
    %1365 = vmatpush.msra.mxu0 %v1270
    %1366 = vmatmul.f32.gmra.mxu0 %v1221
    %v1367 = vpop.f32.mrf.mxu0
    %v1368 = vadd.f32 %v1348, %v1367
    %1369 = vdwg.mxu0
    %v1370 = vlaneseq
    %v1371 = vand.u32 %v1370, 127
    %v1372 = vld [vmem:[%s1] sm:$0xff]
    %v1373 = vld [vmem:[%s1 + $0x8] sm:$0xff]
    %v1374 = vld [vmem:[%s1 + $0x10] sm:$0xff]
    %v1375 = vld [vmem:[%s1 + $0x18] sm:$0xff]
    %v1376 = vld [vmem:[%s1 + $0x20] sm:$0xff]
    %v1377 = vld [vmem:[%s1 + $0x28] sm:$0xff]
    %v1378 = vld [vmem:[%s1 + $0x30] sm:$0xff]
    %v1379 = vld [vmem:[%s1 + $0x38] sm:$0xff]
    %1380 = vset.pattern.permute.xlu0 0
    %1381 = vperm.xlu0 %1380, %v1372
    %v1382 = vpop.permute.xlu0 %1381
    %1383 = vset.pattern.permute.xlu0 0
    %1384 = vperm.xlu0 %1383, %v1373
    %v1385 = vpop.permute.xlu0 %1384
    %1386 = vset.pattern.permute.xlu0 0
    %1387 = vperm.xlu0 %1386, %v1374
    %v1388 = vpop.permute.xlu0 %1387
    %1389 = vset.pattern.permute.xlu0 0
    %1390 = vperm.xlu0 %1389, %v1375
    %v1391 = vpop.permute.xlu0 %1390
    %1392 = vset.pattern.permute.xlu0 0
    %1393 = vperm.xlu0 %1392, %v1376
    %v1394 = vpop.permute.xlu0 %1393
    %1395 = vset.pattern.permute.xlu0 0
    %1396 = vperm.xlu0 %1395, %v1377
    %v1397 = vpop.permute.xlu0 %1396
    %1398 = vset.pattern.permute.xlu0 0
    %1399 = vperm.xlu0 %1398, %v1378
    %v1400 = vpop.permute.xlu0 %1399
    %1401 = vset.pattern.permute.xlu0 0
    %1402 = vperm.xlu0 %1401, %v1379
    %v1403 = vpop.permute.xlu0 %1402
    %vm1404 = vcmp.eq.s32.totalorder %v1382, %v1371
    %vm1405 = vcmp.eq.s32.totalorder %v1385, %v1371
    %vm1406 = vcmp.eq.s32.totalorder %v1388, %v1371
    %vm1407 = vcmp.eq.s32.totalorder %v1391, %v1371
    %vm1408 = vcmp.eq.s32.totalorder %v1394, %v1371
    %vm1409 = vcmp.eq.s32.totalorder %v1397, %v1371
    %vm1410 = vcmp.eq.s32.totalorder %v1400, %v1371
    %vm1411 = vcmp.eq.s32.totalorder %v1403, %v1371
    %v1412 = vsel %vm1404, 1, 0
    %v1413 = vsel %vm1405, 1, 0
    %v1414 = vsel %vm1406, 1, 0
    %v1415 = vsel %vm1407, 1, 0
    %v1416 = vsel %vm1408, 1, 0
    %v1417 = vsel %vm1409, 1, 0
    %v1418 = vsel %vm1410, 1, 0
    %v1419 = vsel %vm1411, 1, 0
    %v1420 = vcvt.s32.f32 %v1412
    %v1421 = vcvt.s32.f32 %v1413
    %v1422 = vcvt.s32.f32 %v1414
    %v1423 = vcvt.s32.f32 %v1415
    %v1424 = vcvt.s32.f32 %v1416
    %v1425 = vcvt.s32.f32 %v1417
    %v1426 = vcvt.s32.f32 %v1418
    %v1427 = vcvt.s32.f32 %v1419
    %v1428 = vld [vmem:[%s9] sm:$0xff]
    %v1429 = vld [vmem:[%s9 + $0x8] sm:$0xff]
    %v1430 = vld [vmem:[%s9 + $0x10] sm:$0xff]
    %v1431 = vld [vmem:[%s9 + $0x18] sm:$0xff]
    %v1432 = vld [vmem:[%s11] sm:$0xff]
    %v1433 = vld [vmem:[%s11 + $0x8] sm:$0xff]
    %vm1434 = vcmask 130048
    %v1436 = vsel %vm1434, %v1428, 0
    %v1439 = vsel %vm1434, %v1429, 0
    %v1442 = vsel %vm1434, %v1430, 0
    %v1445 = vsel %vm1434, %v1431, 0
    %1447 = vmatpush.msra.mxu0 0.0
    %1448 = vmatpush.msra.mxu0 0.0
    %1449 = vmatpush.msra.mxu0 0.0
    %1450 = vmatpush.msra.mxu0 0.0
    %1451 = vmatpush.msra.mxu0 0.0
    %1452 = vmatpush.msra.mxu0 0.0
    %1453 = vmatpush.msra.mxu0 0.0
    %1454 = vmatpush.msra.mxu0 0.0
    %1455 = vmatpush.msra.mxu0 0.0
    %1456 = vmatpush.msra.mxu0 0.0
    %1457 = vmatpush.msra.mxu0 0.0
    %1458 = vmatpush.msra.mxu0 0.0
    %1459 = vmatpush.msra.mxu0 0.0
    %1460 = vmatpush.msra.mxu0 0.0
    %1461 = vmatpush.msra.mxu0 %v1433
    %1462 = vmatpush.msra.mxu0 %v1432
    %1463 = vmatmul.f32.gmra.mxu0 %v1436
    %v1464 = vpop.f32.mrf.mxu0
    %v1465 = vadd.f32 0.0, %v1464
    %1466 = vmatmul.f32.gmra.mxu0 %v1439
    %v1467 = vpop.f32.mrf.mxu0
    %v1468 = vadd.f32 0.0, %v1467
    %1469 = vmatmul.f32.gmra.mxu0 %v1442
    %v1470 = vpop.f32.mrf.mxu0
    %v1471 = vadd.f32 0.0, %v1470
    %1472 = vmatmul.f32.gmra.mxu0 %v1445
    %v1473 = vpop.f32.mrf.mxu0
    %v1474 = vadd.f32 0.0, %v1473
    %1475 = vdwg.mxu0
    %vm1476 = vcmask 261120
    %v1478 = vsel %vm1476, %v1420, 0
    %v1481 = vsel %vm1476, %v1421, 0
    %v1484 = vsel %vm1476, %v1422, 0
    %v1487 = vsel %vm1476, %v1423, 0
    %v1490 = vsel %vm1476, %v1424, 0
    %v1493 = vsel %vm1476, %v1425, 0
    %v1496 = vsel %vm1476, %v1426, 0
    %v1499 = vsel %vm1476, %v1427, 0
    %1501 = vmatpush.msra.mxu0 0.0
    %1502 = vmatpush.msra.mxu0 0.0
    %1503 = vmatpush.msra.mxu0 0.0
    %1504 = vmatpush.msra.mxu0 0.0
    %1505 = vmatpush.msra.mxu0 0.0
    %1506 = vmatpush.msra.mxu0 0.0
    %1507 = vmatpush.msra.mxu0 0.0
    %1508 = vmatpush.msra.mxu0 0.0
    %1509 = vmatpush.msra.mxu0 0.0
    %1510 = vmatpush.msra.mxu0 0.0
    %1511 = vmatpush.msra.mxu0 0.0
    %1512 = vmatpush.msra.mxu0 0.0
    %1513 = vmatpush.msra.mxu0 %v1474
    %1514 = vmatpush.msra.mxu0 %v1471
    %1515 = vmatpush.msra.mxu0 %v1468
    %1516 = vmatpush.msra.mxu0 %v1465
    %1517 = vmatmul.f32.gmra.mxu0 %v1478
    %v1518 = vpop.f32.mrf.mxu0
    %v1519 = vadd.f32 0.0, %v1518
    %1520 = vmatmul.f32.gmra.mxu0 %v1481
    %v1521 = vpop.f32.mrf.mxu0
    %v1522 = vadd.f32 0.0, %v1521
    %1523 = vmatmul.f32.gmra.mxu0 %v1484
    %v1524 = vpop.f32.mrf.mxu0
    %v1525 = vadd.f32 0.0, %v1524
    %1526 = vmatmul.f32.gmra.mxu0 %v1487
    %v1527 = vpop.f32.mrf.mxu0
    %v1528 = vadd.f32 0.0, %v1527
    %1529 = vmatmul.f32.gmra.mxu0 %v1490
    %v1530 = vpop.f32.mrf.mxu0
    %v1531 = vadd.f32 0.0, %v1530
    %1532 = vmatmul.f32.gmra.mxu0 %v1493
    %v1533 = vpop.f32.mrf.mxu0
    %v1534 = vadd.f32 0.0, %v1533
    %1535 = vmatmul.f32.gmra.mxu0 %v1496
    %v1536 = vpop.f32.mrf.mxu0
    %v1537 = vadd.f32 0.0, %v1536
    %1538 = vmatmul.f32.gmra.mxu0 %v1499
    %v1539 = vpop.f32.mrf.mxu0
    %v1540 = vadd.f32 0.0, %v1539
    %1541 = vdwg.mxu0
    %v1542 = vld [vmem:[%s17] sm:$0x1]
    %v1544 = vperm.slane %v1542, 0
    %v1546 = vld [vmem:[%s20] sm:$0x1]
    %v1548 = vperm.slane %v1546, 0
    %v1550 = vld [vmem:[%s22] sm:$0x1]
    %v1552 = vperm.slane %v1550, 0
    %vm1554 = vcmp.ge.s32.totalorder %v1371, 96
    %v1555 = vld [vmem:[%s12] sm:$0xff]
    %v1556 = vld [vmem:[%s12 + $0x8] sm:$0xff]
    %v1557 = vld [vmem:[%s12 + $0x10] sm:$0xff]
    %v1558 = vld [vmem:[%s12 + $0x18] sm:$0xff]
    %v1559 = vld [vmem:[%s14] sm:$0xff]
    %v1560 = vld [vmem:[%s14 + $0x8] sm:$0xff]
    %v1561 = vld [vmem:[%s14 + $0x10] sm:$0xff]
    %v1562 = vld [vmem:[%s14 + $0x18] sm:$0xff]
    %v1563 = vld [vmem:[%s15] sm:$0xff]
    %v1564 = vld [vmem:[%s15 + $0x8] sm:$0x3]
    %v1565 = vld [vmem:[%s16] sm:$0xff]
    %v1566 = vld [vmem:[%s16 + $0x8] sm:$0xff]
    %v1567 = vld [vmem:[%s16 + $0x10] sm:$0xff]
    %v1568 = vld [vmem:[%s16 + $0x18] sm:$0xff]
    %v1569 = vld [vmem:[%s18] sm:$0xff]
    %v1570 = vld [vmem:[%s18 + $0x8] sm:$0xff]
    %v1571 = vld [vmem:[%s18 + $0x10] sm:$0xff]
    %v1572 = vld [vmem:[%s18 + $0x18] sm:$0xff]
    %v1573 = vld [vmem:[%s19] sm:$0xff]
    %v1574 = vld [vmem:[%s19 + $0x8] sm:$0xff]
    %v1575 = vld [vmem:[%s19 + $0x10] sm:$0xff]
    %v1576 = vld [vmem:[%s19 + $0x18] sm:$0xff]
    %v1577 = vld [vmem:[%s21] sm:$0xff]
    %v1578 = vld [vmem:[%s21 + $0x8] sm:$0xff]
    %v1579 = vld [vmem:[%s21 + $0x10] sm:$0xff]
    %v1580 = vld [vmem:[%s21 + $0x18] sm:$0xff]
    %v1581 = vld [vmem:[%s21 + $0x20] sm:$0xff]
    %v1582 = vld [vmem:[%s21 + $0x28] sm:$0xff]
    %v1583 = vld [vmem:[%s21 + $0x30] sm:$0x3]
    %v1584 = vld [vmem:[%s2] sm:$0xff]
    %s1585 = scalar_lea.vmem %s2, 8
    %v1586 = vld [vmem:[%s1585] sm:$0xff]
    %v1587 = vadd.f32 %v1368, %v1519
    %v1589 = vsel %vm1476, %v1584, 0
    %1591 = vmatpush.msra.mxu0 0.0
    %1592 = vmatpush.msra.mxu0 0.0
    %1593 = vmatpush.msra.mxu0 0.0
    %1594 = vmatpush.msra.mxu0 0.0
    %1595 = vmatpush.msra.mxu0 0.0
    %1596 = vmatpush.msra.mxu0 0.0
    %1597 = vmatpush.msra.mxu0 0.0
    %1598 = vmatpush.msra.mxu0 0.0
    %1599 = vmatpush.msra.mxu0 0.0
    %1600 = vmatpush.msra.mxu0 0.0
    %1601 = vmatpush.msra.mxu0 0.0
    %1602 = vmatpush.msra.mxu0 0.0
    %1603 = vmatpush.msra.mxu0 %v1558
    %1604 = vmatpush.msra.mxu0 %v1557
    %1605 = vmatpush.msra.mxu0 %v1556
    %1606 = vmatpush.msra.mxu0 %v1555
    %1607 = vmatmul.f32.gmra.mxu0 %v1589
    %v1608 = vpop.f32.mrf.mxu0
    %v1609 = vadd.f32 0.0, %v1608
    %1610 = vdwg.mxu0
    %v1611 = vadd.f32 %v1587, %v1609
    %v1612 = vtanh.pop %v1611
    %v1613 = vmul.f32 %v1611, 0.5
    %v1614 = vtanh.pop %v1613
    %v1615 = vadd.f32 %v1614, 1.0
    %v1616 = vmul.f32 %v1615, 0.5
    %v1617 = vsel %vm1554, %v1612, %v1616
    %v1618 = vmul.f32 %v1617, %v1584
    %1620 = vrot.lane.b32.xlu0 %v1617, 32
    %v1621 = vpop.permute.xlu0 %1620
    %v1623 = vmul.f32 %v1617, %v1621
    %1625 = vrot.lane.b32.xlu0 %v1623, 32
    %v1626 = vpop.permute.xlu0 %1625
    %v1628 = vadd.f32 %v1618, %v1626
    %v1629 = vtanh.pop %v1628
    %1631 = vrot.lane.b32.xlu0 %v1629, 32
    %v1632 = vpop.permute.xlu0 %1631
    %v1634 = vmul.f32 %v1617, %v1632
    %1636 = vrot.lane.b32.xlu0 %v1628, 96
    %v1637 = vpop.permute.xlu0 %1636
    %v1638 = vsel %vm1476, %v1637, 0
    %1640 = vmatpush.msra.mxu0 0.0
    %1641 = vmatpush.msra.mxu0 0.0
    %1642 = vmatpush.msra.mxu0 0.0
    %1643 = vmatpush.msra.mxu0 0.0
    %1644 = vmatpush.msra.mxu0 0.0
    %1645 = vmatpush.msra.mxu0 0.0
    %1646 = vmatpush.msra.mxu0 0.0
    %1647 = vmatpush.msra.mxu0 0.0
    %1648 = vmatpush.msra.mxu0 0.0
    %1649 = vmatpush.msra.mxu0 0.0
    %1650 = vmatpush.msra.mxu0 0.0
    %1651 = vmatpush.msra.mxu0 0.0
    %1652 = vmatpush.msra.mxu0 %v1576
    %1653 = vmatpush.msra.mxu0 %v1575
    %1654 = vmatpush.msra.mxu0 %v1574
    %1655 = vmatpush.msra.mxu0 %v1573
    %1656 = vmatmul.f32.gmra.mxu0 %v1638
    %v1657 = vpop.f32.mrf.mxu0
    %v1658 = vadd.f32 0.0, %v1657
    %1659 = vdwg.mxu0
    %1661 = vrot.lane.b32.xlu0 %v1634, 64
    %v1662 = vpop.permute.xlu0 %1661
    %v1663 = vsel %vm1476, %v1662, 0
    %1665 = vmatpush.msra.mxu0 0.0
    %1666 = vmatpush.msra.mxu0 0.0
    %1667 = vmatpush.msra.mxu0 0.0
    %1668 = vmatpush.msra.mxu0 0.0
    %1669 = vmatpush.msra.mxu0 0.0
    %1670 = vmatpush.msra.mxu0 0.0
    %1671 = vmatpush.msra.mxu0 0.0
    %1672 = vmatpush.msra.mxu0 0.0
    %1673 = vmatpush.msra.mxu0 0.0
    %1674 = vmatpush.msra.mxu0 0.0
    %1675 = vmatpush.msra.mxu0 0.0
    %1676 = vmatpush.msra.mxu0 0.0
    %1677 = vmatpush.msra.mxu0 %v1572
    %1678 = vmatpush.msra.mxu0 %v1571
    %1679 = vmatpush.msra.mxu0 %v1570
    %1680 = vmatpush.msra.mxu0 %v1569
    %1681 = vmatmul.f32.gmra.mxu0 %v1663
    %v1682 = vpop.f32.mrf.mxu0
    %v1683 = vadd.f32 %v1658, %v1682
    %1684 = vdwg.mxu0
    %v1685 = vadd.f32 %v1683, %v1548
    %vm1686 = vcmp.gt.f32.partialorder %v1685, 0.0
    %v1687 = vmul.f32 %v1685, 0.01
    %v1688 = vsel %vm1686, %v1685, %v1687
    %vm1689 = vcmask 408576
    %v1691 = vsel %vm1689, %v1688, 0
    %vm1693 = vcmask 1041408
    %v1695 = vsel %vm1693, %v1583, 0
    %1697 = vmatpush.msra.mxu0 0.0
    %1698 = vmatpush.msra.mxu0 0.0
    %1699 = vmatpush.msra.mxu0 0.0
    %1700 = vmatpush.msra.mxu0 0.0
    %1701 = vmatpush.msra.mxu0 0.0
    %1702 = vmatpush.msra.mxu0 0.0
    %1703 = vmatpush.msra.mxu0 0.0
    %1704 = vmatpush.msra.mxu0 0.0
    %1705 = vmatpush.msra.mxu0 0.0
    %1706 = vmatpush.msra.mxu0 %v1695
    %1707 = vmatpush.msra.mxu0 %v1582
    %1708 = vmatpush.msra.mxu0 %v1581
    %1709 = vmatpush.msra.mxu0 %v1580
    %1710 = vmatpush.msra.mxu0 %v1579
    %1711 = vmatpush.msra.mxu0 %v1578
    %1712 = vmatpush.msra.mxu0 %v1577
    %1713 = vmatmul.f32.gmra.mxu0 %v1691
    %v1714 = vpop.f32.mrf.mxu0
    %v1715 = vadd.f32 %v1552, %v1714
    %1716 = vdwg.mxu0
    %vm1717 = vcmask 80896
    %v1718 = vsel %vm1717, %v1715, -inf
    %1719 = vmax.xlane.f32.xlu0 %v1718
    %v1720 = vpop.xlane.xlu0 %1719
    %v1721 = vsub.f32 %v1715, %v1720
    %v1722 = vmul.f32 %v1721, 1.442695
    %v1723 = vpow.pop %v1722
    %v1724 = vsel %vm1717, %v1723, 0.0
    %1725 = vadd.xlane.f32.xlu0 %v1724
    %v1726 = vpop.xlane.xlu0 %1725
    %v1727 = vrcp.pop %v1726
    %v1728 = vmul.f32 %v1723, %v1727
    %v1730 = vsel %vm1717, %v1728, 0
    %v1733 = vsel %vm1693, %v1564, 0
    %1735 = vmatpush.msra.mxu0 0.0
    %1736 = vmatpush.msra.mxu0 0.0
    %1737 = vmatpush.msra.mxu0 0.0
    %1738 = vmatpush.msra.mxu0 0.0
    %1739 = vmatpush.msra.mxu0 0.0
    %1740 = vmatpush.msra.mxu0 0.0
    %1741 = vmatpush.msra.mxu0 0.0
    %1742 = vmatpush.msra.mxu0 0.0
    %1743 = vmatpush.msra.mxu0 0.0
    %1744 = vmatpush.msra.mxu0 0.0
    %1745 = vmatpush.msra.mxu0 0.0
    %1746 = vmatpush.msra.mxu0 0.0
    %1747 = vmatpush.msra.mxu0 0.0
    %1748 = vmatpush.msra.mxu0 0.0
    %1749 = vmatpush.msra.mxu0 %v1733
    %1750 = vmatpush.msra.mxu0 %v1563
    %1751 = vmatmul.f32.gmra.mxu0 %v1730
    %v1752 = vpop.f32.mrf.mxu0
    %v1753 = vadd.f32 0.0, %v1752
    %1754 = vdwg.mxu0
    %1755 = vmatpush.msra.mxu0 0.0
    %1756 = vmatpush.msra.mxu0 0.0
    %1757 = vmatpush.msra.mxu0 0.0
    %1758 = vmatpush.msra.mxu0 0.0
    %1759 = vmatpush.msra.mxu0 0.0
    %1760 = vmatpush.msra.mxu0 0.0
    %1761 = vmatpush.msra.mxu0 0.0
    %1762 = vmatpush.msra.mxu0 0.0
    %1763 = vmatpush.msra.mxu0 0.0
    %1764 = vmatpush.msra.mxu0 0.0
    %1765 = vmatpush.msra.mxu0 0.0
    %1766 = vmatpush.msra.mxu0 0.0
    %1767 = vmatpush.msra.mxu0 %v1562
    %1768 = vmatpush.msra.mxu0 %v1561
    %1769 = vmatpush.msra.mxu0 %v1560
    %1770 = vmatpush.msra.mxu0 %v1559
    %1771 = vmatmul.f32.gmra.mxu0 %v1663
    %v1772 = vpop.f32.mrf.mxu0
    %v1773 = vadd.f32 %v1753, %v1772
    %1774 = vdwg.mxu0
    %v1776 = vsel %vm1476, %v1586, 0
    %1778 = vmatpush.msra.mxu0 0.0
    %1779 = vmatpush.msra.mxu0 0.0
    %1780 = vmatpush.msra.mxu0 0.0
    %1781 = vmatpush.msra.mxu0 0.0
    %1782 = vmatpush.msra.mxu0 0.0
    %1783 = vmatpush.msra.mxu0 0.0
    %1784 = vmatpush.msra.mxu0 0.0
    %1785 = vmatpush.msra.mxu0 0.0
    %1786 = vmatpush.msra.mxu0 0.0
    %1787 = vmatpush.msra.mxu0 0.0
    %1788 = vmatpush.msra.mxu0 0.0
    %1789 = vmatpush.msra.mxu0 0.0
    %1790 = vmatpush.msra.mxu0 %v1568
    %1791 = vmatpush.msra.mxu0 %v1567
    %1792 = vmatpush.msra.mxu0 %v1566
    %1793 = vmatpush.msra.mxu0 %v1565
    %1794 = vmatmul.f32.gmra.mxu0 %v1776
    %v1795 = vpop.f32.mrf.mxu0
    %v1796 = vadd.f32 0.0, %v1795
    %1797 = vdwg.mxu0
    %v1798 = vadd.f32 %v1773, %v1796
    %v1799 = vadd.f32 %v1798, %v1544
    %v1800 = vtanh.pop %v1799
    %v1801 = vmul.f32 %v1799, 0.5
    %v1802 = vtanh.pop %v1801
    %v1803 = vadd.f32 %v1802, 1.0
    %v1804 = vmul.f32 %v1803, 0.5
    %v1805 = vsel %vm1554, %v1800, %v1804
    %v1806 = vmul.f32 %v1805, %v1586
    %1808 = vrot.lane.b32.xlu0 %v1805, 32
    %v1809 = vpop.permute.xlu0 %1808
    %v1811 = vmul.f32 %v1805, %v1809
    %1813 = vrot.lane.b32.xlu0 %v1811, 32
    %v1814 = vpop.permute.xlu0 %1813
    %v1816 = vadd.f32 %v1806, %v1814
    %v1817 = vtanh.pop %v1816
    %1819 = vrot.lane.b32.xlu0 %v1817, 32
    %v1820 = vpop.permute.xlu0 %1819
    %v1822 = vmul.f32 %v1805, %v1820
    %1824 = vrot.lane.b32.xlu0 %v1816, 96
    %v1825 = vpop.permute.xlu0 %1824
    %1827 = vst.msk [vmem:[#allocation2] sm:$0xff] %vm1476, %v1825
    %v1828 = vadd.f32 %v1368, %v1522
    %1829 = vmatpush.msra.mxu0 0.0
    %1830 = vmatpush.msra.mxu0 0.0
    %1831 = vmatpush.msra.mxu0 0.0
    %1832 = vmatpush.msra.mxu0 0.0
    %1833 = vmatpush.msra.mxu0 0.0
    %1834 = vmatpush.msra.mxu0 0.0
    %1835 = vmatpush.msra.mxu0 0.0
    %1836 = vmatpush.msra.mxu0 0.0
    %1837 = vmatpush.msra.mxu0 0.0
    %1838 = vmatpush.msra.mxu0 0.0
    %1839 = vmatpush.msra.mxu0 0.0
    %1840 = vmatpush.msra.mxu0 0.0
    %1841 = vmatpush.msra.mxu0 %v1558
    %1842 = vmatpush.msra.mxu0 %v1557
    %1843 = vmatpush.msra.mxu0 %v1556
    %1844 = vmatpush.msra.mxu0 %v1555
    %1845 = vmatmul.f32.gmra.mxu0 %v1663
    %v1846 = vpop.f32.mrf.mxu0
    %v1847 = vadd.f32 0.0, %v1846
    %1848 = vdwg.mxu0
    %v1849 = vadd.f32 %v1828, %v1847
    %v1850 = vtanh.pop %v1849
    %v1851 = vmul.f32 %v1849, 0.5
    %v1852 = vtanh.pop %v1851
    %v1853 = vadd.f32 %v1852, 1.0
    %v1854 = vmul.f32 %v1853, 0.5
    %v1855 = vsel %vm1554, %v1850, %v1854
    %v1856 = vmul.f32 %v1855, %v1628
    %1858 = vrot.lane.b32.xlu0 %v1855, 32
    %v1859 = vpop.permute.xlu0 %1858
    %v1861 = vmul.f32 %v1855, %v1859
    %1863 = vrot.lane.b32.xlu0 %v1861, 32
    %v1864 = vpop.permute.xlu0 %1863
    %v1866 = vadd.f32 %v1856, %v1864
    %v1867 = vtanh.pop %v1866
    %1869 = vrot.lane.b32.xlu0 %v1867, 32
    %v1870 = vpop.permute.xlu0 %1869
    %v1872 = vmul.f32 %v1855, %v1870
    %1874 = vrot.lane.b32.xlu0 %v1866, 96
    %v1875 = vpop.permute.xlu0 %1874
    %v1876 = vsel %vm1476, %v1875, 0
    %1878 = vmatpush.msra.mxu0 0.0
    %1879 = vmatpush.msra.mxu0 0.0
    %1880 = vmatpush.msra.mxu0 0.0
    %1881 = vmatpush.msra.mxu0 0.0
    %1882 = vmatpush.msra.mxu0 0.0
    %1883 = vmatpush.msra.mxu0 0.0
    %1884 = vmatpush.msra.mxu0 0.0
    %1885 = vmatpush.msra.mxu0 0.0
    %1886 = vmatpush.msra.mxu0 0.0
    %1887 = vmatpush.msra.mxu0 0.0
    %1888 = vmatpush.msra.mxu0 0.0
    %1889 = vmatpush.msra.mxu0 0.0
    %1890 = vmatpush.msra.mxu0 %v1576
    %1891 = vmatpush.msra.mxu0 %v1575
    %1892 = vmatpush.msra.mxu0 %v1574
    %1893 = vmatpush.msra.mxu0 %v1573
    %1894 = vmatmul.f32.gmra.mxu0 %v1876
    %v1895 = vpop.f32.mrf.mxu0
    %v1896 = vadd.f32 0.0, %v1895
    %1897 = vdwg.mxu0
    %1899 = vrot.lane.b32.xlu0 %v1872, 64
    %v1900 = vpop.permute.xlu0 %1899
    %v1901 = vsel %vm1476, %v1900, 0
    %1903 = vmatpush.msra.mxu0 0.0
    %1904 = vmatpush.msra.mxu0 0.0
    %1905 = vmatpush.msra.mxu0 0.0
    %1906 = vmatpush.msra.mxu0 0.0
    %1907 = vmatpush.msra.mxu0 0.0
    %1908 = vmatpush.msra.mxu0 0.0
    %1909 = vmatpush.msra.mxu0 0.0
    %1910 = vmatpush.msra.mxu0 0.0
    %1911 = vmatpush.msra.mxu0 0.0
    %1912 = vmatpush.msra.mxu0 0.0
    %1913 = vmatpush.msra.mxu0 0.0
    %1914 = vmatpush.msra.mxu0 0.0
    %1915 = vmatpush.msra.mxu0 %v1572
    %1916 = vmatpush.msra.mxu0 %v1571
    %1917 = vmatpush.msra.mxu0 %v1570
    %1918 = vmatpush.msra.mxu0 %v1569
    %1919 = vmatmul.f32.gmra.mxu0 %v1901
    %v1920 = vpop.f32.mrf.mxu0
    %v1921 = vadd.f32 %v1896, %v1920
    %1922 = vdwg.mxu0
    %v1923 = vadd.f32 %v1921, %v1548
    %vm1924 = vcmp.gt.f32.partialorder %v1923, 0.0
    %v1925 = vmul.f32 %v1923, 0.01
    %v1926 = vsel %vm1924, %v1923, %v1925
    %v1928 = vsel %vm1689, %v1926, 0
    %1930 = vmatpush.msra.mxu0 0.0
    %1931 = vmatpush.msra.mxu0 0.0
    %1932 = vmatpush.msra.mxu0 0.0
    %1933 = vmatpush.msra.mxu0 0.0
    %1934 = vmatpush.msra.mxu0 0.0
    %1935 = vmatpush.msra.mxu0 0.0
    %1936 = vmatpush.msra.mxu0 0.0
    %1937 = vmatpush.msra.mxu0 0.0
    %1938 = vmatpush.msra.mxu0 0.0
    %1939 = vmatpush.msra.mxu0 %v1695
    %1940 = vmatpush.msra.mxu0 %v1582
    %1941 = vmatpush.msra.mxu0 %v1581
    %1942 = vmatpush.msra.mxu0 %v1580
    %1943 = vmatpush.msra.mxu0 %v1579
    %1944 = vmatpush.msra.mxu0 %v1578
    %1945 = vmatpush.msra.mxu0 %v1577
    %1946 = vmatmul.f32.gmra.mxu0 %v1928
    %v1947 = vpop.f32.mrf.mxu0
    %v1948 = vadd.f32 %v1552, %v1947
    %1949 = vdwg.mxu0
    %v1950 = vsel %vm1717, %v1948, -inf
    %1951 = vmax.xlane.f32.xlu0 %v1950
    %v1952 = vpop.xlane.xlu0 %1951
    %v1953 = vsub.f32 %v1948, %v1952
    %v1954 = vmul.f32 %v1953, 1.442695
    %v1955 = vpow.pop %v1954
    %v1956 = vsel %vm1717, %v1955, 0.0
    %1957 = vadd.xlane.f32.xlu0 %v1956
    %v1958 = vpop.xlane.xlu0 %1957
    %v1959 = vrcp.pop %v1958
    %v1960 = vmul.f32 %v1955, %v1959
    %v1962 = vsel %vm1717, %v1960, 0
    %1964 = vmatpush.msra.mxu0 0.0
    %1965 = vmatpush.msra.mxu0 0.0
    %1966 = vmatpush.msra.mxu0 0.0
    %1967 = vmatpush.msra.mxu0 0.0
    %1968 = vmatpush.msra.mxu0 0.0
    %1969 = vmatpush.msra.mxu0 0.0
    %1970 = vmatpush.msra.mxu0 0.0
    %1971 = vmatpush.msra.mxu0 0.0
    %1972 = vmatpush.msra.mxu0 0.0
    %1973 = vmatpush.msra.mxu0 0.0
    %1974 = vmatpush.msra.mxu0 0.0
    %1975 = vmatpush.msra.mxu0 0.0
    %1976 = vmatpush.msra.mxu0 0.0
    %1977 = vmatpush.msra.mxu0 0.0
    %1978 = vmatpush.msra.mxu0 %v1733
    %1979 = vmatpush.msra.mxu0 %v1563
    %1980 = vmatmul.f32.gmra.mxu0 %v1962
    %v1981 = vpop.f32.mrf.mxu0
    %v1982 = vadd.f32 0.0, %v1981
    %1983 = vdwg.mxu0
    %1984 = vmatpush.msra.mxu0 0.0
    %1985 = vmatpush.msra.mxu0 0.0
    %1986 = vmatpush.msra.mxu0 0.0
    %1987 = vmatpush.msra.mxu0 0.0
    %1988 = vmatpush.msra.mxu0 0.0
    %1989 = vmatpush.msra.mxu0 0.0
    %1990 = vmatpush.msra.mxu0 0.0
    %1991 = vmatpush.msra.mxu0 0.0
    %1992 = vmatpush.msra.mxu0 0.0
    %1993 = vmatpush.msra.mxu0 0.0
    %1994 = vmatpush.msra.mxu0 0.0
    %1995 = vmatpush.msra.mxu0 0.0
    %1996 = vmatpush.msra.mxu0 %v1562
    %1997 = vmatpush.msra.mxu0 %v1561
    %1998 = vmatpush.msra.mxu0 %v1560
    %1999 = vmatpush.msra.mxu0 %v1559
    %2000 = vmatmul.f32.gmra.mxu0 %v1901
    %v2001 = vpop.f32.mrf.mxu0
    %v2002 = vadd.f32 %v1982, %v2001
    %2003 = vdwg.mxu0
    %2005 = vrot.lane.b32.xlu0 %v1822, 64
    %v2006 = vpop.permute.xlu0 %2005
    %v2007 = vsel %vm1476, %v2006, 0
    %2009 = vmatpush.msra.mxu0 0.0
    %2010 = vmatpush.msra.mxu0 0.0
    %2011 = vmatpush.msra.mxu0 0.0
    %2012 = vmatpush.msra.mxu0 0.0
    %2013 = vmatpush.msra.mxu0 0.0
    %2014 = vmatpush.msra.mxu0 0.0
    %2015 = vmatpush.msra.mxu0 0.0
    %2016 = vmatpush.msra.mxu0 0.0
    %2017 = vmatpush.msra.mxu0 0.0
    %2018 = vmatpush.msra.mxu0 0.0
    %2019 = vmatpush.msra.mxu0 0.0
    %2020 = vmatpush.msra.mxu0 0.0
    %2021 = vmatpush.msra.mxu0 %v1568
    %2022 = vmatpush.msra.mxu0 %v1567
    %2023 = vmatpush.msra.mxu0 %v1566
    %2024 = vmatpush.msra.mxu0 %v1565
    %2025 = vmatmul.f32.gmra.mxu0 %v2007
    %v2026 = vpop.f32.mrf.mxu0
    %v2027 = vadd.f32 0.0, %v2026
    %2028 = vdwg.mxu0
    %v2029 = vadd.f32 %v2002, %v2027
    %v2030 = vadd.f32 %v2029, %v1544
    %v2031 = vtanh.pop %v2030
    %v2032 = vmul.f32 %v2030, 0.5
    %v2033 = vtanh.pop %v2032
    %v2034 = vadd.f32 %v2033, 1.0
    %v2035 = vmul.f32 %v2034, 0.5
    %v2036 = vsel %vm1554, %v2031, %v2035
    %v2037 = vmul.f32 %v2036, %v1816
    %2039 = vrot.lane.b32.xlu0 %v2036, 32
    %v2040 = vpop.permute.xlu0 %2039
    %v2042 = vmul.f32 %v2036, %v2040
    %2044 = vrot.lane.b32.xlu0 %v2042, 32
    %v2045 = vpop.permute.xlu0 %2044
    %v2047 = vadd.f32 %v2037, %v2045
    %v2048 = vtanh.pop %v2047
    %2050 = vrot.lane.b32.xlu0 %v2048, 32
    %v2051 = vpop.permute.xlu0 %2050
    %v2053 = vmul.f32 %v2036, %v2051
    %2055 = vrot.lane.b32.xlu0 %v2047, 96
    %v2056 = vpop.permute.xlu0 %2055
    %2058 = vst.msk [vmem:[#allocation2 + $0x8] sm:$0xff] %vm1476, %v2056
    %v2059 = vadd.f32 %v1368, %v1525
    %2060 = vmatpush.msra.mxu0 0.0
    %2061 = vmatpush.msra.mxu0 0.0
    %2062 = vmatpush.msra.mxu0 0.0
    %2063 = vmatpush.msra.mxu0 0.0
    %2064 = vmatpush.msra.mxu0 0.0
    %2065 = vmatpush.msra.mxu0 0.0
    %2066 = vmatpush.msra.mxu0 0.0
    %2067 = vmatpush.msra.mxu0 0.0
    %2068 = vmatpush.msra.mxu0 0.0
    %2069 = vmatpush.msra.mxu0 0.0
    %2070 = vmatpush.msra.mxu0 0.0
    %2071 = vmatpush.msra.mxu0 0.0
    %2072 = vmatpush.msra.mxu0 %v1558
    %2073 = vmatpush.msra.mxu0 %v1557
    %2074 = vmatpush.msra.mxu0 %v1556
    %2075 = vmatpush.msra.mxu0 %v1555
    %2076 = vmatmul.f32.gmra.mxu0 %v1901
    %v2077 = vpop.f32.mrf.mxu0
    %v2078 = vadd.f32 0.0, %v2077
    %2079 = vdwg.mxu0
    %v2080 = vadd.f32 %v2059, %v2078
    %v2081 = vtanh.pop %v2080
    %v2082 = vmul.f32 %v2080, 0.5
    %v2083 = vtanh.pop %v2082
    %v2084 = vadd.f32 %v2083, 1.0
    %v2085 = vmul.f32 %v2084, 0.5
    %v2086 = vsel %vm1554, %v2081, %v2085
    %v2087 = vmul.f32 %v2086, %v1866
    %2089 = vrot.lane.b32.xlu0 %v2086, 32
    %v2090 = vpop.permute.xlu0 %2089
    %v2092 = vmul.f32 %v2086, %v2090
    %2094 = vrot.lane.b32.xlu0 %v2092, 32
    %v2095 = vpop.permute.xlu0 %2094
    %v2097 = vadd.f32 %v2087, %v2095
    %v2098 = vtanh.pop %v2097
    %2100 = vrot.lane.b32.xlu0 %v2098, 32
    %v2101 = vpop.permute.xlu0 %2100
    %v2103 = vmul.f32 %v2086, %v2101
    %2105 = vrot.lane.b32.xlu0 %v2097, 96
    %v2106 = vpop.permute.xlu0 %2105
    %v2107 = vsel %vm1476, %v2106, 0
    %2109 = vmatpush.msra.mxu0 0.0
    %2110 = vmatpush.msra.mxu0 0.0
    %2111 = vmatpush.msra.mxu0 0.0
    %2112 = vmatpush.msra.mxu0 0.0
    %2113 = vmatpush.msra.mxu0 0.0
    %2114 = vmatpush.msra.mxu0 0.0
    %2115 = vmatpush.msra.mxu0 0.0
    %2116 = vmatpush.msra.mxu0 0.0
    %2117 = vmatpush.msra.mxu0 0.0
    %2118 = vmatpush.msra.mxu0 0.0
    %2119 = vmatpush.msra.mxu0 0.0
    %2120 = vmatpush.msra.mxu0 0.0
    %2121 = vmatpush.msra.mxu0 %v1576
    %2122 = vmatpush.msra.mxu0 %v1575
    %2123 = vmatpush.msra.mxu0 %v1574
    %2124 = vmatpush.msra.mxu0 %v1573
    %2125 = vmatmul.f32.gmra.mxu0 %v2107
    %v2126 = vpop.f32.mrf.mxu0
    %v2127 = vadd.f32 0.0, %v2126
    %2128 = vdwg.mxu0
    %2130 = vrot.lane.b32.xlu0 %v2103, 64
    %v2131 = vpop.permute.xlu0 %2130
    %v2132 = vsel %vm1476, %v2131, 0
    %2134 = vmatpush.msra.mxu0 0.0
    %2135 = vmatpush.msra.mxu0 0.0
    %2136 = vmatpush.msra.mxu0 0.0
    %2137 = vmatpush.msra.mxu0 0.0
    %2138 = vmatpush.msra.mxu0 0.0
    %2139 = vmatpush.msra.mxu0 0.0
    %2140 = vmatpush.msra.mxu0 0.0
    %2141 = vmatpush.msra.mxu0 0.0
    %2142 = vmatpush.msra.mxu0 0.0
    %2143 = vmatpush.msra.mxu0 0.0
    %2144 = vmatpush.msra.mxu0 0.0
    %2145 = vmatpush.msra.mxu0 0.0
    %2146 = vmatpush.msra.mxu0 %v1572
    %2147 = vmatpush.msra.mxu0 %v1571
    %2148 = vmatpush.msra.mxu0 %v1570
    %2149 = vmatpush.msra.mxu0 %v1569
    %2150 = vmatmul.f32.gmra.mxu0 %v2132
    %v2151 = vpop.f32.mrf.mxu0
    %v2152 = vadd.f32 %v2127, %v2151
    %2153 = vdwg.mxu0
    %v2154 = vadd.f32 %v2152, %v1548
    %vm2155 = vcmp.gt.f32.partialorder %v2154, 0.0
    %v2156 = vmul.f32 %v2154, 0.01
    %v2157 = vsel %vm2155, %v2154, %v2156
    %v2159 = vsel %vm1689, %v2157, 0
    %2161 = vmatpush.msra.mxu0 0.0
    %2162 = vmatpush.msra.mxu0 0.0
    %2163 = vmatpush.msra.mxu0 0.0
    %2164 = vmatpush.msra.mxu0 0.0
    %2165 = vmatpush.msra.mxu0 0.0
    %2166 = vmatpush.msra.mxu0 0.0
    %2167 = vmatpush.msra.mxu0 0.0
    %2168 = vmatpush.msra.mxu0 0.0
    %2169 = vmatpush.msra.mxu0 0.0
    %2170 = vmatpush.msra.mxu0 %v1695
    %2171 = vmatpush.msra.mxu0 %v1582
    %2172 = vmatpush.msra.mxu0 %v1581
    %2173 = vmatpush.msra.mxu0 %v1580
    %2174 = vmatpush.msra.mxu0 %v1579
    %2175 = vmatpush.msra.mxu0 %v1578
    %2176 = vmatpush.msra.mxu0 %v1577
    %2177 = vmatmul.f32.gmra.mxu0 %v2159
    %v2178 = vpop.f32.mrf.mxu0
    %v2179 = vadd.f32 %v1552, %v2178
    %2180 = vdwg.mxu0
    %v2181 = vsel %vm1717, %v2179, -inf
    %2182 = vmax.xlane.f32.xlu0 %v2181
    %v2183 = vpop.xlane.xlu0 %2182
    %v2184 = vsub.f32 %v2179, %v2183
    %v2185 = vmul.f32 %v2184, 1.442695
    %v2186 = vpow.pop %v2185
    %v2187 = vsel %vm1717, %v2186, 0.0
    %2188 = vadd.xlane.f32.xlu0 %v2187
    %v2189 = vpop.xlane.xlu0 %2188
    %v2190 = vrcp.pop %v2189
    %v2191 = vmul.f32 %v2186, %v2190
    %v2193 = vsel %vm1717, %v2191, 0
    %2195 = vmatpush.msra.mxu0 0.0
    %2196 = vmatpush.msra.mxu0 0.0
    %2197 = vmatpush.msra.mxu0 0.0
    %2198 = vmatpush.msra.mxu0 0.0
    %2199 = vmatpush.msra.mxu0 0.0
    %2200 = vmatpush.msra.mxu0 0.0
    %2201 = vmatpush.msra.mxu0 0.0
    %2202 = vmatpush.msra.mxu0 0.0
    %2203 = vmatpush.msra.mxu0 0.0
    %2204 = vmatpush.msra.mxu0 0.0
    %2205 = vmatpush.msra.mxu0 0.0
    %2206 = vmatpush.msra.mxu0 0.0
    %2207 = vmatpush.msra.mxu0 0.0
    %2208 = vmatpush.msra.mxu0 0.0
    %2209 = vmatpush.msra.mxu0 %v1733
    %2210 = vmatpush.msra.mxu0 %v1563
    %2211 = vmatmul.f32.gmra.mxu0 %v2193
    %v2212 = vpop.f32.mrf.mxu0
    %v2213 = vadd.f32 0.0, %v2212
    %2214 = vdwg.mxu0
    %2215 = vmatpush.msra.mxu0 0.0
    %2216 = vmatpush.msra.mxu0 0.0
    %2217 = vmatpush.msra.mxu0 0.0
    %2218 = vmatpush.msra.mxu0 0.0
    %2219 = vmatpush.msra.mxu0 0.0
    %2220 = vmatpush.msra.mxu0 0.0
    %2221 = vmatpush.msra.mxu0 0.0
    %2222 = vmatpush.msra.mxu0 0.0
    %2223 = vmatpush.msra.mxu0 0.0
    %2224 = vmatpush.msra.mxu0 0.0
    %2225 = vmatpush.msra.mxu0 0.0
    %2226 = vmatpush.msra.mxu0 0.0
    %2227 = vmatpush.msra.mxu0 %v1562
    %2228 = vmatpush.msra.mxu0 %v1561
    %2229 = vmatpush.msra.mxu0 %v1560
    %2230 = vmatpush.msra.mxu0 %v1559
    %2231 = vmatmul.f32.gmra.mxu0 %v2132
    %v2232 = vpop.f32.mrf.mxu0
    %v2233 = vadd.f32 %v2213, %v2232
    %2234 = vdwg.mxu0
    %2236 = vrot.lane.b32.xlu0 %v2053, 64
    %v2237 = vpop.permute.xlu0 %2236
    %v2238 = vsel %vm1476, %v2237, 0
    %2240 = vmatpush.msra.mxu0 0.0
    %2241 = vmatpush.msra.mxu0 0.0
    %2242 = vmatpush.msra.mxu0 0.0
    %2243 = vmatpush.msra.mxu0 0.0
    %2244 = vmatpush.msra.mxu0 0.0
    %2245 = vmatpush.msra.mxu0 0.0
    %2246 = vmatpush.msra.mxu0 0.0
    %2247 = vmatpush.msra.mxu0 0.0
    %2248 = vmatpush.msra.mxu0 0.0
    %2249 = vmatpush.msra.mxu0 0.0
    %2250 = vmatpush.msra.mxu0 0.0
    %2251 = vmatpush.msra.mxu0 0.0
    %2252 = vmatpush.msra.mxu0 %v1568
    %2253 = vmatpush.msra.mxu0 %v1567
    %2254 = vmatpush.msra.mxu0 %v1566
    %2255 = vmatpush.msra.mxu0 %v1565
    %2256 = vmatmul.f32.gmra.mxu0 %v2238
    %v2257 = vpop.f32.mrf.mxu0
    %v2258 = vadd.f32 0.0, %v2257
    %2259 = vdwg.mxu0
    %v2260 = vadd.f32 %v2233, %v2258
    %v2261 = vadd.f32 %v2260, %v1544
    %v2262 = vtanh.pop %v2261
    %v2263 = vmul.f32 %v2261, 0.5
    %v2264 = vtanh.pop %v2263
    %v2265 = vadd.f32 %v2264, 1.0
    %v2266 = vmul.f32 %v2265, 0.5
    %v2267 = vsel %vm1554, %v2262, %v2266
    %v2268 = vmul.f32 %v2267, %v2047
    %2270 = vrot.lane.b32.xlu0 %v2267, 32
    %v2271 = vpop.permute.xlu0 %2270
    %v2273 = vmul.f32 %v2267, %v2271
    %2275 = vrot.lane.b32.xlu0 %v2273, 32
    %v2276 = vpop.permute.xlu0 %2275
    %v2278 = vadd.f32 %v2268, %v2276
    %v2279 = vtanh.pop %v2278
    %2281 = vrot.lane.b32.xlu0 %v2279, 32
    %v2282 = vpop.permute.xlu0 %2281
    %v2284 = vmul.f32 %v2267, %v2282
    %2286 = vrot.lane.b32.xlu0 %v2278, 96
    %v2287 = vpop.permute.xlu0 %2286
    %2289 = vst.msk [vmem:[#allocation2 + $0x10] sm:$0xff] %vm1476, %v2287
    %v2290 = vadd.f32 %v1368, %v1528
    %2291 = vmatpush.msra.mxu0 0.0
    %2292 = vmatpush.msra.mxu0 0.0
    %2293 = vmatpush.msra.mxu0 0.0
    %2294 = vmatpush.msra.mxu0 0.0
    %2295 = vmatpush.msra.mxu0 0.0
    %2296 = vmatpush.msra.mxu0 0.0
    %2297 = vmatpush.msra.mxu0 0.0
    %2298 = vmatpush.msra.mxu0 0.0
    %2299 = vmatpush.msra.mxu0 0.0
    %2300 = vmatpush.msra.mxu0 0.0
    %2301 = vmatpush.msra.mxu0 0.0
    %2302 = vmatpush.msra.mxu0 0.0
    %2303 = vmatpush.msra.mxu0 %v1558
    %2304 = vmatpush.msra.mxu0 %v1557
    %2305 = vmatpush.msra.mxu0 %v1556
    %2306 = vmatpush.msra.mxu0 %v1555
    %2307 = vmatmul.f32.gmra.mxu0 %v2132
    %v2308 = vpop.f32.mrf.mxu0
    %v2309 = vadd.f32 0.0, %v2308
    %2310 = vdwg.mxu0
    %v2311 = vadd.f32 %v2290, %v2309
    %v2312 = vtanh.pop %v2311
    %v2313 = vmul.f32 %v2311, 0.5
    %v2314 = vtanh.pop %v2313
    %v2315 = vadd.f32 %v2314, 1.0
    %v2316 = vmul.f32 %v2315, 0.5
    %v2317 = vsel %vm1554, %v2312, %v2316
    %v2318 = vmul.f32 %v2317, %v2097
    %2320 = vrot.lane.b32.xlu0 %v2317, 32
    %v2321 = vpop.permute.xlu0 %2320
    %v2323 = vmul.f32 %v2317, %v2321
    %2325 = vrot.lane.b32.xlu0 %v2323, 32
    %v2326 = vpop.permute.xlu0 %2325
    %v2328 = vadd.f32 %v2318, %v2326
    %v2329 = vtanh.pop %v2328
    %2331 = vrot.lane.b32.xlu0 %v2329, 32
    %v2332 = vpop.permute.xlu0 %2331
    %v2334 = vmul.f32 %v2317, %v2332
    %2336 = vrot.lane.b32.xlu0 %v2328, 96
    %v2337 = vpop.permute.xlu0 %2336
    %v2338 = vsel %vm1476, %v2337, 0
    %2340 = vmatpush.msra.mxu0 0.0
    %2341 = vmatpush.msra.mxu0 0.0
    %2342 = vmatpush.msra.mxu0 0.0
    %2343 = vmatpush.msra.mxu0 0.0
    %2344 = vmatpush.msra.mxu0 0.0
    %2345 = vmatpush.msra.mxu0 0.0
    %2346 = vmatpush.msra.mxu0 0.0
    %2347 = vmatpush.msra.mxu0 0.0
    %2348 = vmatpush.msra.mxu0 0.0
    %2349 = vmatpush.msra.mxu0 0.0
    %2350 = vmatpush.msra.mxu0 0.0
    %2351 = vmatpush.msra.mxu0 0.0
    %2352 = vmatpush.msra.mxu0 %v1576
    %2353 = vmatpush.msra.mxu0 %v1575
    %2354 = vmatpush.msra.mxu0 %v1574
    %2355 = vmatpush.msra.mxu0 %v1573
    %2356 = vmatmul.f32.gmra.mxu0 %v2338
    %v2357 = vpop.f32.mrf.mxu0
    %v2358 = vadd.f32 0.0, %v2357
    %2359 = vdwg.mxu0
    %2361 = vrot.lane.b32.xlu0 %v2334, 64
    %v2362 = vpop.permute.xlu0 %2361
    %v2363 = vsel %vm1476, %v2362, 0
    %2365 = vmatpush.msra.mxu0 0.0
    %2366 = vmatpush.msra.mxu0 0.0
    %2367 = vmatpush.msra.mxu0 0.0
    %2368 = vmatpush.msra.mxu0 0.0
    %2369 = vmatpush.msra.mxu0 0.0
    %2370 = vmatpush.msra.mxu0 0.0
    %2371 = vmatpush.msra.mxu0 0.0
    %2372 = vmatpush.msra.mxu0 0.0
    %2373 = vmatpush.msra.mxu0 0.0
    %2374 = vmatpush.msra.mxu0 0.0
    %2375 = vmatpush.msra.mxu0 0.0
    %2376 = vmatpush.msra.mxu0 0.0
    %2377 = vmatpush.msra.mxu0 %v1572
    %2378 = vmatpush.msra.mxu0 %v1571
    %2379 = vmatpush.msra.mxu0 %v1570
    %2380 = vmatpush.msra.mxu0 %v1569
    %2381 = vmatmul.f32.gmra.mxu0 %v2363
    %v2382 = vpop.f32.mrf.mxu0
    %v2383 = vadd.f32 %v2358, %v2382
    %2384 = vdwg.mxu0
    %v2385 = vadd.f32 %v2383, %v1548
    %vm2386 = vcmp.gt.f32.partialorder %v2385, 0.0
    %v2387 = vmul.f32 %v2385, 0.01
    %v2388 = vsel %vm2386, %v2385, %v2387
    %v2390 = vsel %vm1689, %v2388, 0
    %2392 = vmatpush.msra.mxu0 0.0
    %2393 = vmatpush.msra.mxu0 0.0
    %2394 = vmatpush.msra.mxu0 0.0
    %2395 = vmatpush.msra.mxu0 0.0
    %2396 = vmatpush.msra.mxu0 0.0
    %2397 = vmatpush.msra.mxu0 0.0
    %2398 = vmatpush.msra.mxu0 0.0
    %2399 = vmatpush.msra.mxu0 0.0
    %2400 = vmatpush.msra.mxu0 0.0
    %2401 = vmatpush.msra.mxu0 %v1695
    %2402 = vmatpush.msra.mxu0 %v1582
    %2403 = vmatpush.msra.mxu0 %v1581
    %2404 = vmatpush.msra.mxu0 %v1580
    %2405 = vmatpush.msra.mxu0 %v1579
    %2406 = vmatpush.msra.mxu0 %v1578
    %2407 = vmatpush.msra.mxu0 %v1577
    %2408 = vmatmul.f32.gmra.mxu0 %v2390
    %v2409 = vpop.f32.mrf.mxu0
    %v2410 = vadd.f32 %v1552, %v2409
    %2411 = vdwg.mxu0
    %v2412 = vsel %vm1717, %v2410, -inf
    %2413 = vmax.xlane.f32.xlu0 %v2412
    %v2414 = vpop.xlane.xlu0 %2413
    %v2415 = vsub.f32 %v2410, %v2414
    %v2416 = vmul.f32 %v2415, 1.442695
    %v2417 = vpow.pop %v2416
    %v2418 = vsel %vm1717, %v2417, 0.0
    %2419 = vadd.xlane.f32.xlu0 %v2418
    %v2420 = vpop.xlane.xlu0 %2419
    %v2421 = vrcp.pop %v2420
    %v2422 = vmul.f32 %v2417, %v2421
    %v2424 = vsel %vm1717, %v2422, 0
    %2426 = vmatpush.msra.mxu0 0.0
    %2427 = vmatpush.msra.mxu0 0.0
    %2428 = vmatpush.msra.mxu0 0.0
    %2429 = vmatpush.msra.mxu0 0.0
    %2430 = vmatpush.msra.mxu0 0.0
    %2431 = vmatpush.msra.mxu0 0.0
    %2432 = vmatpush.msra.mxu0 0.0
    %2433 = vmatpush.msra.mxu0 0.0
    %2434 = vmatpush.msra.mxu0 0.0
    %2435 = vmatpush.msra.mxu0 0.0
    %2436 = vmatpush.msra.mxu0 0.0
    %2437 = vmatpush.msra.mxu0 0.0
    %2438 = vmatpush.msra.mxu0 0.0
    %2439 = vmatpush.msra.mxu0 0.0
    %2440 = vmatpush.msra.mxu0 %v1733
    %2441 = vmatpush.msra.mxu0 %v1563
    %2442 = vmatmul.f32.gmra.mxu0 %v2424
    %v2443 = vpop.f32.mrf.mxu0
    %v2444 = vadd.f32 0.0, %v2443
    %2445 = vdwg.mxu0
    %2446 = vmatpush.msra.mxu0 0.0
    %2447 = vmatpush.msra.mxu0 0.0
    %2448 = vmatpush.msra.mxu0 0.0
    %2449 = vmatpush.msra.mxu0 0.0
    %2450 = vmatpush.msra.mxu0 0.0
    %2451 = vmatpush.msra.mxu0 0.0
    %2452 = vmatpush.msra.mxu0 0.0
    %2453 = vmatpush.msra.mxu0 0.0
    %2454 = vmatpush.msra.mxu0 0.0
    %2455 = vmatpush.msra.mxu0 0.0
    %2456 = vmatpush.msra.mxu0 0.0
    %2457 = vmatpush.msra.mxu0 0.0
    %2458 = vmatpush.msra.mxu0 %v1562
    %2459 = vmatpush.msra.mxu0 %v1561
    %2460 = vmatpush.msra.mxu0 %v1560
    %2461 = vmatpush.msra.mxu0 %v1559
    %2462 = vmatmul.f32.gmra.mxu0 %v2363
    %v2463 = vpop.f32.mrf.mxu0
    %v2464 = vadd.f32 %v2444, %v2463
    %2465 = vdwg.mxu0
    %2467 = vrot.lane.b32.xlu0 %v2284, 64
    %v2468 = vpop.permute.xlu0 %2467
    %v2469 = vsel %vm1476, %v2468, 0
    %2471 = vmatpush.msra.mxu0 0.0
    %2472 = vmatpush.msra.mxu0 0.0
    %2473 = vmatpush.msra.mxu0 0.0
    %2474 = vmatpush.msra.mxu0 0.0
    %2475 = vmatpush.msra.mxu0 0.0
    %2476 = vmatpush.msra.mxu0 0.0
    %2477 = vmatpush.msra.mxu0 0.0
    %2478 = vmatpush.msra.mxu0 0.0
    %2479 = vmatpush.msra.mxu0 0.0
    %2480 = vmatpush.msra.mxu0 0.0
    %2481 = vmatpush.msra.mxu0 0.0
    %2482 = vmatpush.msra.mxu0 0.0
    %2483 = vmatpush.msra.mxu0 %v1568
    %2484 = vmatpush.msra.mxu0 %v1567
    %2485 = vmatpush.msra.mxu0 %v1566
    %2486 = vmatpush.msra.mxu0 %v1565
    %2487 = vmatmul.f32.gmra.mxu0 %v2469
    %v2488 = vpop.f32.mrf.mxu0
    %v2489 = vadd.f32 0.0, %v2488
    %2490 = vdwg.mxu0
    %v2491 = vadd.f32 %v2464, %v2489
    %v2492 = vadd.f32 %v2491, %v1544
    %v2493 = vtanh.pop %v2492
    %v2494 = vmul.f32 %v2492, 0.5
    %v2495 = vtanh.pop %v2494
    %v2496 = vadd.f32 %v2495, 1.0
    %v2497 = vmul.f32 %v2496, 0.5
    %v2498 = vsel %vm1554, %v2493, %v2497
    %v2499 = vmul.f32 %v2498, %v2278
    %2501 = vrot.lane.b32.xlu0 %v2498, 32
    %v2502 = vpop.permute.xlu0 %2501
    %v2504 = vmul.f32 %v2498, %v2502
    %2506 = vrot.lane.b32.xlu0 %v2504, 32
    %v2507 = vpop.permute.xlu0 %2506
    %v2509 = vadd.f32 %v2499, %v2507
    %v2510 = vtanh.pop %v2509
    %2512 = vrot.lane.b32.xlu0 %v2510, 32
    %v2513 = vpop.permute.xlu0 %2512
    %v2515 = vmul.f32 %v2498, %v2513
    %2517 = vrot.lane.b32.xlu0 %v2509, 96
    %v2518 = vpop.permute.xlu0 %2517
    %2520 = vst.msk [vmem:[#allocation2 + $0x18] sm:$0xff] %vm1476, %v2518
    %v2521 = vadd.f32 %v1368, %v1531
    %2522 = vmatpush.msra.mxu0 0.0
    %2523 = vmatpush.msra.mxu0 0.0
    %2524 = vmatpush.msra.mxu0 0.0
    %2525 = vmatpush.msra.mxu0 0.0
    %2526 = vmatpush.msra.mxu0 0.0
    %2527 = vmatpush.msra.mxu0 0.0
    %2528 = vmatpush.msra.mxu0 0.0
    %2529 = vmatpush.msra.mxu0 0.0
    %2530 = vmatpush.msra.mxu0 0.0
    %2531 = vmatpush.msra.mxu0 0.0
    %2532 = vmatpush.msra.mxu0 0.0
    %2533 = vmatpush.msra.mxu0 0.0
    %2534 = vmatpush.msra.mxu0 %v1558
    %2535 = vmatpush.msra.mxu0 %v1557
    %2536 = vmatpush.msra.mxu0 %v1556
    %2537 = vmatpush.msra.mxu0 %v1555
    %2538 = vmatmul.f32.gmra.mxu0 %v2363
    %v2539 = vpop.f32.mrf.mxu0
    %v2540 = vadd.f32 0.0, %v2539
    %2541 = vdwg.mxu0
    %v2542 = vadd.f32 %v2521, %v2540
    %v2543 = vtanh.pop %v2542
    %v2544 = vmul.f32 %v2542, 0.5
    %v2545 = vtanh.pop %v2544
    %v2546 = vadd.f32 %v2545, 1.0
    %v2547 = vmul.f32 %v2546, 0.5
    %v2548 = vsel %vm1554, %v2543, %v2547
    %v2549 = vmul.f32 %v2548, %v2328
    %2551 = vrot.lane.b32.xlu0 %v2548, 32
    %v2552 = vpop.permute.xlu0 %2551
    %v2554 = vmul.f32 %v2548, %v2552
    %2556 = vrot.lane.b32.xlu0 %v2554, 32
    %v2557 = vpop.permute.xlu0 %2556
    %v2559 = vadd.f32 %v2549, %v2557
    %v2560 = vtanh.pop %v2559
    %2562 = vrot.lane.b32.xlu0 %v2560, 32
    %v2563 = vpop.permute.xlu0 %2562
    %v2565 = vmul.f32 %v2548, %v2563
    %2567 = vrot.lane.b32.xlu0 %v2559, 96
    %v2568 = vpop.permute.xlu0 %2567
    %v2569 = vsel %vm1476, %v2568, 0
    %2571 = vmatpush.msra.mxu0 0.0
    %2572 = vmatpush.msra.mxu0 0.0
    %2573 = vmatpush.msra.mxu0 0.0
    %2574 = vmatpush.msra.mxu0 0.0
    %2575 = vmatpush.msra.mxu0 0.0
    %2576 = vmatpush.msra.mxu0 0.0
    %2577 = vmatpush.msra.mxu0 0.0
    %2578 = vmatpush.msra.mxu0 0.0
    %2579 = vmatpush.msra.mxu0 0.0
    %2580 = vmatpush.msra.mxu0 0.0
    %2581 = vmatpush.msra.mxu0 0.0
    %2582 = vmatpush.msra.mxu0 0.0
    %2583 = vmatpush.msra.mxu0 %v1576
    %2584 = vmatpush.msra.mxu0 %v1575
    %2585 = vmatpush.msra.mxu0 %v1574
    %2586 = vmatpush.msra.mxu0 %v1573
    %2587 = vmatmul.f32.gmra.mxu0 %v2569
    %v2588 = vpop.f32.mrf.mxu0
    %v2589 = vadd.f32 0.0, %v2588
    %2590 = vdwg.mxu0
    %2592 = vrot.lane.b32.xlu0 %v2565, 64
    %v2593 = vpop.permute.xlu0 %2592
    %v2594 = vsel %vm1476, %v2593, 0
    %2596 = vmatpush.msra.mxu0 0.0
    %2597 = vmatpush.msra.mxu0 0.0
    %2598 = vmatpush.msra.mxu0 0.0
    %2599 = vmatpush.msra.mxu0 0.0
    %2600 = vmatpush.msra.mxu0 0.0
    %2601 = vmatpush.msra.mxu0 0.0
    %2602 = vmatpush.msra.mxu0 0.0
    %2603 = vmatpush.msra.mxu0 0.0
    %2604 = vmatpush.msra.mxu0 0.0
    %2605 = vmatpush.msra.mxu0 0.0
    %2606 = vmatpush.msra.mxu0 0.0
    %2607 = vmatpush.msra.mxu0 0.0
    %2608 = vmatpush.msra.mxu0 %v1572
    %2609 = vmatpush.msra.mxu0 %v1571
    %2610 = vmatpush.msra.mxu0 %v1570
    %2611 = vmatpush.msra.mxu0 %v1569
    %2612 = vmatmul.f32.gmra.mxu0 %v2594
    %v2613 = vpop.f32.mrf.mxu0
    %v2614 = vadd.f32 %v2589, %v2613
    %2615 = vdwg.mxu0
    %v2616 = vadd.f32 %v2614, %v1548
    %vm2617 = vcmp.gt.f32.partialorder %v2616, 0.0
    %v2618 = vmul.f32 %v2616, 0.01
    %v2619 = vsel %vm2617, %v2616, %v2618
    %v2621 = vsel %vm1689, %v2619, 0
    %2623 = vmatpush.msra.mxu0 0.0
    %2624 = vmatpush.msra.mxu0 0.0
    %2625 = vmatpush.msra.mxu0 0.0
    %2626 = vmatpush.msra.mxu0 0.0
    %2627 = vmatpush.msra.mxu0 0.0
    %2628 = vmatpush.msra.mxu0 0.0
    %2629 = vmatpush.msra.mxu0 0.0
    %2630 = vmatpush.msra.mxu0 0.0
    %2631 = vmatpush.msra.mxu0 0.0
    %2632 = vmatpush.msra.mxu0 %v1695
    %2633 = vmatpush.msra.mxu0 %v1582
    %2634 = vmatpush.msra.mxu0 %v1581
    %2635 = vmatpush.msra.mxu0 %v1580
    %2636 = vmatpush.msra.mxu0 %v1579
    %2637 = vmatpush.msra.mxu0 %v1578
    %2638 = vmatpush.msra.mxu0 %v1577
    %2639 = vmatmul.f32.gmra.mxu0 %v2621
    %v2640 = vpop.f32.mrf.mxu0
    %v2641 = vadd.f32 %v1552, %v2640
    %2642 = vdwg.mxu0
    %v2643 = vsel %vm1717, %v2641, -inf
    %2644 = vmax.xlane.f32.xlu0 %v2643
    %v2645 = vpop.xlane.xlu0 %2644
    %v2646 = vsub.f32 %v2641, %v2645
    %v2647 = vmul.f32 %v2646, 1.442695
    %v2648 = vpow.pop %v2647
    %v2649 = vsel %vm1717, %v2648, 0.0
    %2650 = vadd.xlane.f32.xlu0 %v2649
    %v2651 = vpop.xlane.xlu0 %2650
    %v2652 = vrcp.pop %v2651
    %v2653 = vmul.f32 %v2648, %v2652
    %v2655 = vsel %vm1717, %v2653, 0
    %2657 = vmatpush.msra.mxu0 0.0
    %2658 = vmatpush.msra.mxu0 0.0
    %2659 = vmatpush.msra.mxu0 0.0
    %2660 = vmatpush.msra.mxu0 0.0
    %2661 = vmatpush.msra.mxu0 0.0
    %2662 = vmatpush.msra.mxu0 0.0
    %2663 = vmatpush.msra.mxu0 0.0
    %2664 = vmatpush.msra.mxu0 0.0
    %2665 = vmatpush.msra.mxu0 0.0
    %2666 = vmatpush.msra.mxu0 0.0
    %2667 = vmatpush.msra.mxu0 0.0
    %2668 = vmatpush.msra.mxu0 0.0
    %2669 = vmatpush.msra.mxu0 0.0
    %2670 = vmatpush.msra.mxu0 0.0
    %2671 = vmatpush.msra.mxu0 %v1733
    %2672 = vmatpush.msra.mxu0 %v1563
    %2673 = vmatmul.f32.gmra.mxu0 %v2655
    %v2674 = vpop.f32.mrf.mxu0
    %v2675 = vadd.f32 0.0, %v2674
    %2676 = vdwg.mxu0
    %2677 = vmatpush.msra.mxu0 0.0
    %2678 = vmatpush.msra.mxu0 0.0
    %2679 = vmatpush.msra.mxu0 0.0
    %2680 = vmatpush.msra.mxu0 0.0
    %2681 = vmatpush.msra.mxu0 0.0
    %2682 = vmatpush.msra.mxu0 0.0
    %2683 = vmatpush.msra.mxu0 0.0
    %2684 = vmatpush.msra.mxu0 0.0
    %2685 = vmatpush.msra.mxu0 0.0
    %2686 = vmatpush.msra.mxu0 0.0
    %2687 = vmatpush.msra.mxu0 0.0
    %2688 = vmatpush.msra.mxu0 0.0
    %2689 = vmatpush.msra.mxu0 %v1562
    %2690 = vmatpush.msra.mxu0 %v1561
    %2691 = vmatpush.msra.mxu0 %v1560
    %2692 = vmatpush.msra.mxu0 %v1559
    %2693 = vmatmul.f32.gmra.mxu0 %v2594
    %v2694 = vpop.f32.mrf.mxu0
    %v2695 = vadd.f32 %v2675, %v2694
    %2696 = vdwg.mxu0
    %2698 = vrot.lane.b32.xlu0 %v2515, 64
    %v2699 = vpop.permute.xlu0 %2698
    %v2700 = vsel %vm1476, %v2699, 0
    %2702 = vmatpush.msra.mxu0 0.0
    %2703 = vmatpush.msra.mxu0 0.0
    %2704 = vmatpush.msra.mxu0 0.0
    %2705 = vmatpush.msra.mxu0 0.0
    %2706 = vmatpush.msra.mxu0 0.0
    %2707 = vmatpush.msra.mxu0 0.0
    %2708 = vmatpush.msra.mxu0 0.0
    %2709 = vmatpush.msra.mxu0 0.0
    %2710 = vmatpush.msra.mxu0 0.0
    %2711 = vmatpush.msra.mxu0 0.0
    %2712 = vmatpush.msra.mxu0 0.0
    %2713 = vmatpush.msra.mxu0 0.0
    %2714 = vmatpush.msra.mxu0 %v1568
    %2715 = vmatpush.msra.mxu0 %v1567
    %2716 = vmatpush.msra.mxu0 %v1566
    %2717 = vmatpush.msra.mxu0 %v1565
    %2718 = vmatmul.f32.gmra.mxu0 %v2700
    %v2719 = vpop.f32.mrf.mxu0
    %v2720 = vadd.f32 0.0, %v2719
    %2721 = vdwg.mxu0
    %v2722 = vadd.f32 %v2695, %v2720
    %v2723 = vadd.f32 %v2722, %v1544
    %v2724 = vtanh.pop %v2723
    %v2725 = vmul.f32 %v2723, 0.5
    %v2726 = vtanh.pop %v2725
    %v2727 = vadd.f32 %v2726, 1.0
    %v2728 = vmul.f32 %v2727, 0.5
    %v2729 = vsel %vm1554, %v2724, %v2728
    %v2730 = vmul.f32 %v2729, %v2509
    %2732 = vrot.lane.b32.xlu0 %v2729, 32
    %v2733 = vpop.permute.xlu0 %2732
    %v2735 = vmul.f32 %v2729, %v2733
    %2737 = vrot.lane.b32.xlu0 %v2735, 32
    %v2738 = vpop.permute.xlu0 %2737
    %v2740 = vadd.f32 %v2730, %v2738
    %v2741 = vtanh.pop %v2740
    %2743 = vrot.lane.b32.xlu0 %v2741, 32
    %v2744 = vpop.permute.xlu0 %2743
    %v2746 = vmul.f32 %v2729, %v2744
    %2748 = vrot.lane.b32.xlu0 %v2740, 96
    %v2749 = vpop.permute.xlu0 %2748
    %2751 = vst.msk [vmem:[#allocation2 + $0x20] sm:$0xff] %vm1476, %v2749
    %v2752 = vadd.f32 %v1368, %v1534
    %2753 = vmatpush.msra.mxu0 0.0
    %2754 = vmatpush.msra.mxu0 0.0
    %2755 = vmatpush.msra.mxu0 0.0
    %2756 = vmatpush.msra.mxu0 0.0
    %2757 = vmatpush.msra.mxu0 0.0
    %2758 = vmatpush.msra.mxu0 0.0
    %2759 = vmatpush.msra.mxu0 0.0
    %2760 = vmatpush.msra.mxu0 0.0
    %2761 = vmatpush.msra.mxu0 0.0
    %2762 = vmatpush.msra.mxu0 0.0
    %2763 = vmatpush.msra.mxu0 0.0
    %2764 = vmatpush.msra.mxu0 0.0
    %2765 = vmatpush.msra.mxu0 %v1558
    %2766 = vmatpush.msra.mxu0 %v1557
    %2767 = vmatpush.msra.mxu0 %v1556
    %2768 = vmatpush.msra.mxu0 %v1555
    %2769 = vmatmul.f32.gmra.mxu0 %v2594
    %v2770 = vpop.f32.mrf.mxu0
    %v2771 = vadd.f32 0.0, %v2770
    %2772 = vdwg.mxu0
    %v2773 = vadd.f32 %v2752, %v2771
    %v2774 = vtanh.pop %v2773
    %v2775 = vmul.f32 %v2773, 0.5
    %v2776 = vtanh.pop %v2775
    %v2777 = vadd.f32 %v2776, 1.0
    %v2778 = vmul.f32 %v2777, 0.5
    %v2779 = vsel %vm1554, %v2774, %v2778
    %v2780 = vmul.f32 %v2779, %v2559
    %2782 = vrot.lane.b32.xlu0 %v2779, 32
    %v2783 = vpop.permute.xlu0 %2782
    %v2785 = vmul.f32 %v2779, %v2783
    %2787 = vrot.lane.b32.xlu0 %v2785, 32
    %v2788 = vpop.permute.xlu0 %2787
    %v2790 = vadd.f32 %v2780, %v2788
    %v2791 = vtanh.pop %v2790
    %2793 = vrot.lane.b32.xlu0 %v2791, 32
    %v2794 = vpop.permute.xlu0 %2793
    %v2796 = vmul.f32 %v2779, %v2794
    %2798 = vrot.lane.b32.xlu0 %v2790, 96
    %v2799 = vpop.permute.xlu0 %2798
    %v2800 = vsel %vm1476, %v2799, 0
    %2802 = vmatpush.msra.mxu0 0.0
    %2803 = vmatpush.msra.mxu0 0.0
    %2804 = vmatpush.msra.mxu0 0.0
    %2805 = vmatpush.msra.mxu0 0.0
    %2806 = vmatpush.msra.mxu0 0.0
    %2807 = vmatpush.msra.mxu0 0.0
    %2808 = vmatpush.msra.mxu0 0.0
    %2809 = vmatpush.msra.mxu0 0.0
    %2810 = vmatpush.msra.mxu0 0.0
    %2811 = vmatpush.msra.mxu0 0.0
    %2812 = vmatpush.msra.mxu0 0.0
    %2813 = vmatpush.msra.mxu0 0.0
    %2814 = vmatpush.msra.mxu0 %v1576
    %2815 = vmatpush.msra.mxu0 %v1575
    %2816 = vmatpush.msra.mxu0 %v1574
    %2817 = vmatpush.msra.mxu0 %v1573
    %2818 = vmatmul.f32.gmra.mxu0 %v2800
    %v2819 = vpop.f32.mrf.mxu0
    %v2820 = vadd.f32 0.0, %v2819
    %2821 = vdwg.mxu0
    %2823 = vrot.lane.b32.xlu0 %v2796, 64
    %v2824 = vpop.permute.xlu0 %2823
    %v2825 = vsel %vm1476, %v2824, 0
    %2827 = vmatpush.msra.mxu0 0.0
    %2828 = vmatpush.msra.mxu0 0.0
    %2829 = vmatpush.msra.mxu0 0.0
    %2830 = vmatpush.msra.mxu0 0.0
    %2831 = vmatpush.msra.mxu0 0.0
    %2832 = vmatpush.msra.mxu0 0.0
    %2833 = vmatpush.msra.mxu0 0.0
    %2834 = vmatpush.msra.mxu0 0.0
    %2835 = vmatpush.msra.mxu0 0.0
    %2836 = vmatpush.msra.mxu0 0.0
    %2837 = vmatpush.msra.mxu0 0.0
    %2838 = vmatpush.msra.mxu0 0.0
    %2839 = vmatpush.msra.mxu0 %v1572
    %2840 = vmatpush.msra.mxu0 %v1571
    %2841 = vmatpush.msra.mxu0 %v1570
    %2842 = vmatpush.msra.mxu0 %v1569
    %2843 = vmatmul.f32.gmra.mxu0 %v2825
    %v2844 = vpop.f32.mrf.mxu0
    %v2845 = vadd.f32 %v2820, %v2844
    %2846 = vdwg.mxu0
    %v2847 = vadd.f32 %v2845, %v1548
    %vm2848 = vcmp.gt.f32.partialorder %v2847, 0.0
    %v2849 = vmul.f32 %v2847, 0.01
    %v2850 = vsel %vm2848, %v2847, %v2849
    %v2852 = vsel %vm1689, %v2850, 0
    %2854 = vmatpush.msra.mxu0 0.0
    %2855 = vmatpush.msra.mxu0 0.0
    %2856 = vmatpush.msra.mxu0 0.0
    %2857 = vmatpush.msra.mxu0 0.0
    %2858 = vmatpush.msra.mxu0 0.0
    %2859 = vmatpush.msra.mxu0 0.0
    %2860 = vmatpush.msra.mxu0 0.0
    %2861 = vmatpush.msra.mxu0 0.0
    %2862 = vmatpush.msra.mxu0 0.0
    %2863 = vmatpush.msra.mxu0 %v1695
    %2864 = vmatpush.msra.mxu0 %v1582
    %2865 = vmatpush.msra.mxu0 %v1581
    %2866 = vmatpush.msra.mxu0 %v1580
    %2867 = vmatpush.msra.mxu0 %v1579
    %2868 = vmatpush.msra.mxu0 %v1578
    %2869 = vmatpush.msra.mxu0 %v1577
    %2870 = vmatmul.f32.gmra.mxu0 %v2852
    %v2871 = vpop.f32.mrf.mxu0
    %v2872 = vadd.f32 %v1552, %v2871
    %2873 = vdwg.mxu0
    %v2874 = vsel %vm1717, %v2872, -inf
    %2875 = vmax.xlane.f32.xlu0 %v2874
    %v2876 = vpop.xlane.xlu0 %2875
    %v2877 = vsub.f32 %v2872, %v2876
    %v2878 = vmul.f32 %v2877, 1.442695
    %v2879 = vpow.pop %v2878
    %v2880 = vsel %vm1717, %v2879, 0.0
    %2881 = vadd.xlane.f32.xlu0 %v2880
    %v2882 = vpop.xlane.xlu0 %2881
    %v2883 = vrcp.pop %v2882
    %v2884 = vmul.f32 %v2879, %v2883
    %v2886 = vsel %vm1717, %v2884, 0
    %2888 = vmatpush.msra.mxu0 0.0
    %2889 = vmatpush.msra.mxu0 0.0
    %2890 = vmatpush.msra.mxu0 0.0
    %2891 = vmatpush.msra.mxu0 0.0
    %2892 = vmatpush.msra.mxu0 0.0
    %2893 = vmatpush.msra.mxu0 0.0
    %2894 = vmatpush.msra.mxu0 0.0
    %2895 = vmatpush.msra.mxu0 0.0
    %2896 = vmatpush.msra.mxu0 0.0
    %2897 = vmatpush.msra.mxu0 0.0
    %2898 = vmatpush.msra.mxu0 0.0
    %2899 = vmatpush.msra.mxu0 0.0
    %2900 = vmatpush.msra.mxu0 0.0
    %2901 = vmatpush.msra.mxu0 0.0
    %2902 = vmatpush.msra.mxu0 %v1733
    %2903 = vmatpush.msra.mxu0 %v1563
    %2904 = vmatmul.f32.gmra.mxu0 %v2886
    %v2905 = vpop.f32.mrf.mxu0
    %v2906 = vadd.f32 0.0, %v2905
    %2907 = vdwg.mxu0
    %2908 = vmatpush.msra.mxu0 0.0
    %2909 = vmatpush.msra.mxu0 0.0
    %2910 = vmatpush.msra.mxu0 0.0
    %2911 = vmatpush.msra.mxu0 0.0
    %2912 = vmatpush.msra.mxu0 0.0
    %2913 = vmatpush.msra.mxu0 0.0
    %2914 = vmatpush.msra.mxu0 0.0
    %2915 = vmatpush.msra.mxu0 0.0
    %2916 = vmatpush.msra.mxu0 0.0
    %2917 = vmatpush.msra.mxu0 0.0
    %2918 = vmatpush.msra.mxu0 0.0
    %2919 = vmatpush.msra.mxu0 0.0
    %2920 = vmatpush.msra.mxu0 %v1562
    %2921 = vmatpush.msra.mxu0 %v1561
    %2922 = vmatpush.msra.mxu0 %v1560
    %2923 = vmatpush.msra.mxu0 %v1559
    %2924 = vmatmul.f32.gmra.mxu0 %v2825
    %v2925 = vpop.f32.mrf.mxu0
    %v2926 = vadd.f32 %v2906, %v2925
    %2927 = vdwg.mxu0
    %2929 = vrot.lane.b32.xlu0 %v2746, 64
    %v2930 = vpop.permute.xlu0 %2929
    %v2931 = vsel %vm1476, %v2930, 0
    %2933 = vmatpush.msra.mxu0 0.0
    %2934 = vmatpush.msra.mxu0 0.0
    %2935 = vmatpush.msra.mxu0 0.0
    %2936 = vmatpush.msra.mxu0 0.0
    %2937 = vmatpush.msra.mxu0 0.0
    %2938 = vmatpush.msra.mxu0 0.0
    %2939 = vmatpush.msra.mxu0 0.0
    %2940 = vmatpush.msra.mxu0 0.0
    %2941 = vmatpush.msra.mxu0 0.0
    %2942 = vmatpush.msra.mxu0 0.0
    %2943 = vmatpush.msra.mxu0 0.0
    %2944 = vmatpush.msra.mxu0 0.0
    %2945 = vmatpush.msra.mxu0 %v1568
    %2946 = vmatpush.msra.mxu0 %v1567
    %2947 = vmatpush.msra.mxu0 %v1566
    %2948 = vmatpush.msra.mxu0 %v1565
    %2949 = vmatmul.f32.gmra.mxu0 %v2931
    %v2950 = vpop.f32.mrf.mxu0
    %v2951 = vadd.f32 0.0, %v2950
    %2952 = vdwg.mxu0
    %v2953 = vadd.f32 %v2926, %v2951
    %v2954 = vadd.f32 %v2953, %v1544
    %v2955 = vtanh.pop %v2954
    %v2956 = vmul.f32 %v2954, 0.5
    %v2957 = vtanh.pop %v2956
    %v2958 = vadd.f32 %v2957, 1.0
    %v2959 = vmul.f32 %v2958, 0.5
    %v2960 = vsel %vm1554, %v2955, %v2959
    %v2961 = vmul.f32 %v2960, %v2740
    %2963 = vrot.lane.b32.xlu0 %v2960, 32
    %v2964 = vpop.permute.xlu0 %2963
    %v2966 = vmul.f32 %v2960, %v2964
    %2968 = vrot.lane.b32.xlu0 %v2966, 32
    %v2969 = vpop.permute.xlu0 %2968
    %v2971 = vadd.f32 %v2961, %v2969
    %v2972 = vtanh.pop %v2971
    %2974 = vrot.lane.b32.xlu0 %v2972, 32
    %v2975 = vpop.permute.xlu0 %2974
    %v2977 = vmul.f32 %v2960, %v2975
    %2979 = vrot.lane.b32.xlu0 %v2971, 96
    %v2980 = vpop.permute.xlu0 %2979
    %2982 = vst.msk [vmem:[#allocation2 + $0x28] sm:$0xff] %vm1476, %v2980
    %v2983 = vadd.f32 %v1368, %v1537
    %2984 = vmatpush.msra.mxu0 0.0
    %2985 = vmatpush.msra.mxu0 0.0
    %2986 = vmatpush.msra.mxu0 0.0
    %2987 = vmatpush.msra.mxu0 0.0
    %2988 = vmatpush.msra.mxu0 0.0
    %2989 = vmatpush.msra.mxu0 0.0
    %2990 = vmatpush.msra.mxu0 0.0
    %2991 = vmatpush.msra.mxu0 0.0
    %2992 = vmatpush.msra.mxu0 0.0
    %2993 = vmatpush.msra.mxu0 0.0
    %2994 = vmatpush.msra.mxu0 0.0
    %2995 = vmatpush.msra.mxu0 0.0
    %2996 = vmatpush.msra.mxu0 %v1558
    %2997 = vmatpush.msra.mxu0 %v1557
    %2998 = vmatpush.msra.mxu0 %v1556
    %2999 = vmatpush.msra.mxu0 %v1555
    %3000 = vmatmul.f32.gmra.mxu0 %v2825
    %v3001 = vpop.f32.mrf.mxu0
    %v3002 = vadd.f32 0.0, %v3001
    %3003 = vdwg.mxu0
    %v3004 = vadd.f32 %v2983, %v3002
    %v3005 = vtanh.pop %v3004
    %v3006 = vmul.f32 %v3004, 0.5
    %v3007 = vtanh.pop %v3006
    %v3008 = vadd.f32 %v3007, 1.0
    %v3009 = vmul.f32 %v3008, 0.5
    %v3010 = vsel %vm1554, %v3005, %v3009
    %v3011 = vmul.f32 %v3010, %v2790
    %3013 = vrot.lane.b32.xlu0 %v3010, 32
    %v3014 = vpop.permute.xlu0 %3013
    %v3016 = vmul.f32 %v3010, %v3014
    %3018 = vrot.lane.b32.xlu0 %v3016, 32
    %v3019 = vpop.permute.xlu0 %3018
    %v3021 = vadd.f32 %v3011, %v3019
    %v3022 = vtanh.pop %v3021
    %3024 = vrot.lane.b32.xlu0 %v3022, 32
    %v3025 = vpop.permute.xlu0 %3024
    %v3027 = vmul.f32 %v3010, %v3025
    %3029 = vrot.lane.b32.xlu0 %v3021, 96
    %v3030 = vpop.permute.xlu0 %3029
    %v3031 = vsel %vm1476, %v3030, 0
    %3033 = vmatpush.msra.mxu0 0.0
    %3034 = vmatpush.msra.mxu0 0.0
    %3035 = vmatpush.msra.mxu0 0.0
    %3036 = vmatpush.msra.mxu0 0.0
    %3037 = vmatpush.msra.mxu0 0.0
    %3038 = vmatpush.msra.mxu0 0.0
    %3039 = vmatpush.msra.mxu0 0.0
    %3040 = vmatpush.msra.mxu0 0.0
    %3041 = vmatpush.msra.mxu0 0.0
    %3042 = vmatpush.msra.mxu0 0.0
    %3043 = vmatpush.msra.mxu0 0.0
    %3044 = vmatpush.msra.mxu0 0.0
    %3045 = vmatpush.msra.mxu0 %v1576
    %3046 = vmatpush.msra.mxu0 %v1575
    %3047 = vmatpush.msra.mxu0 %v1574
    %3048 = vmatpush.msra.mxu0 %v1573
    %3049 = vmatmul.f32.gmra.mxu0 %v3031
    %v3050 = vpop.f32.mrf.mxu0
    %v3051 = vadd.f32 0.0, %v3050
    %3052 = vdwg.mxu0
    %3054 = vrot.lane.b32.xlu0 %v3027, 64
    %v3055 = vpop.permute.xlu0 %3054
    %v3056 = vsel %vm1476, %v3055, 0
    %3058 = vmatpush.msra.mxu0 0.0
    %3059 = vmatpush.msra.mxu0 0.0
    %3060 = vmatpush.msra.mxu0 0.0
    %3061 = vmatpush.msra.mxu0 0.0
    %3062 = vmatpush.msra.mxu0 0.0
    %3063 = vmatpush.msra.mxu0 0.0
    %3064 = vmatpush.msra.mxu0 0.0
    %3065 = vmatpush.msra.mxu0 0.0
    %3066 = vmatpush.msra.mxu0 0.0
    %3067 = vmatpush.msra.mxu0 0.0
    %3068 = vmatpush.msra.mxu0 0.0
    %3069 = vmatpush.msra.mxu0 0.0
    %3070 = vmatpush.msra.mxu0 %v1572
    %3071 = vmatpush.msra.mxu0 %v1571
    %3072 = vmatpush.msra.mxu0 %v1570
    %3073 = vmatpush.msra.mxu0 %v1569
    %3074 = vmatmul.f32.gmra.mxu0 %v3056
    %v3075 = vpop.f32.mrf.mxu0
    %v3076 = vadd.f32 %v3051, %v3075
    %3077 = vdwg.mxu0
    %v3078 = vadd.f32 %v3076, %v1548
    %vm3079 = vcmp.gt.f32.partialorder %v3078, 0.0
    %v3080 = vmul.f32 %v3078, 0.01
    %v3081 = vsel %vm3079, %v3078, %v3080
    %v3083 = vsel %vm1689, %v3081, 0
    %3085 = vmatpush.msra.mxu0 0.0
    %3086 = vmatpush.msra.mxu0 0.0
    %3087 = vmatpush.msra.mxu0 0.0
    %3088 = vmatpush.msra.mxu0 0.0
    %3089 = vmatpush.msra.mxu0 0.0
    %3090 = vmatpush.msra.mxu0 0.0
    %3091 = vmatpush.msra.mxu0 0.0
    %3092 = vmatpush.msra.mxu0 0.0
    %3093 = vmatpush.msra.mxu0 0.0
    %3094 = vmatpush.msra.mxu0 %v1695
    %3095 = vmatpush.msra.mxu0 %v1582
    %3096 = vmatpush.msra.mxu0 %v1581
    %3097 = vmatpush.msra.mxu0 %v1580
    %3098 = vmatpush.msra.mxu0 %v1579
    %3099 = vmatpush.msra.mxu0 %v1578
    %3100 = vmatpush.msra.mxu0 %v1577
    %3101 = vmatmul.f32.gmra.mxu0 %v3083
    %v3102 = vpop.f32.mrf.mxu0
    %v3103 = vadd.f32 %v1552, %v3102
    %3104 = vdwg.mxu0
    %v3105 = vsel %vm1717, %v3103, -inf
    %3106 = vmax.xlane.f32.xlu0 %v3105
    %v3107 = vpop.xlane.xlu0 %3106
    %v3108 = vsub.f32 %v3103, %v3107
    %v3109 = vmul.f32 %v3108, 1.442695
    %v3110 = vpow.pop %v3109
    %v3111 = vsel %vm1717, %v3110, 0.0
    %3112 = vadd.xlane.f32.xlu0 %v3111
    %v3113 = vpop.xlane.xlu0 %3112
    %v3114 = vrcp.pop %v3113
    %v3115 = vmul.f32 %v3110, %v3114
    %v3117 = vsel %vm1717, %v3115, 0
    %3119 = vmatpush.msra.mxu0 0.0
    %3120 = vmatpush.msra.mxu0 0.0
    %3121 = vmatpush.msra.mxu0 0.0
    %3122 = vmatpush.msra.mxu0 0.0
    %3123 = vmatpush.msra.mxu0 0.0
    %3124 = vmatpush.msra.mxu0 0.0
    %3125 = vmatpush.msra.mxu0 0.0
    %3126 = vmatpush.msra.mxu0 0.0
    %3127 = vmatpush.msra.mxu0 0.0
    %3128 = vmatpush.msra.mxu0 0.0
    %3129 = vmatpush.msra.mxu0 0.0
    %3130 = vmatpush.msra.mxu0 0.0
    %3131 = vmatpush.msra.mxu0 0.0
    %3132 = vmatpush.msra.mxu0 0.0
    %3133 = vmatpush.msra.mxu0 %v1733
    %3134 = vmatpush.msra.mxu0 %v1563
    %3135 = vmatmul.f32.gmra.mxu0 %v3117
    %v3136 = vpop.f32.mrf.mxu0
    %v3137 = vadd.f32 0.0, %v3136
    %3138 = vdwg.mxu0
    %3139 = vmatpush.msra.mxu0 0.0
    %3140 = vmatpush.msra.mxu0 0.0
    %3141 = vmatpush.msra.mxu0 0.0
    %3142 = vmatpush.msra.mxu0 0.0
    %3143 = vmatpush.msra.mxu0 0.0
    %3144 = vmatpush.msra.mxu0 0.0
    %3145 = vmatpush.msra.mxu0 0.0
    %3146 = vmatpush.msra.mxu0 0.0
    %3147 = vmatpush.msra.mxu0 0.0
    %3148 = vmatpush.msra.mxu0 0.0
    %3149 = vmatpush.msra.mxu0 0.0
    %3150 = vmatpush.msra.mxu0 0.0
    %3151 = vmatpush.msra.mxu0 %v1562
    %3152 = vmatpush.msra.mxu0 %v1561
    %3153 = vmatpush.msra.mxu0 %v1560
    %3154 = vmatpush.msra.mxu0 %v1559
    %3155 = vmatmul.f32.gmra.mxu0 %v3056
    %v3156 = vpop.f32.mrf.mxu0
    %v3157 = vadd.f32 %v3137, %v3156
    %3158 = vdwg.mxu0
    %3160 = vrot.lane.b32.xlu0 %v2977, 64
    %v3161 = vpop.permute.xlu0 %3160
    %v3162 = vsel %vm1476, %v3161, 0
    %3164 = vmatpush.msra.mxu0 0.0
    %3165 = vmatpush.msra.mxu0 0.0
    %3166 = vmatpush.msra.mxu0 0.0
    %3167 = vmatpush.msra.mxu0 0.0
    %3168 = vmatpush.msra.mxu0 0.0
    %3169 = vmatpush.msra.mxu0 0.0
    %3170 = vmatpush.msra.mxu0 0.0
    %3171 = vmatpush.msra.mxu0 0.0
    %3172 = vmatpush.msra.mxu0 0.0
    %3173 = vmatpush.msra.mxu0 0.0
    %3174 = vmatpush.msra.mxu0 0.0
    %3175 = vmatpush.msra.mxu0 0.0
    %3176 = vmatpush.msra.mxu0 %v1568
    %3177 = vmatpush.msra.mxu0 %v1567
    %3178 = vmatpush.msra.mxu0 %v1566
    %3179 = vmatpush.msra.mxu0 %v1565
    %3180 = vmatmul.f32.gmra.mxu0 %v3162
    %v3181 = vpop.f32.mrf.mxu0
    %v3182 = vadd.f32 0.0, %v3181
    %3183 = vdwg.mxu0
    %v3184 = vadd.f32 %v3157, %v3182
    %v3185 = vadd.f32 %v3184, %v1544
    %v3186 = vtanh.pop %v3185
    %v3187 = vmul.f32 %v3185, 0.5
    %v3188 = vtanh.pop %v3187
    %v3189 = vadd.f32 %v3188, 1.0
    %v3190 = vmul.f32 %v3189, 0.5
    %v3191 = vsel %vm1554, %v3186, %v3190
    %v3192 = vmul.f32 %v3191, %v2971
    %3194 = vrot.lane.b32.xlu0 %v3191, 32
    %v3195 = vpop.permute.xlu0 %3194
    %v3197 = vmul.f32 %v3191, %v3195
    %3199 = vrot.lane.b32.xlu0 %v3197, 32
    %v3200 = vpop.permute.xlu0 %3199
    %v3202 = vadd.f32 %v3192, %v3200
    %v3203 = vtanh.pop %v3202
    %3205 = vrot.lane.b32.xlu0 %v3203, 32
    %v3206 = vpop.permute.xlu0 %3205
    %v3208 = vmul.f32 %v3191, %v3206
    %3210 = vrot.lane.b32.xlu0 %v3202, 96
    %v3211 = vpop.permute.xlu0 %3210
    %3213 = vst.msk [vmem:[#allocation2 + $0x30] sm:$0xff] %vm1476, %v3211
    %v3214 = vadd.f32 %v1368, %v1540
    %3215 = vmatpush.msra.mxu0 0.0
    %3216 = vmatpush.msra.mxu0 0.0
    %3217 = vmatpush.msra.mxu0 0.0
    %3218 = vmatpush.msra.mxu0 0.0
    %3219 = vmatpush.msra.mxu0 0.0
    %3220 = vmatpush.msra.mxu0 0.0
    %3221 = vmatpush.msra.mxu0 0.0
    %3222 = vmatpush.msra.mxu0 0.0
    %3223 = vmatpush.msra.mxu0 0.0
    %3224 = vmatpush.msra.mxu0 0.0
    %3225 = vmatpush.msra.mxu0 0.0
    %3226 = vmatpush.msra.mxu0 0.0
    %3227 = vmatpush.msra.mxu0 %v1558
    %3228 = vmatpush.msra.mxu0 %v1557
    %3229 = vmatpush.msra.mxu0 %v1556
    %3230 = vmatpush.msra.mxu0 %v1555
    %3231 = vmatmul.f32.gmra.mxu0 %v3056
    %v3232 = vpop.f32.mrf.mxu0
    %v3233 = vadd.f32 0.0, %v3232
    %3234 = vdwg.mxu0
    %v3235 = vadd.f32 %v3214, %v3233
    %v3236 = vtanh.pop %v3235
    %v3237 = vmul.f32 %v3235, 0.5
    %v3238 = vtanh.pop %v3237
    %v3239 = vadd.f32 %v3238, 1.0
    %v3240 = vmul.f32 %v3239, 0.5
    %v3241 = vsel %vm1554, %v3236, %v3240
    %v3242 = vmul.f32 %v3241, %v3021
    %3244 = vrot.lane.b32.xlu0 %v3241, 32
    %v3245 = vpop.permute.xlu0 %3244
    %v3247 = vmul.f32 %v3241, %v3245
    %3249 = vrot.lane.b32.xlu0 %v3247, 32
    %v3250 = vpop.permute.xlu0 %3249
    %v3252 = vadd.f32 %v3242, %v3250
    %v3253 = vtanh.pop %v3252
    %3255 = vrot.lane.b32.xlu0 %v3253, 32
    %v3256 = vpop.permute.xlu0 %3255
    %v3258 = vmul.f32 %v3241, %v3256
    %3260 = vrot.lane.b32.xlu0 %v3252, 96
    %v3261 = vpop.permute.xlu0 %3260
    %v3262 = vsel %vm1476, %v3261, 0
    %3264 = vmatpush.msra.mxu0 0.0
    %3265 = vmatpush.msra.mxu0 0.0
    %3266 = vmatpush.msra.mxu0 0.0
    %3267 = vmatpush.msra.mxu0 0.0
    %3268 = vmatpush.msra.mxu0 0.0
    %3269 = vmatpush.msra.mxu0 0.0
    %3270 = vmatpush.msra.mxu0 0.0
    %3271 = vmatpush.msra.mxu0 0.0
    %3272 = vmatpush.msra.mxu0 0.0
    %3273 = vmatpush.msra.mxu0 0.0
    %3274 = vmatpush.msra.mxu0 0.0
    %3275 = vmatpush.msra.mxu0 0.0
    %3276 = vmatpush.msra.mxu0 %v1576
    %3277 = vmatpush.msra.mxu0 %v1575
    %3278 = vmatpush.msra.mxu0 %v1574
    %3279 = vmatpush.msra.mxu0 %v1573
    %3280 = vmatmul.f32.gmra.mxu0 %v3262
    %v3281 = vpop.f32.mrf.mxu0
    %v3282 = vadd.f32 0.0, %v3281
    %3283 = vdwg.mxu0
    %3285 = vrot.lane.b32.xlu0 %v3258, 64
    %v3286 = vpop.permute.xlu0 %3285
    %v3287 = vsel %vm1476, %v3286, 0
    %3289 = vmatpush.msra.mxu0 0.0
    %3290 = vmatpush.msra.mxu0 0.0
    %3291 = vmatpush.msra.mxu0 0.0
    %3292 = vmatpush.msra.mxu0 0.0
    %3293 = vmatpush.msra.mxu0 0.0
    %3294 = vmatpush.msra.mxu0 0.0
    %3295 = vmatpush.msra.mxu0 0.0
    %3296 = vmatpush.msra.mxu0 0.0
    %3297 = vmatpush.msra.mxu0 0.0
    %3298 = vmatpush.msra.mxu0 0.0
    %3299 = vmatpush.msra.mxu0 0.0
    %3300 = vmatpush.msra.mxu0 0.0
    %3301 = vmatpush.msra.mxu0 %v1572
    %3302 = vmatpush.msra.mxu0 %v1571
    %3303 = vmatpush.msra.mxu0 %v1570
    %3304 = vmatpush.msra.mxu0 %v1569
    %3305 = vmatmul.f32.gmra.mxu0 %v3287
    %v3306 = vpop.f32.mrf.mxu0
    %v3307 = vadd.f32 %v3282, %v3306
    %3308 = vdwg.mxu0
    %v3309 = vadd.f32 %v3307, %v1548
    %vm3310 = vcmp.gt.f32.partialorder %v3309, 0.0
    %v3311 = vmul.f32 %v3309, 0.01
    %v3312 = vsel %vm3310, %v3309, %v3311
    %v3314 = vsel %vm1689, %v3312, 0
    %3316 = vmatpush.msra.mxu0 0.0
    %3317 = vmatpush.msra.mxu0 0.0
    %3318 = vmatpush.msra.mxu0 0.0
    %3319 = vmatpush.msra.mxu0 0.0
    %3320 = vmatpush.msra.mxu0 0.0
    %3321 = vmatpush.msra.mxu0 0.0
    %3322 = vmatpush.msra.mxu0 0.0
    %3323 = vmatpush.msra.mxu0 0.0
    %3324 = vmatpush.msra.mxu0 0.0
    %3325 = vmatpush.msra.mxu0 %v1695
    %3326 = vmatpush.msra.mxu0 %v1582
    %3327 = vmatpush.msra.mxu0 %v1581
    %3328 = vmatpush.msra.mxu0 %v1580
    %3329 = vmatpush.msra.mxu0 %v1579
    %3330 = vmatpush.msra.mxu0 %v1578
    %3331 = vmatpush.msra.mxu0 %v1577
    %3332 = vmatmul.f32.gmra.mxu0 %v3314
    %v3333 = vpop.f32.mrf.mxu0
    %v3334 = vadd.f32 %v1552, %v3333
    %3335 = vdwg.mxu0
    %v3336 = vsel %vm1717, %v3334, -inf
    %3337 = vmax.xlane.f32.xlu0 %v3336
    %v3338 = vpop.xlane.xlu0 %3337
    %v3339 = vsub.f32 %v3334, %v3338
    %v3340 = vmul.f32 %v3339, 1.442695
    %v3341 = vpow.pop %v3340
    %v3342 = vsel %vm1717, %v3341, 0.0
    %3343 = vadd.xlane.f32.xlu0 %v3342
    %v3344 = vpop.xlane.xlu0 %3343
    %v3345 = vrcp.pop %v3344
    %v3346 = vmul.f32 %v3341, %v3345
    %v3348 = vsel %vm1717, %v3346, 0
    %3350 = vmatpush.msra.mxu0 0.0
    %3351 = vmatpush.msra.mxu0 0.0
    %3352 = vmatpush.msra.mxu0 0.0
    %3353 = vmatpush.msra.mxu0 0.0
    %3354 = vmatpush.msra.mxu0 0.0
    %3355 = vmatpush.msra.mxu0 0.0
    %3356 = vmatpush.msra.mxu0 0.0
    %3357 = vmatpush.msra.mxu0 0.0
    %3358 = vmatpush.msra.mxu0 0.0
    %3359 = vmatpush.msra.mxu0 0.0
    %3360 = vmatpush.msra.mxu0 0.0
    %3361 = vmatpush.msra.mxu0 0.0
    %3362 = vmatpush.msra.mxu0 0.0
    %3363 = vmatpush.msra.mxu0 0.0
    %3364 = vmatpush.msra.mxu0 %v1733
    %3365 = vmatpush.msra.mxu0 %v1563
    %3366 = vmatmul.f32.gmra.mxu0 %v3348
    %v3367 = vpop.f32.mrf.mxu0
    %v3368 = vadd.f32 0.0, %v3367
    %3369 = vdwg.mxu0
    %3370 = vmatpush.msra.mxu0 0.0
    %3371 = vmatpush.msra.mxu0 0.0
    %3372 = vmatpush.msra.mxu0 0.0
    %3373 = vmatpush.msra.mxu0 0.0
    %3374 = vmatpush.msra.mxu0 0.0
    %3375 = vmatpush.msra.mxu0 0.0
    %3376 = vmatpush.msra.mxu0 0.0
    %3377 = vmatpush.msra.mxu0 0.0
    %3378 = vmatpush.msra.mxu0 0.0
    %3379 = vmatpush.msra.mxu0 0.0
    %3380 = vmatpush.msra.mxu0 0.0
    %3381 = vmatpush.msra.mxu0 0.0
    %3382 = vmatpush.msra.mxu0 %v1562
    %3383 = vmatpush.msra.mxu0 %v1561
    %3384 = vmatpush.msra.mxu0 %v1560
    %3385 = vmatpush.msra.mxu0 %v1559
    %3386 = vmatmul.f32.gmra.mxu0 %v3287
    %v3387 = vpop.f32.mrf.mxu0
    %v3388 = vadd.f32 %v3368, %v3387
    %3389 = vdwg.mxu0
    %3391 = vrot.lane.b32.xlu0 %v3208, 64
    %v3392 = vpop.permute.xlu0 %3391
    %v3393 = vsel %vm1476, %v3392, 0
    %3395 = vmatpush.msra.mxu0 0.0
    %3396 = vmatpush.msra.mxu0 0.0
    %3397 = vmatpush.msra.mxu0 0.0
    %3398 = vmatpush.msra.mxu0 0.0
    %3399 = vmatpush.msra.mxu0 0.0
    %3400 = vmatpush.msra.mxu0 0.0
    %3401 = vmatpush.msra.mxu0 0.0
    %3402 = vmatpush.msra.mxu0 0.0
    %3403 = vmatpush.msra.mxu0 0.0
    %3404 = vmatpush.msra.mxu0 0.0
    %3405 = vmatpush.msra.mxu0 0.0
    %3406 = vmatpush.msra.mxu0 0.0
    %3407 = vmatpush.msra.mxu0 %v1568
    %3408 = vmatpush.msra.mxu0 %v1567
    %3409 = vmatpush.msra.mxu0 %v1566
    %3410 = vmatpush.msra.mxu0 %v1565
    %3411 = vmatmul.f32.gmra.mxu0 %v3393
    %v3412 = vpop.f32.mrf.mxu0
    %v3413 = vadd.f32 0.0, %v3412
    %3414 = vdwg.mxu0
    %v3415 = vadd.f32 %v3388, %v3413
    %v3416 = vadd.f32 %v3415, %v1544
    %v3417 = vtanh.pop %v3416
    %v3418 = vmul.f32 %v3416, 0.5
    %v3419 = vtanh.pop %v3418
    %v3420 = vadd.f32 %v3419, 1.0
    %v3421 = vmul.f32 %v3420, 0.5
    %v3422 = vsel %vm1554, %v3417, %v3421
    %v3423 = vmul.f32 %v3422, %v3202
    %3425 = vrot.lane.b32.xlu0 %v3422, 32
    %v3426 = vpop.permute.xlu0 %3425
    %v3428 = vmul.f32 %v3422, %v3426
    %3430 = vrot.lane.b32.xlu0 %v3428, 32
    %v3431 = vpop.permute.xlu0 %3430
    %v3433 = vadd.f32 %v3423, %v3431
    %v3434 = vtanh.pop %v3433
    %3436 = vrot.lane.b32.xlu0 %v3434, 32
    %v3437 = vpop.permute.xlu0 %3436
    %v3439 = vmul.f32 %v3422, %v3437
    %3441 = vrot.lane.b32.xlu0 %v3433, 96
    %v3442 = vpop.permute.xlu0 %3441
    %3444 = vst.msk [vmem:[#allocation2 + $0x38] sm:$0xff] %vm1476, %v3442
    %v3445 = vld [vmem:[#allocation2] sm:$0xff]
    %v3446 = vld [vmem:[#allocation2 + $0x8] sm:$0xff]
    %v3447 = vld [vmem:[#allocation2 + $0x10] sm:$0xff]
    %v3448 = vld [vmem:[#allocation2 + $0x18] sm:$0xff]
    %v3449 = vld [vmem:[#allocation2 + $0x20] sm:$0xff]
    %v3450 = vld [vmem:[#allocation2 + $0x28] sm:$0xff]
    %v3451 = vld [vmem:[#allocation2 + $0x30] sm:$0xff]
    %v3452 = vld [vmem:[#allocation2 + $0x38] sm:$0xff]
    %v3453 = vld [vmem:[%s23] sm:$0xff]
    %v3454 = vld [vmem:[%s23 + $0x8] sm:$0xff]
    %v3455 = vld [vmem:[%s23 + $0x10] sm:$0xff]
    %v3456 = vld [vmem:[%s23 + $0x18] sm:$0xff]
    %v3457 = vld [vmem:[%s24] sm:$0x1]
    %v3459 = vperm.slane %v3457, 0
    %v3462 = vsel %vm1476, %v3445, 0
    %v3465 = vsel %vm1476, %v3446, 0
    %v3468 = vsel %vm1476, %v3447, 0
    %v3471 = vsel %vm1476, %v3448, 0
    %v3474 = vsel %vm1476, %v3449, 0
    %v3477 = vsel %vm1476, %v3450, 0
    %v3480 = vsel %vm1476, %v3451, 0
    %v3483 = vsel %vm1476, %v3452, 0
    %3485 = vmatpush.msra.mxu0 0.0
    %3486 = vmatpush.msra.mxu0 0.0
    %3487 = vmatpush.msra.mxu0 0.0
    %3488 = vmatpush.msra.mxu0 0.0
    %3489 = vmatpush.msra.mxu0 0.0
    %3490 = vmatpush.msra.mxu0 0.0
    %3491 = vmatpush.msra.mxu0 0.0
    %3492 = vmatpush.msra.mxu0 0.0
    %3493 = vmatpush.msra.mxu0 0.0
    %3494 = vmatpush.msra.mxu0 0.0
    %3495 = vmatpush.msra.mxu0 0.0
    %3496 = vmatpush.msra.mxu0 0.0
    %3497 = vmatpush.msra.mxu0 %v3456
    %3498 = vmatpush.msra.mxu0 %v3455
    %3499 = vmatpush.msra.mxu0 %v3454
    %3500 = vmatpush.msra.mxu0 %v3453
    %3501 = vmatmul.f32.gmra.mxu0 %v3462
    %v3502 = vpop.f32.mrf.mxu0
    %v3503 = vadd.f32 %v3459, %v3502
    %3504 = vmatmul.f32.gmra.mxu0 %v3465
    %v3505 = vpop.f32.mrf.mxu0
    %v3506 = vadd.f32 %v3459, %v3505
    %3507 = vmatmul.f32.gmra.mxu0 %v3468
    %v3508 = vpop.f32.mrf.mxu0
    %v3509 = vadd.f32 %v3459, %v3508
    %3510 = vmatmul.f32.gmra.mxu0 %v3471
    %v3511 = vpop.f32.mrf.mxu0
    %v3512 = vadd.f32 %v3459, %v3511
    %3513 = vmatmul.f32.gmra.mxu0 %v3474
    %v3514 = vpop.f32.mrf.mxu0
    %v3515 = vadd.f32 %v3459, %v3514
    %3516 = vmatmul.f32.gmra.mxu0 %v3477
    %v3517 = vpop.f32.mrf.mxu0
    %v3518 = vadd.f32 %v3459, %v3517
    %3519 = vmatmul.f32.gmra.mxu0 %v3480
    %v3520 = vpop.f32.mrf.mxu0
    %v3521 = vadd.f32 %v3459, %v3520
    %3522 = vmatmul.f32.gmra.mxu0 %v3483
    %v3523 = vpop.f32.mrf.mxu0
    %v3524 = vadd.f32 %v3459, %v3523
    %3525 = vdwg.mxu0
    %3526 = vst.msk [vmem:[%s25] sm:$0xff] %vm1476, %v3503
    %3527 = vst.msk [vmem:[%s25 + $0x8] sm:$0xff] %vm1476, %v3506
    %3528 = vst.msk [vmem:[%s25 + $0x10] sm:$0xff] %vm1476, %v3509
    %3529 = vst.msk [vmem:[%s25 + $0x18] sm:$0xff] %vm1476, %v3512
    %3530 = vst.msk [vmem:[%s25 + $0x20] sm:$0xff] %vm1476, %v3515
    %3531 = vst.msk [vmem:[%s25 + $0x28] sm:$0xff] %vm1476, %v3518
    %3532 = vst.msk [vmem:[%s25 + $0x30] sm:$0xff] %vm1476, %v3521
    %3533 = vst.msk [vmem:[%s25 + $0x38] sm:$0xff] %vm1476, %v3524
    %v3535 = vsel %vm1476, %v3286, %v3252
    %3536 = vst.msk [vmem:[%s26] sm:$0xff] %vm217, %v3535
    %3538 = vrot.lane.b32.xlu0 %v3439, 64
    %v3539 = vpop.permute.xlu0 %3538
    %v3541 = vsel %vm1476, %v3539, %v3433
    %s3542 = scalar_lea.vmem %s26, 8
    %3543 = vst.msk [vmem:[%s3542] sm:$0xff] %vm217, %v3541
    // Predicated region
    $region110: #{image_caption_forward.1} parent=1 // pred_check
      _
    $region111: #{image_caption_forward.1} parent=1 // pred_check_branch
      %3545 = sbr.rel (0) target = $region113
    $region112: #{image_caption_forward.1} parent=1 // pred_region
      _
    $region113: #{image_caption_forward.1} parent=1 // pred_fallthru
      _
    // Predicated region
    $region114: #{image_caption_forward.1} parent=1 // pred_check
      _
    $region115: #{image_caption_forward.1} parent=1 // pred_check_branch
      %3547 = sbr.rel (0) target = $region117
    $region116: #{image_caption_forward.1} parent=1 // pred_region
      _
    $region117: #{image_caption_forward.1} parent=1 // pred_fallthru
      _
    // Predicated region
    $region118: #{image_caption_forward.1} parent=1 // pred_check
      _
    $region119: #{image_caption_forward.1} parent=1 // pred_check_branch
      %3549 = sbr.rel (0) target = $region121
    $region120: #{image_caption_forward.1} parent=1 // pred_region
      _
    $region121: #{image_caption_forward.1} parent=1 // pred_fallthru
      _
    // Predicated region
    $region122: #{image_caption_forward.1} parent=1 // pred_check
      _
    $region123: #{image_caption_forward.1} parent=1 // pred_check_branch
      %3551 = sbr.rel (0) target = $region125
    $region124: #{image_caption_forward.1} parent=1 // pred_region
      _
    $region125: #{image_caption_forward.1} parent=1 // pred_fallthru
      _
    %3552 = vsyncpa [#allocation4], 1
    %3553 = vsyncpa [#allocation6], 1

</llo_original>
